<compile_context>
chip_gen: v7x
topology: tpu7x:2x2x1
jax: 0.10.0
libtpu: 0.0.40
codegen_flags: <defaults>
</compile_context>

<pallas_src>
import jax
import jax.numpy as jnp
from jax import lax
from jax.experimental import pallas as pl
from jax.experimental.pallas import tpu as pltpu

# Coefficients used by the scheduler on the (non-train) inference path.
Coeff_Energy = 0.5
Coeff_Latency = 0.5

IN_DIM = 50 * 54       # 2700
IN_PAD = 2816          # 22 * 128 (lane-aligned K for the first matmul)
H1 = 128
H2 = 128
H3 = 64
H3_PAD = 128           # layer-3 output padded to a full lane width
OUT_DIM = 2
OUT_PAD = 128          # final head padded to a full lane width
TILE_B = 128           # candidate rows per grid step (fills v5e MXU rows)

# TODO(synk): the PyTorch module's `sys.argv`-based training-mode branch (return
# the raw 2-vector) is not represented; only the inference-path scalar is fused.


def _mlp_kernel(x_ref, w1_ref, w2_ref, w3_ref, w4_ref, small_ref, out_ref):
    # Packed small operands: row 0..3 = biases b1..b4 (zero-padded), row 4 = coef.
    b1 = small_ref[0:1, :]
    b2 = small_ref[1:2, :]
    b3 = small_ref[2:3, :]
    b4 = small_ref[3:4, :]
    coef = small_ref[4:5, :]

    def softplus(v):
        # PyTorch nn.Softplus (beta=1, threshold=20) semantics.
        return jnp.where(v > 20.0, v, jnp.log1p(jnp.exp(jnp.minimum(v, 20.0))))

    # Layer 1: bf16 operands, f32 accumulation on the MXU.
    h = jnp.dot(x_ref[...], w1_ref[...], preferred_element_type=jnp.float32) + b1
    h = softplus(h)
    # Layers 2-4 stay f32 (small weights, keeps accuracy).
    h = jnp.dot(h, w2_ref[...], preferred_element_type=jnp.float32) + b2
    h = softplus(h)
    h = jnp.dot(h, w3_ref[...], preferred_element_type=jnp.float32) + b3
    h = h - jnp.tanh(h)                      # Tanhshrink (padded lanes stay 0)
    y = jnp.dot(h, w4_ref[...], preferred_element_type=jnp.float32) + b4
    y = 1.0 / (1.0 + jnp.exp(-y))            # Sigmoid

    # out[0, b] = sum_j coef[j] * y[b, j]  -> lane-dense (1, TILE_B) result row.
    res = lax.dot_general(
        coef, y,
        dimension_numbers=(((1,), (1,)), ((), ())),
        preferred_element_type=jnp.float32)
    out_ref[...] = res.reshape(1, 1, TILE_B)


def init_params(key):
    """Deterministic PyTorch-default-style init: U(-1/sqrt(fan_in), 1/sqrt(fan_in))."""
    dims = [(IN_DIM, H1), (H1, H2), (H2, H3), (H3, OUT_DIM)]
    keys = jax.random.split(key, 2 * len(dims))
    params = {}
    for li, (fan_in, fan_out) in enumerate(dims):
        bound = 1.0 / (fan_in ** 0.5)
        w = jax.random.uniform(keys[2 * li], (fan_in, fan_out), jnp.float32, -bound, bound)
        b = jax.random.uniform(keys[2 * li + 1], (1, fan_out), jnp.float32, -bound, bound)
        params[f"w{li + 1}"] = w
        params[f"b{li + 1}"] = b
    return params


def pad_params(params):
    """Lane-align weights, cast w1 to bf16, pack all small operands into one array."""
    w1 = jnp.pad(params["w1"], ((0, IN_PAD - IN_DIM), (0, 0))).astype(jnp.bfloat16)
    w2 = params["w2"]                                                   # (128, 128) f32
    w3 = jnp.pad(params["w3"], ((0, 0), (0, H3_PAD - H3)))              # (128, 128) f32
    w4 = jnp.pad(params["w4"], ((0, H3_PAD - H3), (0, OUT_PAD - OUT_DIM)))  # (128, 128)

    small = jnp.zeros((8, 128), jnp.float32)
    small = small.at[0, :H1].set(params["b1"][0])
    small = small.at[1, :H2].set(params["b2"][0])
    small = small.at[2, :H3].set(params["b3"][0])          # padded lanes stay exactly 0
    small = small.at[3, :OUT_DIM].set(params["b4"][0])
    small = small.at[4, 0].set(Coeff_Energy)
    small = small.at[4, 1].set(Coeff_Latency)

    return {"w1": w1, "w2": w2, "w3": w3, "w4": w4, "small": small}


def energy_latency2_50_forward(X, padded):
    """X: (B, 50, 54) batch of candidate states (or a single (50, 54) state)."""
    single = (X.ndim == 2)
    if single:
        X = X[None]
    B = X.shape[0]
    Bp = ((B + TILE_B - 1) // TILE_B) * TILE_B
    num_tiles = Bp // TILE_B

    Xf = X.reshape(B, IN_DIM).astype(jnp.float32)
    Xf = jnp.pad(Xf, ((0, Bp - B), (0, IN_PAD - IN_DIM))).astype(jnp.bfloat16)

    out = pl.pallas_call(
        _mlp_kernel,
        out_shape=jax.ShapeDtypeStruct((num_tiles, 1, TILE_B), jnp.float32),
        grid=(num_tiles,),
        in_specs=[
            pl.BlockSpec((TILE_B, IN_PAD), lambda i: (i, 0)),     # x tile (bf16)
            pl.BlockSpec((IN_PAD, H1), lambda i: (0, 0)),          # w1 (bf16, resident)
            pl.BlockSpec((H1, H2), lambda i: (0, 0)),              # w2 (resident)
            pl.BlockSpec((H2, H3_PAD), lambda i: (0, 0)),          # w3 (resident)
            pl.BlockSpec((H3_PAD, OUT_PAD), lambda i: (0, 0)),     # w4 (resident)
            pl.BlockSpec((8, 128), lambda i: (0, 0)),              # packed biases + coef
        ],
        out_specs=pl.BlockSpec((1, 1, TILE_B), lambda i: (i, 0, 0)),
        compiler_params=pltpu.CompilerParams(
            dimension_semantics=("parallel",),
        ),
    )(Xf, padded["w1"], padded["w2"], padded["w3"], padded["w4"], padded["small"])

    res = out.reshape(Bp)[:B]
    return res[0] if single else res


def reference_forward(X, params):
    """Pure-JAX reference of the PyTorch forward (inference path).

    Matches the kernel's precision choices: first layer in bf16 operands with
    f32 accumulation, remaining layers full f32.
    """
    w1_bf = params["w1"].astype(jnp.bfloat16)
    hi = lax.Precision.HIGHEST

    def one(x):
        h = x.reshape(IN_DIM).astype(jnp.bfloat16)
        h = jnp.dot(h, w1_bf, preferred_element_type=jnp.float32) + params["b1"][0]
        h = jax.nn.softplus(h)
        h = jax.nn.softplus(jnp.dot(h, params["w2"], precision=hi) + params["b2"][0])
        h = jnp.dot(h, params["w3"], precision=hi) + params["b3"][0]
        h = h - jnp.tanh(h)
        y = jax.nn.sigmoid(jnp.dot(h, params["w4"], precision=hi) + params["b4"][0])
        return Coeff_Energy * y[0] + Coeff_Latency * y[1]

    return jax.vmap(one)(X)


if __name__ == "__main__":
    key = jax.random.PRNGKey(0)
    k_x, k_p = jax.random.split(key)

    # A batch of candidate schedules (GOBI-style evaluation), each 50 x 54.
    B = 256
    X = jax.random.normal(k_x, (B, 50, 54), dtype=jnp.float32)

    params = init_params(k_p)
    padded = pad_params(params)

    out = energy_latency2_50_forward(X, padded)
    out = jax.block_until_ready(out)

    ref = reference_forward(X, params)
    assert out.shape == (B,), out.shape
    max_err = float(jnp.max(jnp.abs(out - ref)))
    assert jnp.allclose(out, ref, atol=1e-3, rtol=1e-3), max_err

    print("KERNEL_OK")
</pallas_src>

<mosaic_0001>
module attributes {stable_mosaic.version = 11 : i64} {
  func.func @_mlp_kernel(%arg0: i32, %arg1: memref<128x2816xbf16, #tpu.memory_space<vmem>>, %arg2: memref<2816x128xbf16, #tpu.memory_space<vmem>>, %arg3: memref<128x128xf32, #tpu.memory_space<vmem>>, %arg4: memref<128x128xf32, #tpu.memory_space<vmem>>, %arg5: memref<128x128xf32, #tpu.memory_space<vmem>>, %arg6: memref<8x128xf32, #tpu.memory_space<vmem>>, %arg7: memref<1x1x128xf32, #tpu.memory_space<vmem>>) attributes {dimension_semantics = [#tpu.dimension_semantics<parallel>], iteration_bounds = array<i64: 2>, scalar_prefetch = 0 : i64, scratch_operands = 0 : i64, tpu.core_type = #tpu.core_type<tc>, window_params = [{transform_indices = @transform_0, window_bounds = array<i64: 128, 2816>}, {pipeline_mode = #tpu.pipeline_mode<synchronous>, transform_indices = @transform_1, window_bounds = array<i64: 2816, 128>}, {pipeline_mode = #tpu.pipeline_mode<synchronous>, transform_indices = @transform_2, window_bounds = array<i64: 128, 128>}, {pipeline_mode = #tpu.pipeline_mode<synchronous>, transform_indices = @transform_3, window_bounds = array<i64: 128, 128>}, {pipeline_mode = #tpu.pipeline_mode<synchronous>, transform_indices = @transform_4, window_bounds = array<i64: 128, 128>}, {pipeline_mode = #tpu.pipeline_mode<synchronous>, transform_indices = @transform_5, window_bounds = array<i64: 8, 128>}, {transform_indices = @transform_6, window_bounds = array<i64: 1, 1, 128>}]} {
    %c0 = arith.constant 0 : index
    %c0_0 = arith.constant 0 : index
    %0 = vector.load %arg6[%c0, %c0_0] : memref<8x128xf32, #tpu.memory_space<vmem>>, vector<1x128xf32>
    %c1 = arith.constant 1 : index
    %c0_1 = arith.constant 0 : index
    %1 = vector.load %arg6[%c1, %c0_1] : memref<8x128xf32, #tpu.memory_space<vmem>>, vector<1x128xf32>
    %c2 = arith.constant 2 : index
    %c0_2 = arith.constant 0 : index
    %2 = vector.load %arg6[%c2, %c0_2] : memref<8x128xf32, #tpu.memory_space<vmem>>, vector<1x128xf32>
    %c3 = arith.constant 3 : index
    %c0_3 = arith.constant 0 : index
    %3 = vector.load %arg6[%c3, %c0_3] : memref<8x128xf32, #tpu.memory_space<vmem>>, vector<1x128xf32>
    %c4 = arith.constant 4 : index
    %c0_4 = arith.constant 0 : index
    %4 = vector.load %arg6[%c4, %c0_4] : memref<8x128xf32, #tpu.memory_space<vmem>>, vector<1x128xf32>
    %c0_5 = arith.constant 0 : index
    %c0_6 = arith.constant 0 : index
    %5 = vector.load %arg1[%c0_5, %c0_6] : memref<128x2816xbf16, #tpu.memory_space<vmem>>, vector<128x2816xbf16>
    %c0_7 = arith.constant 0 : index
    %c0_8 = arith.constant 0 : index
    %6 = vector.load %arg2[%c0_7, %c0_8] : memref<2816x128xbf16, #tpu.memory_space<vmem>>, vector<2816x128xbf16>
    %cst = arith.constant dense<0.000000e+00> : vector<128x128xf32>
    %7 = tpu.matmul %5, %6, %cst {dimension_numbers = #tpu.dot_dimension_numbers<[1], [0], [0], [1], [0, 0, 1, 1], [], []>} : vector<128x2816xbf16>, vector<2816x128xbf16>, vector<128x128xf32> -> vector<128x128xf32>
    %8 = vector.broadcast %0 : vector<1x128xf32> to vector<128x128xf32>
    %9 = arith.addf %7, %8 : vector<128x128xf32>
    %cst_9 = arith.constant 2.000000e+01 : f32
    %10 = vector.broadcast %cst_9 : f32 to vector<128x128xf32>
    %11 = arith.cmpf ogt, %9, %10 : vector<128x128xf32>
    %cst_10 = arith.constant 2.000000e+01 : f32
    %12 = vector.broadcast %cst_10 : f32 to vector<128x128xf32>
    %13 = arith.minimumf %9, %12 : vector<128x128xf32>
    %14 = math.exp %13 : vector<128x128xf32>
    %15 = math.log1p %14 : vector<128x128xf32>
    %16 = arith.select %11, %9, %15 : vector<128x128xi1>, vector<128x128xf32>
    %c0_11 = arith.constant 0 : index
    %c0_12 = arith.constant 0 : index
    %17 = vector.load %arg3[%c0_11, %c0_12] : memref<128x128xf32, #tpu.memory_space<vmem>>, vector<128x128xf32>
    %cst_13 = arith.constant dense<0.000000e+00> : vector<128x128xf32>
    %18 = tpu.matmul %16, %17, %cst_13 {dimension_numbers = #tpu.dot_dimension_numbers<[1], [0], [0], [1], [0, 0, 1, 1], [], []>} : vector<128x128xf32>, vector<128x128xf32>, vector<128x128xf32> -> vector<128x128xf32>
    %19 = vector.broadcast %1 : vector<1x128xf32> to vector<128x128xf32>
    %20 = arith.addf %18, %19 : vector<128x128xf32>
    %cst_14 = arith.constant 2.000000e+01 : f32
    %21 = vector.broadcast %cst_14 : f32 to vector<128x128xf32>
    %22 = arith.cmpf ogt, %20, %21 : vector<128x128xf32>
    %cst_15 = arith.constant 2.000000e+01 : f32
    %23 = vector.broadcast %cst_15 : f32 to vector<128x128xf32>
    %24 = arith.minimumf %20, %23 : vector<128x128xf32>
    %25 = math.exp %24 : vector<128x128xf32>
    %26 = math.log1p %25 : vector<128x128xf32>
    %27 = arith.select %22, %20, %26 : vector<128x128xi1>, vector<128x128xf32>
    %c0_16 = arith.constant 0 : index
    %c0_17 = arith.constant 0 : index
    %28 = vector.load %arg4[%c0_16, %c0_17] : memref<128x128xf32, #tpu.memory_space<vmem>>, vector<128x128xf32>
    %cst_18 = arith.constant dense<0.000000e+00> : vector<128x128xf32>
    %29 = tpu.matmul %27, %28, %cst_18 {dimension_numbers = #tpu.dot_dimension_numbers<[1], [0], [0], [1], [0, 0, 1, 1], [], []>} : vector<128x128xf32>, vector<128x128xf32>, vector<128x128xf32> -> vector<128x128xf32>
    %30 = vector.broadcast %2 : vector<1x128xf32> to vector<128x128xf32>
    %31 = arith.addf %29, %30 : vector<128x128xf32>
    %32 = math.tanh %31 : vector<128x128xf32>
    %33 = arith.subf %31, %32 : vector<128x128xf32>
    %c0_19 = arith.constant 0 : index
    %c0_20 = arith.constant 0 : index
    %34 = vector.load %arg5[%c0_19, %c0_20] : memref<128x128xf32, #tpu.memory_space<vmem>>, vector<128x128xf32>
    %cst_21 = arith.constant dense<0.000000e+00> : vector<128x128xf32>
    %35 = tpu.matmul %33, %34, %cst_21 {dimension_numbers = #tpu.dot_dimension_numbers<[1], [0], [0], [1], [0, 0, 1, 1], [], []>} : vector<128x128xf32>, vector<128x128xf32>, vector<128x128xf32> -> vector<128x128xf32>
    %36 = vector.broadcast %3 : vector<1x128xf32> to vector<128x128xf32>
    %37 = arith.addf %35, %36 : vector<128x128xf32>
    %cst_22 = arith.constant 0.000000e+00 : f32
    %38 = vector.broadcast %cst_22 : f32 to vector<128x128xf32>
    %39 = arith.subf %38, %37 : vector<128x128xf32>
    %40 = math.exp %39 : vector<128x128xf32>
    %cst_23 = arith.constant 1.000000e+00 : f32
    %41 = vector.broadcast %cst_23 : f32 to vector<128x128xf32>
    %42 = arith.addf %41, %40 : vector<128x128xf32>
    %cst_24 = arith.constant 1.000000e+00 : f32
    %43 = vector.broadcast %cst_24 : f32 to vector<128x128xf32>
    %44 = arith.divf %43, %42 : vector<128x128xf32>
    %cst_25 = arith.constant dense<0.000000e+00> : vector<1x128xf32>
    %45 = tpu.matmul %4, %44, %cst_25 {dimension_numbers = #tpu.dot_dimension_numbers<[1], [1], [0], [0], [0, 0, 1, 0], [], []>} : vector<1x128xf32>, vector<128x128xf32>, vector<1x128xf32> -> vector<1x128xf32>
    %46 = vector.shape_cast %45 : vector<1x128xf32> to vector<1x1x128xf32>
    %c0_26 = arith.constant 0 : index
    %c0_27 = arith.constant 0 : index
    %c0_28 = arith.constant 0 : index
    %47 = vector.load %arg7[%c0_26, %c0_27, %c0_28] : memref<1x1x128xf32, #tpu.memory_space<vmem>>, vector<1x1x128xf32>
    tpu.vector_store %arg7[%c0_26, %c0_27, %c0_28], %46 {strides = array<i32>} : memref<1x1x128xf32, #tpu.memory_space<vmem>>, vector<1x1x128xf32>,
    return
  }
  func.func @transform_0(%arg0: i32) -> (i32, i32) {
    %c0_i32 = arith.constant 0 : i32
    %c0_i32_0 = arith.constant 0 : i32
    return %arg0, %c0_i32 : i32, i32
  }
  func.func @transform_1(%arg0: i32) -> (i32, i32) {
    %c0_i32 = arith.constant 0 : i32
    %c0_i32_0 = arith.constant 0 : i32
    %c0_i32_1 = arith.constant 0 : i32
    return %c0_i32, %c0_i32_0 : i32, i32
  }
  func.func @transform_2(%arg0: i32) -> (i32, i32) {
    %c0_i32 = arith.constant 0 : i32
    %c0_i32_0 = arith.constant 0 : i32
    %c0_i32_1 = arith.constant 0 : i32
    return %c0_i32, %c0_i32_0 : i32, i32
  }
  func.func @transform_3(%arg0: i32) -> (i32, i32) {
    %c0_i32 = arith.constant 0 : i32
    %c0_i32_0 = arith.constant 0 : i32
    %c0_i32_1 = arith.constant 0 : i32
    return %c0_i32, %c0_i32_0 : i32, i32
  }
  func.func @transform_4(%arg0: i32) -> (i32, i32) {
    %c0_i32 = arith.constant 0 : i32
    %c0_i32_0 = arith.constant 0 : i32
    %c0_i32_1 = arith.constant 0 : i32
    return %c0_i32, %c0_i32_0 : i32, i32
  }
  func.func @transform_5(%arg0: i32) -> (i32, i32) {
    %c0_i32 = arith.constant 0 : i32
    %c0_i32_0 = arith.constant 0 : i32
    %c0_i32_1 = arith.constant 0 : i32
    return %c0_i32, %c0_i32_0 : i32, i32
  }
  func.func @transform_6(%arg0: i32) -> (i32, i32, i32) {
    %c0_i32 = arith.constant 0 : i32
    %c0_i32_0 = arith.constant 0 : i32
    %c0_i32_1 = arith.constant 0 : i32
    return %arg0, %c0_i32, %c0_i32_0 : i32, i32, i32
  }
}

</mosaic_0001>

<llo_original>
// kernel: tpu_custom_call.1
$region0: #{tpu_custom_call.1}
  #allocation0 [shape = 'u32[]', space=smem, size = 0x4, offset = 0x4, fixed_abs, tag = 'smem constant byte address 0x4 - core index']
  #allocation1 [shape = 'u32[144,128]{1,0:T(1,128)}', space=vmem, size = 0x12000, scoped, tag = 'internal scratch']
  %s0 = inlined_call_operand.hbm [shape: bf16[256,2816], index: 0, kind: input, shape index: {}]
  %s1 = inlined_call_operand.hbm [shape: bf16[2816,128], index: 1, kind: input, shape index: {}]
  %s2 = inlined_call_operand.hbm [shape: f32[128,128], index: 2, kind: input, shape index: {}]
  %s3 = inlined_call_operand.hbm [shape: f32[128,128], index: 3, kind: input, shape index: {}]
  %s4 = inlined_call_operand.hbm [shape: f32[128,128], index: 4, kind: input, shape index: {}]
  %s5 = inlined_call_operand.hbm [shape: f32[8,128], index: 5, kind: input, shape index: {}]
  %s6 = inlined_call_operand.hbm [shape: f32[2,1,128], index: 6, kind: output, shape index: {}]
  %s7 = sld [smem:[#allocation0]]
  $region81: #{tpu_custom_call.1} parent=0
    _
  %s9 = ssub.s32 1, %s7
  %s10 = scalar_select 0, %s9, %s7
  $region1: #{tpu_custom_call.1} parent=0
    #allocation2 [shape = 'u8[1441792]{0}', space=vmem, size = 0x160000, scoped, tag = 'input window, operand 0']
    #allocation3 [shape = 's32[2]{0}', space=sflag, size = 0x8, scoped, tag = 'scoped memory for tpu_custom_call.1']
    #allocation4 [shape = 's32[2]{0}', space=sflag, size = 0x8, scoped, tag = 'scoped memory for tpu_custom_call.1']
    #allocation5 [shape = 'u8[720896]{0}', space=vmem, size = 0xb0000, scoped, tag = 'input window, operand 1, single buffered']
    #allocation6 [shape = 's32[1]{0}', space=sflag, size = 0x4, scoped, tag = 'scoped memory for tpu_custom_call.1']
    #allocation7 [shape = 'u8[65536]{0}', space=vmem, size = 0x10000, scoped, tag = 'input window, operand 2, single buffered']
    #allocation8 [shape = 'u8[65536]{0}', space=vmem, size = 0x10000, scoped, tag = 'input window, operand 3, single buffered']
    #allocation9 [shape = 's32[1]{0}', space=sflag, size = 0x4, scoped, tag = 'scoped memory for tpu_custom_call.1']
    #allocation10 [shape = 'u8[65536]{0}', space=vmem, size = 0x10000, scoped, tag = 'input window, operand 4, single buffered']
    #allocation11 [shape = 'u8[4096]{0}', space=vmem, size = 0x1000, scoped, tag = 'input window, operand 5, single buffered']
    #allocation12 [shape = 's32[1]{0}', space=sflag, size = 0x4, scoped, tag = 'scoped memory for tpu_custom_call.1']
    #allocation13 [shape = 'u8[1024]{0}', space=vmem, size = 0x400, scoped, tag = 'output window, operand 0']
    %11 = vsyncpa [#allocation3], 0
    %s12 = scalar_lea.sflag [#allocation3], 1
    %13 = vsyncpa %s12, 0
    %14 = vsyncpa [#allocation6], 0
    %15 = vsyncpa [#allocation9], 0
    %16 = vsyncpa [#allocation12], 0
    %17 = vsyncpa [#allocation4], 0
    %s18 = scalar_lea.sflag [#allocation4], 1
    %19 = vsyncpa %s18, 0
    loop: start=0, step=1, limit=4
    $region2: #{tpu_custom_call.1} parent=1 // loop_pre_header
      _
    $region3: #{tpu_custom_call.1} parent=1 // loop_header
      %s21 = sphi 0, %s25
      %p22 = scmp.ge.s32.totalorder %s21, 4
      %s31 = sphi 0, %s33
      %s34 = sphi 0, %s31
      %s35 = sphi 0, %s34
      %s51 = sphi 0, %s35
      %s55 = sphi 0, %s55
      %s57 = sphi 0, %s55
      %s58 = sphi 0, %s57
      %s72 = sphi 0, %s58
      %s76 = sphi 0, %s76
      %s78 = sphi 0, %s76
      %s79 = sphi 0, %s78
      %s93 = sphi 0, %s79
      %s97 = sphi 0, %s97
      %s99 = sphi 0, %s97
      %s100 = sphi 0, %s99
      %s114 = sphi 0, %s100
      %s118 = sphi 0, %s118
      %s120 = sphi 0, %s118
      %s121 = sphi 0, %s120
      %s135 = sphi 0, %s121
      %s139 = sphi 0, %s139
      %s141 = sphi 0, %s139
      %s142 = sphi 0, %s141
      %s156 = sphi 0, %s142
      %s162 = sphi 0, %s164
      %s165 = sphi 0, %s162
      %s166 = sphi 0, %s165
      %s182 = sphi 0, %s166
    $region4: #{tpu_custom_call.1} parent=1 // loop_header_branch
      %24 = sbr.rel (%p22) target = $region8
    $region5: #{tpu_custom_call.1} parent=1 // loop_body
      %s26 = ssub.s32 %s21, 1
      %s27 = ssub.s32 %s21, 2
      %s28 = sadd.s32 %s21, 1
      %s29 = ssub.s32 %s21, %s28
      %p30 = scmp.eq.s32.totalorder %s29, 0
      %s32 = sadd.s32 %s31, 1
      %s33 = scalar_select %p30, %s31, %s32
      %p36 = pneg %p30
      %p37 = scmp.eq.s32.totalorder %s21, 1
      %p38 = por %p36, %p37
      %p39 = scmp.ne.s32.totalorder %s31, %s34
      %p40 = scmp.eq.s32.totalorder %s21, 0
      %p41 = por %p39, %p40
      %p42 = scmp.ne.s32.totalorder %s31, %s34
      %p43 = scmp.eq.s32.totalorder %s26, 1
      %p44 = por %p42, %p43
      %p45 = scmp.ne.s32.totalorder %s34, %s35
      %p46 = scmp.eq.s32.totalorder %s26, 0
      %p47 = por %p45, %p46
      %p48 = scmp.ne.s32.totalorder %s34, %s35
      %p49 = scmp.eq.s32.totalorder %s27, 1
      %p50 = por %p48, %p49
      %p52 = scmp.ne.s32.totalorder %s35, %s51
      %p53 = scmp.eq.s32.totalorder %s27, 0
      %p54 = por %p52, %p53
      %s56 = sadd.s32 %s55, 1
      %p59 = scmp.eq.s32.totalorder %s21, 1
      %p60 = scmp.ne.s32.totalorder %s55, %s57
      %p61 = scmp.eq.s32.totalorder %s21, 0
      %p62 = por %p60, %p61
      %p63 = scmp.ne.s32.totalorder %s55, %s57
      %p64 = scmp.eq.s32.totalorder %s26, 1
      %p65 = por %p63, %p64
      %p66 = scmp.ne.s32.totalorder %s57, %s58
      %p67 = scmp.eq.s32.totalorder %s26, 0
      %p68 = por %p66, %p67
      %p69 = scmp.ne.s32.totalorder %s57, %s58
      %p70 = scmp.eq.s32.totalorder %s27, 1
      %p71 = por %p69, %p70
      %p73 = scmp.ne.s32.totalorder %s58, %s72
      %p74 = scmp.eq.s32.totalorder %s27, 0
      %p75 = por %p73, %p74
      %s77 = sadd.s32 %s76, 1
      %p80 = scmp.eq.s32.totalorder %s21, 1
      %p81 = scmp.ne.s32.totalorder %s76, %s78
      %p82 = scmp.eq.s32.totalorder %s21, 0
      %p83 = por %p81, %p82
      %p84 = scmp.ne.s32.totalorder %s76, %s78
      %p85 = scmp.eq.s32.totalorder %s26, 1
      %p86 = por %p84, %p85
      %p87 = scmp.ne.s32.totalorder %s78, %s79
      %p88 = scmp.eq.s32.totalorder %s26, 0
      %p89 = por %p87, %p88
      %p90 = scmp.ne.s32.totalorder %s78, %s79
      %p91 = scmp.eq.s32.totalorder %s27, 1
      %p92 = por %p90, %p91
      %p94 = scmp.ne.s32.totalorder %s79, %s93
      %p95 = scmp.eq.s32.totalorder %s27, 0
      %p96 = por %p94, %p95
      %s98 = sadd.s32 %s97, 1
      %p101 = scmp.eq.s32.totalorder %s21, 1
      %p102 = scmp.ne.s32.totalorder %s97, %s99
      %p103 = scmp.eq.s32.totalorder %s21, 0
      %p104 = por %p102, %p103
      %p105 = scmp.ne.s32.totalorder %s97, %s99
      %p106 = scmp.eq.s32.totalorder %s26, 1
      %p107 = por %p105, %p106
      %p108 = scmp.ne.s32.totalorder %s99, %s100
      %p109 = scmp.eq.s32.totalorder %s26, 0
      %p110 = por %p108, %p109
      %p111 = scmp.ne.s32.totalorder %s99, %s100
      %p112 = scmp.eq.s32.totalorder %s27, 1
      %p113 = por %p111, %p112
      %p115 = scmp.ne.s32.totalorder %s100, %s114
      %p116 = scmp.eq.s32.totalorder %s27, 0
      %p117 = por %p115, %p116
      %s119 = sadd.s32 %s118, 1
      %p122 = scmp.eq.s32.totalorder %s21, 1
      %p123 = scmp.ne.s32.totalorder %s118, %s120
      %p124 = scmp.eq.s32.totalorder %s21, 0
      %p125 = por %p123, %p124
      %p126 = scmp.ne.s32.totalorder %s118, %s120
      %p127 = scmp.eq.s32.totalorder %s26, 1
      %p128 = por %p126, %p127
      %p129 = scmp.ne.s32.totalorder %s120, %s121
      %p130 = scmp.eq.s32.totalorder %s26, 0
      %p131 = por %p129, %p130
      %p132 = scmp.ne.s32.totalorder %s120, %s121
      %p133 = scmp.eq.s32.totalorder %s27, 1
      %p134 = por %p132, %p133
      %p136 = scmp.ne.s32.totalorder %s121, %s135
      %p137 = scmp.eq.s32.totalorder %s27, 0
      %p138 = por %p136, %p137
      %s140 = sadd.s32 %s139, 1
      %p143 = scmp.eq.s32.totalorder %s21, 1
      %p144 = scmp.ne.s32.totalorder %s139, %s141
      %p145 = scmp.eq.s32.totalorder %s21, 0
      %p146 = por %p144, %p145
      %p147 = scmp.ne.s32.totalorder %s139, %s141
      %p148 = scmp.eq.s32.totalorder %s26, 1
      %p149 = por %p147, %p148
      %p150 = scmp.ne.s32.totalorder %s141, %s142
      %p151 = scmp.eq.s32.totalorder %s26, 0
      %p152 = por %p150, %p151
      %p153 = scmp.ne.s32.totalorder %s141, %s142
      %p154 = scmp.eq.s32.totalorder %s27, 1
      %p155 = por %p153, %p154
      %p157 = scmp.ne.s32.totalorder %s142, %s156
      %p158 = scmp.eq.s32.totalorder %s27, 0
      %p159 = por %p157, %p158
      %s160 = ssub.s32 %s21, %s28
      %p161 = scmp.eq.s32.totalorder %s160, 0
      %s163 = sadd.s32 %s162, 1
      %s164 = scalar_select %p161, %s162, %s163
      %p167 = pneg %p161
      %p168 = scmp.eq.s32.totalorder %s21, 1
      %p169 = por %p167, %p168
      %p170 = scmp.ne.s32.totalorder %s162, %s165
      %p171 = scmp.eq.s32.totalorder %s21, 0
      %p172 = por %p170, %p171
      %p173 = scmp.ne.s32.totalorder %s162, %s165
      %p174 = scmp.eq.s32.totalorder %s26, 1
      %p175 = por %p173, %p174
      %p176 = scmp.ne.s32.totalorder %s165, %s166
      %p177 = scmp.eq.s32.totalorder %s26, 0
      %p178 = por %p176, %p177
      %p179 = scmp.ne.s32.totalorder %s165, %s166
      %p180 = scmp.eq.s32.totalorder %s27, 1
      %p181 = por %p179, %p180
      %p183 = scmp.ne.s32.totalorder %s166, %s182
      %p184 = scmp.eq.s32.totalorder %s27, 0
      %p185 = por %p183, %p184
      %p186 = scmp.le.s32.totalorder 1, %s21
      %p187 = scmp.lt.s32.totalorder %s21, 3
      %p188 = pnand %p186, %p187
      %p189 = pneg %p188
      // Predicated region
      $region9: #{tpu_custom_call.1} parent=5 // pred_check
        _
      $region10: #{tpu_custom_call.1} parent=5 // pred_check_branch
        %191 = sbr.rel (%p188) target = $region12
      $region11: #{tpu_custom_call.1} parent=5 // pred_region
        %s192 = ssub.s32 %s21, 1
        // Predicated region
        $region13: #{tpu_custom_call.1} parent=11 // pred_check
          %p193 = pneg %p68
        $region14: #{tpu_custom_call.1} parent=11 // pred_check_branch
          %195 = sbr.rel (%p193) target = $region16
        $region15: #{tpu_custom_call.1} parent=11 // pred_region
          %s197 = ssub.s32 22528, 22528
          %198 = vsyncadd [#allocation6], %s197
          %s199 = sshll.u32 [#allocation5], 4
          %s200 = int_to_ptr.vmem [resolvable:$true] %s199
          %205 = dma.hbm_to_vmem [thread:$0]  %s1, 22528, %s200, [#allocation6], 64, 64, 4
        $region16: #{tpu_custom_call.1} parent=11 // pred_fallthru
          _
        // Predicated region
        $region17: #{tpu_custom_call.1} parent=11 // pred_check
          %p206 = pneg %p89
        $region18: #{tpu_custom_call.1} parent=11 // pred_check_branch
          %208 = sbr.rel (%p206) target = $region20
        $region19: #{tpu_custom_call.1} parent=11 // pred_region
          %s210 = ssub.s32 2048, 2048
          %211 = vsyncadd [#allocation6], %s210
          %s212 = sshll.u32 [#allocation7], 4
          %s213 = int_to_ptr.vmem [resolvable:$true] %s212
          %218 = dma.hbm_to_vmem [thread:$0]  %s2, 2048, %s213, [#allocation6], 128, 128, 8
        $region20: #{tpu_custom_call.1} parent=11 // pred_fallthru
          _
        // Predicated region
        $region21: #{tpu_custom_call.1} parent=11 // pred_check
          %p219 = pneg %p110
        $region22: #{tpu_custom_call.1} parent=11 // pred_check_branch
          %221 = sbr.rel (%p219) target = $region24
        $region23: #{tpu_custom_call.1} parent=11 // pred_region
          %s223 = ssub.s32 2048, 2048
          %224 = vsyncadd [#allocation9], %s223
          %s225 = sshll.u32 [#allocation8], 4
          %s226 = int_to_ptr.vmem [resolvable:$true] %s225
          %231 = dma.hbm_to_vmem [thread:$0]  %s3, 2048, %s226, [#allocation9], 128, 128, 8
        $region24: #{tpu_custom_call.1} parent=11 // pred_fallthru
          _
        // Predicated region
        $region25: #{tpu_custom_call.1} parent=11 // pred_check
          %p232 = pneg %p131
        $region26: #{tpu_custom_call.1} parent=11 // pred_check_branch
          %234 = sbr.rel (%p232) target = $region28
        $region27: #{tpu_custom_call.1} parent=11 // pred_region
          %s236 = ssub.s32 2048, 2048
          %237 = vsyncadd [#allocation9], %s236
          %s238 = sshll.u32 [#allocation10], 4
          %s239 = int_to_ptr.vmem [resolvable:$true] %s238
          %244 = dma.hbm_to_vmem [thread:$0]  %s4, 2048, %s239, [#allocation9], 128, 128, 8
        $region28: #{tpu_custom_call.1} parent=11 // pred_fallthru
          _
        // Predicated region
        $region29: #{tpu_custom_call.1} parent=11 // pred_check
          %p245 = pneg %p152
        $region30: #{tpu_custom_call.1} parent=11 // pred_check_branch
          %247 = sbr.rel (%p245) target = $region32
        $region31: #{tpu_custom_call.1} parent=11 // pred_region
          %s249 = ssub.s32 128, 128
          %250 = vsyncadd [#allocation12], %s249
          %s252 = sshll.u32 [#allocation11], 4
          %s253 = int_to_ptr.vmem [resolvable:$true] %s252
          %255 = dma.hbm_to_vmem [thread:$0]  %s5, 128, %s253, [#allocation12]
        $region32: #{tpu_custom_call.1} parent=11 // pred_fallthru
          _
      $region12: #{tpu_custom_call.1} parent=5 // pred_fallthru
        _
      %p256 = scmp.lt.s32.totalorder %s21, 2
      // Predicated region
      $region33: #{tpu_custom_call.1} parent=5 // pred_check
        %p257 = pneg %p256
      $region34: #{tpu_custom_call.1} parent=5 // pred_check_branch
        %259 = sbr.rel (%p257) target = $region36
      $region35: #{tpu_custom_call.1} parent=5 // pred_region
        // Predicated region
        $region37: #{tpu_custom_call.1} parent=35 // pred_check
          %p260 = pneg %p41
        $region38: #{tpu_custom_call.1} parent=35 // pred_check_branch
          %262 = sbr.rel (%p260) target = $region40
        $region39: #{tpu_custom_call.1} parent=35 // pred_region
          %s263 = sand.u32 %s31, 1
          %s264 = scalar_lea.sflag [#allocation3], %s263
          %s265 = sand.u32 %s31, 1
          %s266 = smul.addr %s265, 1408
          %s267 = scalar_lea.vmem [#allocation2], %s266
          %s268 = smul.u32 16, %s21
          %s270 = ssub.s32 22528, 22528
          %271 = vsyncadd %s264, %s270
          %s272 = smul.addr %s268, 22
          %s273 = smul.addr %s272, 64
          %s274 = scalar_lea.hbm %s0, %s273
          %s275 = sshll.u32 %s267, 4
          %s276 = int_to_ptr.vmem [resolvable:$true] %s275
          %281 = dma.hbm_to_vmem [thread:$0]  %s274, 22528, %s276, %s264, 1408, 1408, 88
        $region40: #{tpu_custom_call.1} parent=35 // pred_fallthru
          _
      $region36: #{tpu_custom_call.1} parent=5 // pred_fallthru
        _
      %p282 = scmp.le.s32.totalorder 1, %s21
      %p283 = scmp.lt.s32.totalorder %s21, 3
      %p284 = pnand %p282, %p283
      %p285 = pneg %p284
      // Predicated region
      $region41: #{tpu_custom_call.1} parent=5 // pred_check
        _
      $region42: #{tpu_custom_call.1} parent=5 // pred_check_branch
        %287 = sbr.rel (%p284) target = $region44
      $region43: #{tpu_custom_call.1} parent=5 // pred_region
        %s288 = ssub.s32 %s21, 1
        %s289 = sand.u32 %s34, 1
        %s290 = scalar_lea.sflag [#allocation3], %s289
        %s291 = sand.u32 %s34, 1
        %s292 = smul.addr %s291, 1408
        %s293 = scalar_lea.vmem [#allocation2], %s292
        // Predicated region
        $region45: #{tpu_custom_call.1} parent=43 // pred_check
          %p294 = pneg %p47
        $region46: #{tpu_custom_call.1} parent=43 // pred_check_branch
          %296 = sbr.rel (%p294) target = $region48
        $region47: #{tpu_custom_call.1} parent=43 // pred_region
          %297 = dma.done %s290, 22528
        $region48: #{tpu_custom_call.1} parent=43 // pred_fallthru
          _
        // Predicated region
        $region49: #{tpu_custom_call.1} parent=43 // pred_check
          %p298 = pneg %p68
        $region50: #{tpu_custom_call.1} parent=43 // pred_check_branch
          %300 = sbr.rel (%p298) target = $region52
        $region51: #{tpu_custom_call.1} parent=43 // pred_region
          %301 = dma.done [#allocation6], 22528
        $region52: #{tpu_custom_call.1} parent=43 // pred_fallthru
          _
        // Predicated region
        $region53: #{tpu_custom_call.1} parent=43 // pred_check
          %p302 = pneg %p89
        $region54: #{tpu_custom_call.1} parent=43 // pred_check_branch
          %304 = sbr.rel (%p302) target = $region56
        $region55: #{tpu_custom_call.1} parent=43 // pred_region
          %305 = dma.done [#allocation6], 2048
        $region56: #{tpu_custom_call.1} parent=43 // pred_fallthru
          _
        // Predicated region
        $region57: #{tpu_custom_call.1} parent=43 // pred_check
          %p306 = pneg %p110
        $region58: #{tpu_custom_call.1} parent=43 // pred_check_branch
          %308 = sbr.rel (%p306) target = $region60
        $region59: #{tpu_custom_call.1} parent=43 // pred_region
          %309 = dma.done [#allocation9], 2048
        $region60: #{tpu_custom_call.1} parent=43 // pred_fallthru
          _
        // Predicated region
        $region61: #{tpu_custom_call.1} parent=43 // pred_check
          %p310 = pneg %p131
        $region62: #{tpu_custom_call.1} parent=43 // pred_check_branch
          %312 = sbr.rel (%p310) target = $region64
        $region63: #{tpu_custom_call.1} parent=43 // pred_region
          %313 = dma.done [#allocation9], 2048
        $region64: #{tpu_custom_call.1} parent=43 // pred_fallthru
          _
        // Predicated region
        $region65: #{tpu_custom_call.1} parent=43 // pred_check
          %p314 = pneg %p152
        $region66: #{tpu_custom_call.1} parent=43 // pred_check_branch
          %316 = sbr.rel (%p314) target = $region68
        $region67: #{tpu_custom_call.1} parent=43 // pred_region
          %317 = dma.done [#allocation12], 128
        $region68: #{tpu_custom_call.1} parent=43 // pred_fallthru
          _
        %s318 = sand.u32 %s34, 1
        %s319 = scalar_lea.sflag [#allocation3], %s318
        %s320 = sand.u32 %s34, 1
        %s321 = smul.addr %s320, 1408
        %s322 = scalar_lea.vmem [#allocation2], %s321
        %p323 = pneg %p47
        %p324 = pneg %p44
        %p325 = pneg %p68
        %p326 = pneg %p65
        %p327 = pneg %p89
        %p328 = pneg %p86
        %p329 = pneg %p110
        %p330 = pneg %p107
        %p331 = pneg %p131
        %p332 = pneg %p128
        %p333 = pneg %p152
        %p334 = pneg %p149
        %p335 = pneg %p178
        %p336 = pneg %p175
        %s337 = sand.u32 %s165, 1
        %s338 = scalar_lea.sflag [#allocation4], %s337
        %s339 = sand.u32 %s165, 1
        %s340 = scalar_lea.vmem [#allocation13], %s339
        %s341 = smul.u32 16, %s26
        %v343 = vld [vmem:[#allocation11] sm:$0x1]
        %v344 = vld [vmem:[#allocation11 + $0x1] sm:$0x1]
        %v345 = vld [vmem:[#allocation11 + $0x2] sm:$0x1]
        %v346 = vld [vmem:[#allocation11 + $0x3] sm:$0x1]
        %v347 = vld [vmem:[#allocation11 + $0x4] sm:$0x1]
        %v348 = vld [vmem:[%s293] sm:$0xff]
        %v349 = vld [vmem:[%s293 + $0x8] sm:$0xff]
        %v350 = vld [vmem:[%s293 + $0x10] sm:$0xff]
        %v351 = vld [vmem:[%s293 + $0x18] sm:$0xff]
        %v352 = vld [vmem:[%s293 + $0x20] sm:$0xff]
        %v353 = vld [vmem:[%s293 + $0x28] sm:$0xff]
        %v354 = vld [vmem:[%s293 + $0x30] sm:$0xff]
        %v355 = vld [vmem:[%s293 + $0x38] sm:$0xff]
        %v356 = vld [vmem:[%s293 + $0x40] sm:$0xff]
        %v357 = vld [vmem:[%s293 + $0x48] sm:$0xff]
        %v358 = vld [vmem:[%s293 + $0x50] sm:$0xff]
        %v359 = vld [vmem:[%s293 + $0x58] sm:$0xff]
        %v360 = vld [vmem:[%s293 + $0x60] sm:$0xff]
        %v361 = vld [vmem:[%s293 + $0x68] sm:$0xff]
        %v362 = vld [vmem:[%s293 + $0x70] sm:$0xff]
        %v363 = vld [vmem:[%s293 + $0x78] sm:$0xff]
        %v364 = vld [vmem:[%s293 + $0x80] sm:$0xff]
        %v365 = vld [vmem:[%s293 + $0x88] sm:$0xff]
        %v366 = vld [vmem:[%s293 + $0x90] sm:$0xff]
        %v367 = vld [vmem:[%s293 + $0x98] sm:$0xff]
        %v368 = vld [vmem:[%s293 + $0xa0] sm:$0xff]
        %v369 = vld [vmem:[%s293 + $0xa8] sm:$0xff]
        %v370 = vld [vmem:[%s293 + $0xb0] sm:$0xff]
        %v371 = vld [vmem:[%s293 + $0xb8] sm:$0xff]
        %v372 = vld [vmem:[%s293 + $0xc0] sm:$0xff]
        %v373 = vld [vmem:[%s293 + $0xc8] sm:$0xff]
        %v374 = vld [vmem:[%s293 + $0xd0] sm:$0xff]
        %v375 = vld [vmem:[%s293 + $0xd8] sm:$0xff]
        %v376 = vld [vmem:[%s293 + $0xe0] sm:$0xff]
        %v377 = vld [vmem:[%s293 + $0xe8] sm:$0xff]
        %v378 = vld [vmem:[%s293 + $0xf0] sm:$0xff]
        %v379 = vld [vmem:[%s293 + $0xf8] sm:$0xff]
        %v380 = vld [vmem:[%s293 + $0x100] sm:$0xff]
        %v381 = vld [vmem:[%s293 + $0x108] sm:$0xff]
        %v382 = vld [vmem:[%s293 + $0x110] sm:$0xff]
        %v383 = vld [vmem:[%s293 + $0x118] sm:$0xff]
        %v384 = vld [vmem:[%s293 + $0x120] sm:$0xff]
        %v385 = vld [vmem:[%s293 + $0x128] sm:$0xff]
        %v386 = vld [vmem:[%s293 + $0x130] sm:$0xff]
        %v387 = vld [vmem:[%s293 + $0x138] sm:$0xff]
        %v388 = vld [vmem:[%s293 + $0x140] sm:$0xff]
        %v389 = vld [vmem:[%s293 + $0x148] sm:$0xff]
        %v390 = vld [vmem:[%s293 + $0x150] sm:$0xff]
        %v391 = vld [vmem:[%s293 + $0x158] sm:$0xff]
        %v392 = vld [vmem:[%s293 + $0x160] sm:$0xff]
        %v393 = vld [vmem:[%s293 + $0x168] sm:$0xff]
        %v394 = vld [vmem:[%s293 + $0x170] sm:$0xff]
        %v395 = vld [vmem:[%s293 + $0x178] sm:$0xff]
        %v396 = vld [vmem:[%s293 + $0x180] sm:$0xff]
        %v397 = vld [vmem:[%s293 + $0x188] sm:$0xff]
        %v398 = vld [vmem:[%s293 + $0x190] sm:$0xff]
        %v399 = vld [vmem:[%s293 + $0x198] sm:$0xff]
        %v400 = vld [vmem:[%s293 + $0x1a0] sm:$0xff]
        %v401 = vld [vmem:[%s293 + $0x1a8] sm:$0xff]
        %v402 = vld [vmem:[%s293 + $0x1b0] sm:$0xff]
        %v403 = vld [vmem:[%s293 + $0x1b8] sm:$0xff]
        %v404 = vld [vmem:[%s293 + $0x1c0] sm:$0xff]
        %v405 = vld [vmem:[%s293 + $0x1c8] sm:$0xff]
        %v406 = vld [vmem:[%s293 + $0x1d0] sm:$0xff]
        %v407 = vld [vmem:[%s293 + $0x1d8] sm:$0xff]
        %v408 = vld [vmem:[%s293 + $0x1e0] sm:$0xff]
        %v409 = vld [vmem:[%s293 + $0x1e8] sm:$0xff]
        %v410 = vld [vmem:[%s293 + $0x1f0] sm:$0xff]
        %v411 = vld [vmem:[%s293 + $0x1f8] sm:$0xff]
        %v412 = vld [vmem:[%s293 + $0x200] sm:$0xff]
        %v413 = vld [vmem:[%s293 + $0x208] sm:$0xff]
        %v414 = vld [vmem:[%s293 + $0x210] sm:$0xff]
        %v415 = vld [vmem:[%s293 + $0x218] sm:$0xff]
        %v416 = vld [vmem:[%s293 + $0x220] sm:$0xff]
        %v417 = vld [vmem:[%s293 + $0x228] sm:$0xff]
        %v418 = vld [vmem:[%s293 + $0x230] sm:$0xff]
        %v419 = vld [vmem:[%s293 + $0x238] sm:$0xff]
        %v420 = vld [vmem:[%s293 + $0x240] sm:$0xff]
        %v421 = vld [vmem:[%s293 + $0x248] sm:$0xff]
        %v422 = vld [vmem:[%s293 + $0x250] sm:$0xff]
        %v423 = vld [vmem:[%s293 + $0x258] sm:$0xff]
        %v424 = vld [vmem:[%s293 + $0x260] sm:$0xff]
        %v425 = vld [vmem:[%s293 + $0x268] sm:$0xff]
        %v426 = vld [vmem:[%s293 + $0x270] sm:$0xff]
        %v427 = vld [vmem:[%s293 + $0x278] sm:$0xff]
        %v428 = vld [vmem:[%s293 + $0x280] sm:$0xff]
        %v429 = vld [vmem:[%s293 + $0x288] sm:$0xff]
        %v430 = vld [vmem:[%s293 + $0x290] sm:$0xff]
        %v431 = vld [vmem:[%s293 + $0x298] sm:$0xff]
        %v432 = vld [vmem:[%s293 + $0x2a0] sm:$0xff]
        %v433 = vld [vmem:[%s293 + $0x2a8] sm:$0xff]
        %v434 = vld [vmem:[%s293 + $0x2b0] sm:$0xff]
        %v435 = vld [vmem:[%s293 + $0x2b8] sm:$0xff]
        %v436 = vld [vmem:[%s293 + $0x2c0] sm:$0xff]
        %v437 = vld [vmem:[%s293 + $0x2c8] sm:$0xff]
        %v438 = vld [vmem:[%s293 + $0x2d0] sm:$0xff]
        %v439 = vld [vmem:[%s293 + $0x2d8] sm:$0xff]
        %v440 = vld [vmem:[%s293 + $0x2e0] sm:$0xff]
        %v441 = vld [vmem:[%s293 + $0x2e8] sm:$0xff]
        %v442 = vld [vmem:[%s293 + $0x2f0] sm:$0xff]
        %v443 = vld [vmem:[%s293 + $0x2f8] sm:$0xff]
        %v444 = vld [vmem:[%s293 + $0x300] sm:$0xff]
        %v445 = vld [vmem:[%s293 + $0x308] sm:$0xff]
        %v446 = vld [vmem:[%s293 + $0x310] sm:$0xff]
        %v447 = vld [vmem:[%s293 + $0x318] sm:$0xff]
        %v448 = vld [vmem:[%s293 + $0x320] sm:$0xff]
        %v449 = vld [vmem:[%s293 + $0x328] sm:$0xff]
        %v450 = vld [vmem:[%s293 + $0x330] sm:$0xff]
        %v451 = vld [vmem:[%s293 + $0x338] sm:$0xff]
        %v452 = vld [vmem:[%s293 + $0x340] sm:$0xff]
        %v453 = vld [vmem:[%s293 + $0x348] sm:$0xff]
        %v454 = vld [vmem:[%s293 + $0x350] sm:$0xff]
        %v455 = vld [vmem:[%s293 + $0x358] sm:$0xff]
        %v456 = vld [vmem:[%s293 + $0x360] sm:$0xff]
        %v457 = vld [vmem:[%s293 + $0x368] sm:$0xff]
        %v458 = vld [vmem:[%s293 + $0x370] sm:$0xff]
        %v459 = vld [vmem:[%s293 + $0x378] sm:$0xff]
        %v460 = vld [vmem:[%s293 + $0x380] sm:$0xff]
        %v461 = vld [vmem:[%s293 + $0x388] sm:$0xff]
        %v462 = vld [vmem:[%s293 + $0x390] sm:$0xff]
        %v463 = vld [vmem:[%s293 + $0x398] sm:$0xff]
        %v464 = vld [vmem:[%s293 + $0x3a0] sm:$0xff]
        %v465 = vld [vmem:[%s293 + $0x3a8] sm:$0xff]
        %v466 = vld [vmem:[%s293 + $0x3b0] sm:$0xff]
        %v467 = vld [vmem:[%s293 + $0x3b8] sm:$0xff]
        %v468 = vld [vmem:[%s293 + $0x3c0] sm:$0xff]
        %v469 = vld [vmem:[%s293 + $0x3c8] sm:$0xff]
        %v470 = vld [vmem:[%s293 + $0x3d0] sm:$0xff]
        %v471 = vld [vmem:[%s293 + $0x3d8] sm:$0xff]
        %v472 = vld [vmem:[%s293 + $0x3e0] sm:$0xff]
        %v473 = vld [vmem:[%s293 + $0x3e8] sm:$0xff]
        %v474 = vld [vmem:[%s293 + $0x3f0] sm:$0xff]
        %v475 = vld [vmem:[%s293 + $0x3f8] sm:$0xff]
        %v476 = vld [vmem:[%s293 + $0x400] sm:$0xff]
        %v477 = vld [vmem:[%s293 + $0x408] sm:$0xff]
        %v478 = vld [vmem:[%s293 + $0x410] sm:$0xff]
        %v479 = vld [vmem:[%s293 + $0x418] sm:$0xff]
        %v480 = vld [vmem:[%s293 + $0x420] sm:$0xff]
        %v481 = vld [vmem:[%s293 + $0x428] sm:$0xff]
        %v482 = vld [vmem:[%s293 + $0x430] sm:$0xff]
        %v483 = vld [vmem:[%s293 + $0x438] sm:$0xff]
        %v484 = vld [vmem:[%s293 + $0x440] sm:$0xff]
        %v485 = vld [vmem:[%s293 + $0x448] sm:$0xff]
        %v486 = vld [vmem:[%s293 + $0x450] sm:$0xff]
        %v487 = vld [vmem:[%s293 + $0x458] sm:$0xff]
        %v488 = vld [vmem:[%s293 + $0x460] sm:$0xff]
        %v489 = vld [vmem:[%s293 + $0x468] sm:$0xff]
        %v490 = vld [vmem:[%s293 + $0x470] sm:$0xff]
        %v491 = vld [vmem:[%s293 + $0x478] sm:$0xff]
        %v492 = vld [vmem:[%s293 + $0x480] sm:$0xff]
        %v493 = vld [vmem:[%s293 + $0x488] sm:$0xff]
        %v494 = vld [vmem:[%s293 + $0x490] sm:$0xff]
        %v495 = vld [vmem:[%s293 + $0x498] sm:$0xff]
        %v496 = vld [vmem:[%s293 + $0x4a0] sm:$0xff]
        %v497 = vld [vmem:[%s293 + $0x4a8] sm:$0xff]
        %v498 = vld [vmem:[%s293 + $0x4b0] sm:$0xff]
        %v499 = vld [vmem:[%s293 + $0x4b8] sm:$0xff]
        %v500 = vld [vmem:[%s293 + $0x4c0] sm:$0xff]
        %v501 = vld [vmem:[%s293 + $0x4c8] sm:$0xff]
        %v502 = vld [vmem:[%s293 + $0x4d0] sm:$0xff]
        %v503 = vld [vmem:[%s293 + $0x4d8] sm:$0xff]
        %v504 = vld [vmem:[%s293 + $0x4e0] sm:$0xff]
        %v505 = vld [vmem:[%s293 + $0x4e8] sm:$0xff]
        %v506 = vld [vmem:[%s293 + $0x4f0] sm:$0xff]
        %v507 = vld [vmem:[%s293 + $0x4f8] sm:$0xff]
        %v508 = vld [vmem:[%s293 + $0x500] sm:$0xff]
        %v509 = vld [vmem:[%s293 + $0x508] sm:$0xff]
        %v510 = vld [vmem:[%s293 + $0x510] sm:$0xff]
        %v511 = vld [vmem:[%s293 + $0x518] sm:$0xff]
        %v512 = vld [vmem:[%s293 + $0x520] sm:$0xff]
        %v513 = vld [vmem:[%s293 + $0x528] sm:$0xff]
        %v514 = vld [vmem:[%s293 + $0x530] sm:$0xff]
        %v515 = vld [vmem:[%s293 + $0x538] sm:$0xff]
        %v516 = vld [vmem:[%s293 + $0x540] sm:$0xff]
        %v517 = vld [vmem:[%s293 + $0x548] sm:$0xff]
        %v518 = vld [vmem:[%s293 + $0x550] sm:$0xff]
        %v519 = vld [vmem:[%s293 + $0x558] sm:$0xff]
        %v520 = vld [vmem:[%s293 + $0x560] sm:$0xff]
        %v521 = vld [vmem:[%s293 + $0x568] sm:$0xff]
        %v522 = vld [vmem:[%s293 + $0x570] sm:$0xff]
        %v523 = vld [vmem:[%s293 + $0x578] sm:$0xff]
        %v524 = vld [vmem:[#allocation5] sm:$0xf]
        %v525 = vld [vmem:[#allocation5 + $0x4] sm:$0xf]
        %v526 = vld [vmem:[#allocation5 + $0x8] sm:$0xf]
        %v527 = vld [vmem:[#allocation5 + $0xc] sm:$0xf]
        %v528 = vld [vmem:[#allocation5 + $0x10] sm:$0xf]
        %v529 = vld [vmem:[#allocation5 + $0x14] sm:$0xf]
        %v530 = vld [vmem:[#allocation5 + $0x18] sm:$0xf]
        %v531 = vld [vmem:[#allocation5 + $0x1c] sm:$0xf]
        %v532 = vld [vmem:[#allocation5 + $0x20] sm:$0xf]
        %v533 = vld [vmem:[#allocation5 + $0x24] sm:$0xf]
        %v534 = vld [vmem:[#allocation5 + $0x28] sm:$0xf]
        %v535 = vld [vmem:[#allocation5 + $0x2c] sm:$0xf]
        %v536 = vld [vmem:[#allocation5 + $0x30] sm:$0xf]
        %v537 = vld [vmem:[#allocation5 + $0x34] sm:$0xf]
        %v538 = vld [vmem:[#allocation5 + $0x38] sm:$0xf]
        %v539 = vld [vmem:[#allocation5 + $0x3c] sm:$0xf]
        %v540 = vld [vmem:[#allocation5 + $0x40] sm:$0xf]
        %v541 = vld [vmem:[#allocation5 + $0x44] sm:$0xf]
        %v542 = vld [vmem:[#allocation5 + $0x48] sm:$0xf]
        %v543 = vld [vmem:[#allocation5 + $0x4c] sm:$0xf]
        %v544 = vld [vmem:[#allocation5 + $0x50] sm:$0xf]
        %v545 = vld [vmem:[#allocation5 + $0x54] sm:$0xf]
        %v546 = vld [vmem:[#allocation5 + $0x58] sm:$0xf]
        %v547 = vld [vmem:[#allocation5 + $0x5c] sm:$0xf]
        %v548 = vld [vmem:[#allocation5 + $0x60] sm:$0xf]
        %v549 = vld [vmem:[#allocation5 + $0x64] sm:$0xf]
        %v550 = vld [vmem:[#allocation5 + $0x68] sm:$0xf]
        %v551 = vld [vmem:[#allocation5 + $0x6c] sm:$0xf]
        %v552 = vld [vmem:[#allocation5 + $0x70] sm:$0xf]
        %v553 = vld [vmem:[#allocation5 + $0x74] sm:$0xf]
        %v554 = vld [vmem:[#allocation5 + $0x78] sm:$0xf]
        %v555 = vld [vmem:[#allocation5 + $0x7c] sm:$0xf]
        %v556 = vld [vmem:[#allocation5 + $0x80] sm:$0xf]
        %v557 = vld [vmem:[#allocation5 + $0x84] sm:$0xf]
        %v558 = vld [vmem:[#allocation5 + $0x88] sm:$0xf]
        %v559 = vld [vmem:[#allocation5 + $0x8c] sm:$0xf]
        %v560 = vld [vmem:[#allocation5 + $0x90] sm:$0xf]
        %v561 = vld [vmem:[#allocation5 + $0x94] sm:$0xf]
        %v562 = vld [vmem:[#allocation5 + $0x98] sm:$0xf]
        %v563 = vld [vmem:[#allocation5 + $0x9c] sm:$0xf]
        %v564 = vld [vmem:[#allocation5 + $0xa0] sm:$0xf]
        %v565 = vld [vmem:[#allocation5 + $0xa4] sm:$0xf]
        %v566 = vld [vmem:[#allocation5 + $0xa8] sm:$0xf]
        %v567 = vld [vmem:[#allocation5 + $0xac] sm:$0xf]
        %v568 = vld [vmem:[#allocation5 + $0xb0] sm:$0xf]
        %v569 = vld [vmem:[#allocation5 + $0xb4] sm:$0xf]
        %v570 = vld [vmem:[#allocation5 + $0xb8] sm:$0xf]
        %v571 = vld [vmem:[#allocation5 + $0xbc] sm:$0xf]
        %v572 = vld [vmem:[#allocation5 + $0xc0] sm:$0xf]
        %v573 = vld [vmem:[#allocation5 + $0xc4] sm:$0xf]
        %v574 = vld [vmem:[#allocation5 + $0xc8] sm:$0xf]
        %v575 = vld [vmem:[#allocation5 + $0xcc] sm:$0xf]
        %v576 = vld [vmem:[#allocation5 + $0xd0] sm:$0xf]
        %v577 = vld [vmem:[#allocation5 + $0xd4] sm:$0xf]
        %v578 = vld [vmem:[#allocation5 + $0xd8] sm:$0xf]
        %v579 = vld [vmem:[#allocation5 + $0xdc] sm:$0xf]
        %v580 = vld [vmem:[#allocation5 + $0xe0] sm:$0xf]
        %v581 = vld [vmem:[#allocation5 + $0xe4] sm:$0xf]
        %v582 = vld [vmem:[#allocation5 + $0xe8] sm:$0xf]
        %v583 = vld [vmem:[#allocation5 + $0xec] sm:$0xf]
        %v584 = vld [vmem:[#allocation5 + $0xf0] sm:$0xf]
        %v585 = vld [vmem:[#allocation5 + $0xf4] sm:$0xf]
        %v586 = vld [vmem:[#allocation5 + $0xf8] sm:$0xf]
        %v587 = vld [vmem:[#allocation5 + $0xfc] sm:$0xf]
        %v588 = vld [vmem:[#allocation5 + $0x100] sm:$0xf]
        %v589 = vld [vmem:[#allocation5 + $0x104] sm:$0xf]
        %v590 = vld [vmem:[#allocation5 + $0x108] sm:$0xf]
        %v591 = vld [vmem:[#allocation5 + $0x10c] sm:$0xf]
        %v592 = vld [vmem:[#allocation5 + $0x110] sm:$0xf]
        %v593 = vld [vmem:[#allocation5 + $0x114] sm:$0xf]
        %v594 = vld [vmem:[#allocation5 + $0x118] sm:$0xf]
        %v595 = vld [vmem:[#allocation5 + $0x11c] sm:$0xf]
        %v596 = vld [vmem:[#allocation5 + $0x120] sm:$0xf]
        %v597 = vld [vmem:[#allocation5 + $0x124] sm:$0xf]
        %v598 = vld [vmem:[#allocation5 + $0x128] sm:$0xf]
        %v599 = vld [vmem:[#allocation5 + $0x12c] sm:$0xf]
        %v600 = vld [vmem:[#allocation5 + $0x130] sm:$0xf]
        %v601 = vld [vmem:[#allocation5 + $0x134] sm:$0xf]
        %v602 = vld [vmem:[#allocation5 + $0x138] sm:$0xf]
        %v603 = vld [vmem:[#allocation5 + $0x13c] sm:$0xf]
        %v604 = vld [vmem:[#allocation5 + $0x140] sm:$0xf]
        %v605 = vld [vmem:[#allocation5 + $0x144] sm:$0xf]
        %v606 = vld [vmem:[#allocation5 + $0x148] sm:$0xf]
        %v607 = vld [vmem:[#allocation5 + $0x14c] sm:$0xf]
        %v608 = vld [vmem:[#allocation5 + $0x150] sm:$0xf]
        %v609 = vld [vmem:[#allocation5 + $0x154] sm:$0xf]
        %v610 = vld [vmem:[#allocation5 + $0x158] sm:$0xf]
        %v611 = vld [vmem:[#allocation5 + $0x15c] sm:$0xf]
        %v612 = vld [vmem:[#allocation5 + $0x160] sm:$0xf]
        %v613 = vld [vmem:[#allocation5 + $0x164] sm:$0xf]
        %v614 = vld [vmem:[#allocation5 + $0x168] sm:$0xf]
        %v615 = vld [vmem:[#allocation5 + $0x16c] sm:$0xf]
        %v616 = vld [vmem:[#allocation5 + $0x170] sm:$0xf]
        %v617 = vld [vmem:[#allocation5 + $0x174] sm:$0xf]
        %v618 = vld [vmem:[#allocation5 + $0x178] sm:$0xf]
        %v619 = vld [vmem:[#allocation5 + $0x17c] sm:$0xf]
        %v620 = vld [vmem:[#allocation5 + $0x180] sm:$0xf]
        %v621 = vld [vmem:[#allocation5 + $0x184] sm:$0xf]
        %v622 = vld [vmem:[#allocation5 + $0x188] sm:$0xf]
        %v623 = vld [vmem:[#allocation5 + $0x18c] sm:$0xf]
        %v624 = vld [vmem:[#allocation5 + $0x190] sm:$0xf]
        %v625 = vld [vmem:[#allocation5 + $0x194] sm:$0xf]
        %v626 = vld [vmem:[#allocation5 + $0x198] sm:$0xf]
        %v627 = vld [vmem:[#allocation5 + $0x19c] sm:$0xf]
        %v628 = vld [vmem:[#allocation5 + $0x1a0] sm:$0xf]
        %v629 = vld [vmem:[#allocation5 + $0x1a4] sm:$0xf]
        %v630 = vld [vmem:[#allocation5 + $0x1a8] sm:$0xf]
        %v631 = vld [vmem:[#allocation5 + $0x1ac] sm:$0xf]
        %v632 = vld [vmem:[#allocation5 + $0x1b0] sm:$0xf]
        %v633 = vld [vmem:[#allocation5 + $0x1b4] sm:$0xf]
        %v634 = vld [vmem:[#allocation5 + $0x1b8] sm:$0xf]
        %v635 = vld [vmem:[#allocation5 + $0x1bc] sm:$0xf]
        %v636 = vld [vmem:[#allocation5 + $0x1c0] sm:$0xf]
        %v637 = vld [vmem:[#allocation5 + $0x1c4] sm:$0xf]
        %v638 = vld [vmem:[#allocation5 + $0x1c8] sm:$0xf]
        %v639 = vld [vmem:[#allocation5 + $0x1cc] sm:$0xf]
        %v640 = vld [vmem:[#allocation5 + $0x1d0] sm:$0xf]
        %v641 = vld [vmem:[#allocation5 + $0x1d4] sm:$0xf]
        %v642 = vld [vmem:[#allocation5 + $0x1d8] sm:$0xf]
        %v643 = vld [vmem:[#allocation5 + $0x1dc] sm:$0xf]
        %v644 = vld [vmem:[#allocation5 + $0x1e0] sm:$0xf]
        %v645 = vld [vmem:[#allocation5 + $0x1e4] sm:$0xf]
        %v646 = vld [vmem:[#allocation5 + $0x1e8] sm:$0xf]
        %v647 = vld [vmem:[#allocation5 + $0x1ec] sm:$0xf]
        %v648 = vld [vmem:[#allocation5 + $0x1f0] sm:$0xf]
        %v649 = vld [vmem:[#allocation5 + $0x1f4] sm:$0xf]
        %v650 = vld [vmem:[#allocation5 + $0x1f8] sm:$0xf]
        %v651 = vld [vmem:[#allocation5 + $0x1fc] sm:$0xf]
        %v652 = vld [vmem:[#allocation5 + $0x200] sm:$0xf]
        %v653 = vld [vmem:[#allocation5 + $0x204] sm:$0xf]
        %v654 = vld [vmem:[#allocation5 + $0x208] sm:$0xf]
        %v655 = vld [vmem:[#allocation5 + $0x20c] sm:$0xf]
        %v656 = vld [vmem:[#allocation5 + $0x210] sm:$0xf]
        %v657 = vld [vmem:[#allocation5 + $0x214] sm:$0xf]
        %v658 = vld [vmem:[#allocation5 + $0x218] sm:$0xf]
        %v659 = vld [vmem:[#allocation5 + $0x21c] sm:$0xf]
        %v660 = vld [vmem:[#allocation5 + $0x220] sm:$0xf]
        %v661 = vld [vmem:[#allocation5 + $0x224] sm:$0xf]
        %v662 = vld [vmem:[#allocation5 + $0x228] sm:$0xf]
        %v663 = vld [vmem:[#allocation5 + $0x22c] sm:$0xf]
        %v664 = vld [vmem:[#allocation5 + $0x230] sm:$0xf]
        %v665 = vld [vmem:[#allocation5 + $0x234] sm:$0xf]
        %v666 = vld [vmem:[#allocation5 + $0x238] sm:$0xf]
        %v667 = vld [vmem:[#allocation5 + $0x23c] sm:$0xf]
        %v668 = vld [vmem:[#allocation5 + $0x240] sm:$0xf]
        %v669 = vld [vmem:[#allocation5 + $0x244] sm:$0xf]
        %v670 = vld [vmem:[#allocation5 + $0x248] sm:$0xf]
        %v671 = vld [vmem:[#allocation5 + $0x24c] sm:$0xf]
        %v672 = vld [vmem:[#allocation5 + $0x250] sm:$0xf]
        %v673 = vld [vmem:[#allocation5 + $0x254] sm:$0xf]
        %v674 = vld [vmem:[#allocation5 + $0x258] sm:$0xf]
        %v675 = vld [vmem:[#allocation5 + $0x25c] sm:$0xf]
        %v676 = vld [vmem:[#allocation5 + $0x260] sm:$0xf]
        %v677 = vld [vmem:[#allocation5 + $0x264] sm:$0xf]
        %v678 = vld [vmem:[#allocation5 + $0x268] sm:$0xf]
        %v679 = vld [vmem:[#allocation5 + $0x26c] sm:$0xf]
        %v680 = vld [vmem:[#allocation5 + $0x270] sm:$0xf]
        %v681 = vld [vmem:[#allocation5 + $0x274] sm:$0xf]
        %v682 = vld [vmem:[#allocation5 + $0x278] sm:$0xf]
        %v683 = vld [vmem:[#allocation5 + $0x27c] sm:$0xf]
        %v684 = vld [vmem:[#allocation5 + $0x280] sm:$0xf]
        %v685 = vld [vmem:[#allocation5 + $0x284] sm:$0xf]
        %v686 = vld [vmem:[#allocation5 + $0x288] sm:$0xf]
        %v687 = vld [vmem:[#allocation5 + $0x28c] sm:$0xf]
        %v688 = vld [vmem:[#allocation5 + $0x290] sm:$0xf]
        %v689 = vld [vmem:[#allocation5 + $0x294] sm:$0xf]
        %v690 = vld [vmem:[#allocation5 + $0x298] sm:$0xf]
        %v691 = vld [vmem:[#allocation5 + $0x29c] sm:$0xf]
        %v692 = vld [vmem:[#allocation5 + $0x2a0] sm:$0xf]
        %v693 = vld [vmem:[#allocation5 + $0x2a4] sm:$0xf]
        %v694 = vld [vmem:[#allocation5 + $0x2a8] sm:$0xf]
        %v695 = vld [vmem:[#allocation5 + $0x2ac] sm:$0xf]
        %v696 = vld [vmem:[#allocation5 + $0x2b0] sm:$0xf]
        %v697 = vld [vmem:[#allocation5 + $0x2b4] sm:$0xf]
        %v698 = vld [vmem:[#allocation5 + $0x2b8] sm:$0xf]
        %v699 = vld [vmem:[#allocation5 + $0x2bc] sm:$0xf]
        %v700 = vld [vmem:[#allocation5 + $0x2c0] sm:$0xf]
        %v701 = vld [vmem:[#allocation5 + $0x2c4] sm:$0xf]
        %v702 = vld [vmem:[#allocation5 + $0x2c8] sm:$0xf]
        %v703 = vld [vmem:[#allocation5 + $0x2cc] sm:$0xf]
        %v704 = vld [vmem:[#allocation5 + $0x2d0] sm:$0xf]
        %v705 = vld [vmem:[#allocation5 + $0x2d4] sm:$0xf]
        %v706 = vld [vmem:[#allocation5 + $0x2d8] sm:$0xf]
        %v707 = vld [vmem:[#allocation5 + $0x2dc] sm:$0xf]
        %v708 = vld [vmem:[#allocation5 + $0x2e0] sm:$0xf]
        %v709 = vld [vmem:[#allocation5 + $0x2e4] sm:$0xf]
        %v710 = vld [vmem:[#allocation5 + $0x2e8] sm:$0xf]
        %v711 = vld [vmem:[#allocation5 + $0x2ec] sm:$0xf]
        %v712 = vld [vmem:[#allocation5 + $0x2f0] sm:$0xf]
        %v713 = vld [vmem:[#allocation5 + $0x2f4] sm:$0xf]
        %v714 = vld [vmem:[#allocation5 + $0x2f8] sm:$0xf]
        %v715 = vld [vmem:[#allocation5 + $0x2fc] sm:$0xf]
        %v716 = vld [vmem:[#allocation5 + $0x300] sm:$0xf]
        %v717 = vld [vmem:[#allocation5 + $0x304] sm:$0xf]
        %v718 = vld [vmem:[#allocation5 + $0x308] sm:$0xf]
        %v719 = vld [vmem:[#allocation5 + $0x30c] sm:$0xf]
        %v720 = vld [vmem:[#allocation5 + $0x310] sm:$0xf]
        %v721 = vld [vmem:[#allocation5 + $0x314] sm:$0xf]
        %v722 = vld [vmem:[#allocation5 + $0x318] sm:$0xf]
        %v723 = vld [vmem:[#allocation5 + $0x31c] sm:$0xf]
        %v724 = vld [vmem:[#allocation5 + $0x320] sm:$0xf]
        %v725 = vld [vmem:[#allocation5 + $0x324] sm:$0xf]
        %v726 = vld [vmem:[#allocation5 + $0x328] sm:$0xf]
        %v727 = vld [vmem:[#allocation5 + $0x32c] sm:$0xf]
        %v728 = vld [vmem:[#allocation5 + $0x330] sm:$0xf]
        %v729 = vld [vmem:[#allocation5 + $0x334] sm:$0xf]
        %v730 = vld [vmem:[#allocation5 + $0x338] sm:$0xf]
        %v731 = vld [vmem:[#allocation5 + $0x33c] sm:$0xf]
        %v732 = vld [vmem:[#allocation5 + $0x340] sm:$0xf]
        %v733 = vld [vmem:[#allocation5 + $0x344] sm:$0xf]
        %v734 = vld [vmem:[#allocation5 + $0x348] sm:$0xf]
        %v735 = vld [vmem:[#allocation5 + $0x34c] sm:$0xf]
        %v736 = vld [vmem:[#allocation5 + $0x350] sm:$0xf]
        %v737 = vld [vmem:[#allocation5 + $0x354] sm:$0xf]
        %v738 = vld [vmem:[#allocation5 + $0x358] sm:$0xf]
        %v739 = vld [vmem:[#allocation5 + $0x35c] sm:$0xf]
        %v740 = vld [vmem:[#allocation5 + $0x360] sm:$0xf]
        %v741 = vld [vmem:[#allocation5 + $0x364] sm:$0xf]
        %v742 = vld [vmem:[#allocation5 + $0x368] sm:$0xf]
        %v743 = vld [vmem:[#allocation5 + $0x36c] sm:$0xf]
        %v744 = vld [vmem:[#allocation5 + $0x370] sm:$0xf]
        %v745 = vld [vmem:[#allocation5 + $0x374] sm:$0xf]
        %v746 = vld [vmem:[#allocation5 + $0x378] sm:$0xf]
        %v747 = vld [vmem:[#allocation5 + $0x37c] sm:$0xf]
        %v748 = vld [vmem:[#allocation5 + $0x380] sm:$0xf]
        %v749 = vld [vmem:[#allocation5 + $0x384] sm:$0xf]
        %v750 = vld [vmem:[#allocation5 + $0x388] sm:$0xf]
        %v751 = vld [vmem:[#allocation5 + $0x38c] sm:$0xf]
        %v752 = vld [vmem:[#allocation5 + $0x390] sm:$0xf]
        %v753 = vld [vmem:[#allocation5 + $0x394] sm:$0xf]
        %v754 = vld [vmem:[#allocation5 + $0x398] sm:$0xf]
        %v755 = vld [vmem:[#allocation5 + $0x39c] sm:$0xf]
        %v756 = vld [vmem:[#allocation5 + $0x3a0] sm:$0xf]
        %v757 = vld [vmem:[#allocation5 + $0x3a4] sm:$0xf]
        %v758 = vld [vmem:[#allocation5 + $0x3a8] sm:$0xf]
        %v759 = vld [vmem:[#allocation5 + $0x3ac] sm:$0xf]
        %v760 = vld [vmem:[#allocation5 + $0x3b0] sm:$0xf]
        %v761 = vld [vmem:[#allocation5 + $0x3b4] sm:$0xf]
        %v762 = vld [vmem:[#allocation5 + $0x3b8] sm:$0xf]
        %v763 = vld [vmem:[#allocation5 + $0x3bc] sm:$0xf]
        %v764 = vld [vmem:[#allocation5 + $0x3c0] sm:$0xf]
        %v765 = vld [vmem:[#allocation5 + $0x3c4] sm:$0xf]
        %v766 = vld [vmem:[#allocation5 + $0x3c8] sm:$0xf]
        %v767 = vld [vmem:[#allocation5 + $0x3cc] sm:$0xf]
        %v768 = vld [vmem:[#allocation5 + $0x3d0] sm:$0xf]
        %v769 = vld [vmem:[#allocation5 + $0x3d4] sm:$0xf]
        %v770 = vld [vmem:[#allocation5 + $0x3d8] sm:$0xf]
        %v771 = vld [vmem:[#allocation5 + $0x3dc] sm:$0xf]
        %v772 = vld [vmem:[#allocation5 + $0x3e0] sm:$0xf]
        %v773 = vld [vmem:[#allocation5 + $0x3e4] sm:$0xf]
        %v774 = vld [vmem:[#allocation5 + $0x3e8] sm:$0xf]
        %v775 = vld [vmem:[#allocation5 + $0x3ec] sm:$0xf]
        %v776 = vld [vmem:[#allocation5 + $0x3f0] sm:$0xf]
        %v777 = vld [vmem:[#allocation5 + $0x3f4] sm:$0xf]
        %v778 = vld [vmem:[#allocation5 + $0x3f8] sm:$0xf]
        %v779 = vld [vmem:[#allocation5 + $0x3fc] sm:$0xf]
        %v780 = vld [vmem:[#allocation5 + $0x400] sm:$0xf]
        %v781 = vld [vmem:[#allocation5 + $0x404] sm:$0xf]
        %v782 = vld [vmem:[#allocation5 + $0x408] sm:$0xf]
        %v783 = vld [vmem:[#allocation5 + $0x40c] sm:$0xf]
        %v784 = vld [vmem:[#allocation5 + $0x410] sm:$0xf]
        %v785 = vld [vmem:[#allocation5 + $0x414] sm:$0xf]
        %v786 = vld [vmem:[#allocation5 + $0x418] sm:$0xf]
        %v787 = vld [vmem:[#allocation5 + $0x41c] sm:$0xf]
        %v788 = vld [vmem:[#allocation5 + $0x420] sm:$0xf]
        %v789 = vld [vmem:[#allocation5 + $0x424] sm:$0xf]
        %v790 = vld [vmem:[#allocation5 + $0x428] sm:$0xf]
        %v791 = vld [vmem:[#allocation5 + $0x42c] sm:$0xf]
        %v792 = vld [vmem:[#allocation5 + $0x430] sm:$0xf]
        %v793 = vld [vmem:[#allocation5 + $0x434] sm:$0xf]
        %v794 = vld [vmem:[#allocation5 + $0x438] sm:$0xf]
        %v795 = vld [vmem:[#allocation5 + $0x43c] sm:$0xf]
        %v796 = vld [vmem:[#allocation5 + $0x440] sm:$0xf]
        %v797 = vld [vmem:[#allocation5 + $0x444] sm:$0xf]
        %v798 = vld [vmem:[#allocation5 + $0x448] sm:$0xf]
        %v799 = vld [vmem:[#allocation5 + $0x44c] sm:$0xf]
        %v800 = vld [vmem:[#allocation5 + $0x450] sm:$0xf]
        %v801 = vld [vmem:[#allocation5 + $0x454] sm:$0xf]
        %v802 = vld [vmem:[#allocation5 + $0x458] sm:$0xf]
        %v803 = vld [vmem:[#allocation5 + $0x45c] sm:$0xf]
        %v804 = vld [vmem:[#allocation5 + $0x460] sm:$0xf]
        %v805 = vld [vmem:[#allocation5 + $0x464] sm:$0xf]
        %v806 = vld [vmem:[#allocation5 + $0x468] sm:$0xf]
        %v807 = vld [vmem:[#allocation5 + $0x46c] sm:$0xf]
        %v808 = vld [vmem:[#allocation5 + $0x470] sm:$0xf]
        %v809 = vld [vmem:[#allocation5 + $0x474] sm:$0xf]
        %v810 = vld [vmem:[#allocation5 + $0x478] sm:$0xf]
        %v811 = vld [vmem:[#allocation5 + $0x47c] sm:$0xf]
        %v812 = vld [vmem:[#allocation5 + $0x480] sm:$0xf]
        %v813 = vld [vmem:[#allocation5 + $0x484] sm:$0xf]
        %v814 = vld [vmem:[#allocation5 + $0x488] sm:$0xf]
        %v815 = vld [vmem:[#allocation5 + $0x48c] sm:$0xf]
        %v816 = vld [vmem:[#allocation5 + $0x490] sm:$0xf]
        %v817 = vld [vmem:[#allocation5 + $0x494] sm:$0xf]
        %v818 = vld [vmem:[#allocation5 + $0x498] sm:$0xf]
        %v819 = vld [vmem:[#allocation5 + $0x49c] sm:$0xf]
        %v820 = vld [vmem:[#allocation5 + $0x4a0] sm:$0xf]
        %v821 = vld [vmem:[#allocation5 + $0x4a4] sm:$0xf]
        %v822 = vld [vmem:[#allocation5 + $0x4a8] sm:$0xf]
        %v823 = vld [vmem:[#allocation5 + $0x4ac] sm:$0xf]
        %v824 = vld [vmem:[#allocation5 + $0x4b0] sm:$0xf]
        %v825 = vld [vmem:[#allocation5 + $0x4b4] sm:$0xf]
        %v826 = vld [vmem:[#allocation5 + $0x4b8] sm:$0xf]
        %v827 = vld [vmem:[#allocation5 + $0x4bc] sm:$0xf]
        %v828 = vld [vmem:[#allocation5 + $0x4c0] sm:$0xf]
        %v829 = vld [vmem:[#allocation5 + $0x4c4] sm:$0xf]
        %v830 = vld [vmem:[#allocation5 + $0x4c8] sm:$0xf]
        %v831 = vld [vmem:[#allocation5 + $0x4cc] sm:$0xf]
        %v832 = vld [vmem:[#allocation5 + $0x4d0] sm:$0xf]
        %v833 = vld [vmem:[#allocation5 + $0x4d4] sm:$0xf]
        %v834 = vld [vmem:[#allocation5 + $0x4d8] sm:$0xf]
        %v835 = vld [vmem:[#allocation5 + $0x4dc] sm:$0xf]
        %v836 = vld [vmem:[#allocation5 + $0x4e0] sm:$0xf]
        %v837 = vld [vmem:[#allocation5 + $0x4e4] sm:$0xf]
        %v838 = vld [vmem:[#allocation5 + $0x4e8] sm:$0xf]
        %v839 = vld [vmem:[#allocation5 + $0x4ec] sm:$0xf]
        %v840 = vld [vmem:[#allocation5 + $0x4f0] sm:$0xf]
        %v841 = vld [vmem:[#allocation5 + $0x4f4] sm:$0xf]
        %v842 = vld [vmem:[#allocation5 + $0x4f8] sm:$0xf]
        %v843 = vld [vmem:[#allocation5 + $0x4fc] sm:$0xf]
        %v844 = vld [vmem:[#allocation5 + $0x500] sm:$0xf]
        %v845 = vld [vmem:[#allocation5 + $0x504] sm:$0xf]
        %v846 = vld [vmem:[#allocation5 + $0x508] sm:$0xf]
        %v847 = vld [vmem:[#allocation5 + $0x50c] sm:$0xf]
        %v848 = vld [vmem:[#allocation5 + $0x510] sm:$0xf]
        %v849 = vld [vmem:[#allocation5 + $0x514] sm:$0xf]
        %v850 = vld [vmem:[#allocation5 + $0x518] sm:$0xf]
        %v851 = vld [vmem:[#allocation5 + $0x51c] sm:$0xf]
        %v852 = vld [vmem:[#allocation5 + $0x520] sm:$0xf]
        %v853 = vld [vmem:[#allocation5 + $0x524] sm:$0xf]
        %v854 = vld [vmem:[#allocation5 + $0x528] sm:$0xf]
        %v855 = vld [vmem:[#allocation5 + $0x52c] sm:$0xf]
        %v856 = vld [vmem:[#allocation5 + $0x530] sm:$0xf]
        %v857 = vld [vmem:[#allocation5 + $0x534] sm:$0xf]
        %v858 = vld [vmem:[#allocation5 + $0x538] sm:$0xf]
        %v859 = vld [vmem:[#allocation5 + $0x53c] sm:$0xf]
        %v860 = vld [vmem:[#allocation5 + $0x540] sm:$0xf]
        %v861 = vld [vmem:[#allocation5 + $0x544] sm:$0xf]
        %v862 = vld [vmem:[#allocation5 + $0x548] sm:$0xf]
        %v863 = vld [vmem:[#allocation5 + $0x54c] sm:$0xf]
        %v864 = vld [vmem:[#allocation5 + $0x550] sm:$0xf]
        %v865 = vld [vmem:[#allocation5 + $0x554] sm:$0xf]
        %v866 = vld [vmem:[#allocation5 + $0x558] sm:$0xf]
        %v867 = vld [vmem:[#allocation5 + $0x55c] sm:$0xf]
        %v868 = vld [vmem:[#allocation5 + $0x560] sm:$0xf]
        %v869 = vld [vmem:[#allocation5 + $0x564] sm:$0xf]
        %v870 = vld [vmem:[#allocation5 + $0x568] sm:$0xf]
        %v871 = vld [vmem:[#allocation5 + $0x56c] sm:$0xf]
        %v872 = vld [vmem:[#allocation5 + $0x570] sm:$0xf]
        %v873 = vld [vmem:[#allocation5 + $0x574] sm:$0xf]
        %v874 = vld [vmem:[#allocation5 + $0x578] sm:$0xf]
        %v875 = vld [vmem:[#allocation5 + $0x57c] sm:$0xf]
        %v876 = vlaneseq
        %v877 = vshrl.u32 %v876, 7
        %v878 = vsub.s32 0, %v877
        %v879 = vrot.slane %v343, %v878
        %v1056 = vunpack.c.l.b16 %v348
        %v1057 = vunpack.c.h.b16 %v348
        %v1058 = vunpack.c.l.b16 %v349
        %v1059 = vunpack.c.h.b16 %v349
        %v1060 = vunpack.c.l.b16 %v350
        %v1061 = vunpack.c.h.b16 %v350
        %v1062 = vunpack.c.l.b16 %v351
        %v1063 = vunpack.c.h.b16 %v351
        %v1064 = vunpack.c.l.b16 %v352
        %v1065 = vunpack.c.h.b16 %v352
        %v1066 = vunpack.c.l.b16 %v353
        %v1067 = vunpack.c.h.b16 %v353
        %v1068 = vunpack.c.l.b16 %v354
        %v1069 = vunpack.c.h.b16 %v354
        %v1070 = vunpack.c.l.b16 %v355
        %v1071 = vunpack.c.h.b16 %v355
        %v1072 = vunpack.c.l.b16 %v356
        %v1073 = vunpack.c.h.b16 %v356
        %v1074 = vunpack.c.l.b16 %v357
        %v1075 = vunpack.c.h.b16 %v357
        %v1076 = vunpack.c.l.b16 %v358
        %v1077 = vunpack.c.h.b16 %v358
        %v1078 = vunpack.c.l.b16 %v359
        %v1079 = vunpack.c.h.b16 %v359
        %v1080 = vunpack.c.l.b16 %v360
        %v1081 = vunpack.c.h.b16 %v360
        %v1082 = vunpack.c.l.b16 %v361
        %v1083 = vunpack.c.h.b16 %v361
        %v1084 = vunpack.c.l.b16 %v362
        %v1085 = vunpack.c.h.b16 %v362
        %v1086 = vunpack.c.l.b16 %v363
        %v1087 = vunpack.c.h.b16 %v363
        %v1088 = vunpack.c.l.b16 %v364
        %v1089 = vunpack.c.h.b16 %v364
        %v1090 = vunpack.c.l.b16 %v365
        %v1091 = vunpack.c.h.b16 %v365
        %v1092 = vunpack.c.l.b16 %v366
        %v1093 = vunpack.c.h.b16 %v366
        %v1094 = vunpack.c.l.b16 %v367
        %v1095 = vunpack.c.h.b16 %v367
        %v1096 = vunpack.c.l.b16 %v368
        %v1097 = vunpack.c.h.b16 %v368
        %v1098 = vunpack.c.l.b16 %v369
        %v1099 = vunpack.c.h.b16 %v369
        %v1100 = vunpack.c.l.b16 %v370
        %v1101 = vunpack.c.h.b16 %v370
        %v1102 = vunpack.c.l.b16 %v371
        %v1103 = vunpack.c.h.b16 %v371
        %v1104 = vunpack.c.l.b16 %v372
        %v1105 = vunpack.c.h.b16 %v372
        %v1106 = vunpack.c.l.b16 %v373
        %v1107 = vunpack.c.h.b16 %v373
        %v1108 = vunpack.c.l.b16 %v374
        %v1109 = vunpack.c.h.b16 %v374
        %v1110 = vunpack.c.l.b16 %v375
        %v1111 = vunpack.c.h.b16 %v375
        %v1112 = vunpack.c.l.b16 %v376
        %v1113 = vunpack.c.h.b16 %v376
        %v1114 = vunpack.c.l.b16 %v377
        %v1115 = vunpack.c.h.b16 %v377
        %v1116 = vunpack.c.l.b16 %v378
        %v1117 = vunpack.c.h.b16 %v378
        %v1118 = vunpack.c.l.b16 %v379
        %v1119 = vunpack.c.h.b16 %v379
        %v1120 = vunpack.c.l.b16 %v380
        %v1121 = vunpack.c.h.b16 %v380
        %v1122 = vunpack.c.l.b16 %v381
        %v1123 = vunpack.c.h.b16 %v381
        %v1124 = vunpack.c.l.b16 %v382
        %v1125 = vunpack.c.h.b16 %v382
        %v1126 = vunpack.c.l.b16 %v383
        %v1127 = vunpack.c.h.b16 %v383
        %v1128 = vunpack.c.l.b16 %v384
        %v1129 = vunpack.c.h.b16 %v384
        %v1130 = vunpack.c.l.b16 %v385
        %v1131 = vunpack.c.h.b16 %v385
        %v1132 = vunpack.c.l.b16 %v386
        %v1133 = vunpack.c.h.b16 %v386
        %v1134 = vunpack.c.l.b16 %v387
        %v1135 = vunpack.c.h.b16 %v387
        %v1136 = vunpack.c.l.b16 %v388
        %v1137 = vunpack.c.h.b16 %v388
        %v1138 = vunpack.c.l.b16 %v389
        %v1139 = vunpack.c.h.b16 %v389
        %v1140 = vunpack.c.l.b16 %v390
        %v1141 = vunpack.c.h.b16 %v390
        %v1142 = vunpack.c.l.b16 %v391
        %v1143 = vunpack.c.h.b16 %v391
        %v1144 = vunpack.c.l.b16 %v392
        %v1145 = vunpack.c.h.b16 %v392
        %v1146 = vunpack.c.l.b16 %v393
        %v1147 = vunpack.c.h.b16 %v393
        %v1148 = vunpack.c.l.b16 %v394
        %v1149 = vunpack.c.h.b16 %v394
        %v1150 = vunpack.c.l.b16 %v395
        %v1151 = vunpack.c.h.b16 %v395
        %v1152 = vunpack.c.l.b16 %v396
        %v1153 = vunpack.c.h.b16 %v396
        %v1154 = vunpack.c.l.b16 %v397
        %v1155 = vunpack.c.h.b16 %v397
        %v1156 = vunpack.c.l.b16 %v398
        %v1157 = vunpack.c.h.b16 %v398
        %v1158 = vunpack.c.l.b16 %v399
        %v1159 = vunpack.c.h.b16 %v399
        %v1160 = vunpack.c.l.b16 %v400
        %v1161 = vunpack.c.h.b16 %v400
        %v1162 = vunpack.c.l.b16 %v401
        %v1163 = vunpack.c.h.b16 %v401
        %v1164 = vunpack.c.l.b16 %v402
        %v1165 = vunpack.c.h.b16 %v402
        %v1166 = vunpack.c.l.b16 %v403
        %v1167 = vunpack.c.h.b16 %v403
        %v1168 = vunpack.c.l.b16 %v404
        %v1169 = vunpack.c.h.b16 %v404
        %v1170 = vunpack.c.l.b16 %v405
        %v1171 = vunpack.c.h.b16 %v405
        %v1172 = vunpack.c.l.b16 %v406
        %v1173 = vunpack.c.h.b16 %v406
        %v1174 = vunpack.c.l.b16 %v407
        %v1175 = vunpack.c.h.b16 %v407
        %v1176 = vunpack.c.l.b16 %v408
        %v1177 = vunpack.c.h.b16 %v408
        %v1178 = vunpack.c.l.b16 %v409
        %v1179 = vunpack.c.h.b16 %v409
        %v1180 = vunpack.c.l.b16 %v410
        %v1181 = vunpack.c.h.b16 %v410
        %v1182 = vunpack.c.l.b16 %v411
        %v1183 = vunpack.c.h.b16 %v411
        %v1184 = vunpack.c.l.b16 %v412
        %v1185 = vunpack.c.h.b16 %v412
        %v1186 = vunpack.c.l.b16 %v413
        %v1187 = vunpack.c.h.b16 %v413
        %v1188 = vunpack.c.l.b16 %v414
        %v1189 = vunpack.c.h.b16 %v414
        %v1190 = vunpack.c.l.b16 %v415
        %v1191 = vunpack.c.h.b16 %v415
        %v1192 = vunpack.c.l.b16 %v416
        %v1193 = vunpack.c.h.b16 %v416
        %v1194 = vunpack.c.l.b16 %v417
        %v1195 = vunpack.c.h.b16 %v417
        %v1196 = vunpack.c.l.b16 %v418
        %v1197 = vunpack.c.h.b16 %v418
        %v1198 = vunpack.c.l.b16 %v419
        %v1199 = vunpack.c.h.b16 %v419
        %v1200 = vunpack.c.l.b16 %v420
        %v1201 = vunpack.c.h.b16 %v420
        %v1202 = vunpack.c.l.b16 %v421
        %v1203 = vunpack.c.h.b16 %v421
        %v1204 = vunpack.c.l.b16 %v422
        %v1205 = vunpack.c.h.b16 %v422
        %v1206 = vunpack.c.l.b16 %v423
        %v1207 = vunpack.c.h.b16 %v423
        %v1208 = vunpack.c.l.b16 %v424
        %v1209 = vunpack.c.h.b16 %v424
        %v1210 = vunpack.c.l.b16 %v425
        %v1211 = vunpack.c.h.b16 %v425
        %v1212 = vunpack.c.l.b16 %v426
        %v1213 = vunpack.c.h.b16 %v426
        %v1214 = vunpack.c.l.b16 %v427
        %v1215 = vunpack.c.h.b16 %v427
        %v1216 = vunpack.c.l.b16 %v428
        %v1217 = vunpack.c.h.b16 %v428
        %v1218 = vunpack.c.l.b16 %v429
        %v1219 = vunpack.c.h.b16 %v429
        %v1220 = vunpack.c.l.b16 %v430
        %v1221 = vunpack.c.h.b16 %v430
        %v1222 = vunpack.c.l.b16 %v431
        %v1223 = vunpack.c.h.b16 %v431
        %v1224 = vunpack.c.l.b16 %v432
        %v1225 = vunpack.c.h.b16 %v432
        %v1226 = vunpack.c.l.b16 %v433
        %v1227 = vunpack.c.h.b16 %v433
        %v1228 = vunpack.c.l.b16 %v434
        %v1229 = vunpack.c.h.b16 %v434
        %v1230 = vunpack.c.l.b16 %v435
        %v1231 = vunpack.c.h.b16 %v435
        %v1232 = vunpack.c.l.b16 %v436
        %v1233 = vunpack.c.h.b16 %v436
        %v1234 = vunpack.c.l.b16 %v437
        %v1235 = vunpack.c.h.b16 %v437
        %v1236 = vunpack.c.l.b16 %v438
        %v1237 = vunpack.c.h.b16 %v438
        %v1238 = vunpack.c.l.b16 %v439
        %v1239 = vunpack.c.h.b16 %v439
        %v1240 = vunpack.c.l.b16 %v440
        %v1241 = vunpack.c.h.b16 %v440
        %v1242 = vunpack.c.l.b16 %v441
        %v1243 = vunpack.c.h.b16 %v441
        %v1244 = vunpack.c.l.b16 %v442
        %v1245 = vunpack.c.h.b16 %v442
        %v1246 = vunpack.c.l.b16 %v443
        %v1247 = vunpack.c.h.b16 %v443
        %v1248 = vunpack.c.l.b16 %v444
        %v1249 = vunpack.c.h.b16 %v444
        %v1250 = vunpack.c.l.b16 %v445
        %v1251 = vunpack.c.h.b16 %v445
        %v1252 = vunpack.c.l.b16 %v446
        %v1253 = vunpack.c.h.b16 %v446
        %v1254 = vunpack.c.l.b16 %v447
        %v1255 = vunpack.c.h.b16 %v447
        %v1256 = vunpack.c.l.b16 %v448
        %v1257 = vunpack.c.h.b16 %v448
        %v1258 = vunpack.c.l.b16 %v449
        %v1259 = vunpack.c.h.b16 %v449
        %v1260 = vunpack.c.l.b16 %v450
        %v1261 = vunpack.c.h.b16 %v450
        %v1262 = vunpack.c.l.b16 %v451
        %v1263 = vunpack.c.h.b16 %v451
        %v1264 = vunpack.c.l.b16 %v452
        %v1265 = vunpack.c.h.b16 %v452
        %v1266 = vunpack.c.l.b16 %v453
        %v1267 = vunpack.c.h.b16 %v453
        %v1268 = vunpack.c.l.b16 %v454
        %v1269 = vunpack.c.h.b16 %v454
        %v1270 = vunpack.c.l.b16 %v455
        %v1271 = vunpack.c.h.b16 %v455
        %v1272 = vunpack.c.l.b16 %v456
        %v1273 = vunpack.c.h.b16 %v456
        %v1274 = vunpack.c.l.b16 %v457
        %v1275 = vunpack.c.h.b16 %v457
        %v1276 = vunpack.c.l.b16 %v458
        %v1277 = vunpack.c.h.b16 %v458
        %v1278 = vunpack.c.l.b16 %v459
        %v1279 = vunpack.c.h.b16 %v459
        %v1280 = vunpack.c.l.b16 %v460
        %v1281 = vunpack.c.h.b16 %v460
        %v1282 = vunpack.c.l.b16 %v461
        %v1283 = vunpack.c.h.b16 %v461
        %v1284 = vunpack.c.l.b16 %v462
        %v1285 = vunpack.c.h.b16 %v462
        %v1286 = vunpack.c.l.b16 %v463
        %v1287 = vunpack.c.h.b16 %v463
        %v1288 = vunpack.c.l.b16 %v464
        %v1289 = vunpack.c.h.b16 %v464
        %v1290 = vunpack.c.l.b16 %v465
        %v1291 = vunpack.c.h.b16 %v465
        %v1292 = vunpack.c.l.b16 %v466
        %v1293 = vunpack.c.h.b16 %v466
        %v1294 = vunpack.c.l.b16 %v467
        %v1295 = vunpack.c.h.b16 %v467
        %v1296 = vunpack.c.l.b16 %v468
        %v1297 = vunpack.c.h.b16 %v468
        %v1298 = vunpack.c.l.b16 %v469
        %v1299 = vunpack.c.h.b16 %v469
        %v1300 = vunpack.c.l.b16 %v470
        %v1301 = vunpack.c.h.b16 %v470
        %v1302 = vunpack.c.l.b16 %v471
        %v1303 = vunpack.c.h.b16 %v471
        %v1304 = vunpack.c.l.b16 %v472
        %v1305 = vunpack.c.h.b16 %v472
        %v1306 = vunpack.c.l.b16 %v473
        %v1307 = vunpack.c.h.b16 %v473
        %v1308 = vunpack.c.l.b16 %v474
        %v1309 = vunpack.c.h.b16 %v474
        %v1310 = vunpack.c.l.b16 %v475
        %v1311 = vunpack.c.h.b16 %v475
        %v1312 = vunpack.c.l.b16 %v476
        %v1313 = vunpack.c.h.b16 %v476
        %v1314 = vunpack.c.l.b16 %v477
        %v1315 = vunpack.c.h.b16 %v477
        %v1316 = vunpack.c.l.b16 %v478
        %v1317 = vunpack.c.h.b16 %v478
        %v1318 = vunpack.c.l.b16 %v479
        %v1319 = vunpack.c.h.b16 %v479
        %v1320 = vunpack.c.l.b16 %v480
        %v1321 = vunpack.c.h.b16 %v480
        %v1322 = vunpack.c.l.b16 %v481
        %v1323 = vunpack.c.h.b16 %v481
        %v1324 = vunpack.c.l.b16 %v482
        %v1325 = vunpack.c.h.b16 %v482
        %v1326 = vunpack.c.l.b16 %v483
        %v1327 = vunpack.c.h.b16 %v483
        %v1328 = vunpack.c.l.b16 %v484
        %v1329 = vunpack.c.h.b16 %v484
        %v1330 = vunpack.c.l.b16 %v485
        %v1331 = vunpack.c.h.b16 %v485
        %v1332 = vunpack.c.l.b16 %v486
        %v1333 = vunpack.c.h.b16 %v486
        %v1334 = vunpack.c.l.b16 %v487
        %v1335 = vunpack.c.h.b16 %v487
        %v1336 = vunpack.c.l.b16 %v488
        %v1337 = vunpack.c.h.b16 %v488
        %v1338 = vunpack.c.l.b16 %v489
        %v1339 = vunpack.c.h.b16 %v489
        %v1340 = vunpack.c.l.b16 %v490
        %v1341 = vunpack.c.h.b16 %v490
        %v1342 = vunpack.c.l.b16 %v491
        %v1343 = vunpack.c.h.b16 %v491
        %v1344 = vunpack.c.l.b16 %v492
        %v1345 = vunpack.c.h.b16 %v492
        %v1346 = vunpack.c.l.b16 %v493
        %v1347 = vunpack.c.h.b16 %v493
        %v1348 = vunpack.c.l.b16 %v494
        %v1349 = vunpack.c.h.b16 %v494
        %v1350 = vunpack.c.l.b16 %v495
        %v1351 = vunpack.c.h.b16 %v495
        %v1352 = vunpack.c.l.b16 %v496
        %v1353 = vunpack.c.h.b16 %v496
        %v1354 = vunpack.c.l.b16 %v497
        %v1355 = vunpack.c.h.b16 %v497
        %v1356 = vunpack.c.l.b16 %v498
        %v1357 = vunpack.c.h.b16 %v498
        %v1358 = vunpack.c.l.b16 %v499
        %v1359 = vunpack.c.h.b16 %v499
        %v1360 = vunpack.c.l.b16 %v500
        %v1361 = vunpack.c.h.b16 %v500
        %v1362 = vunpack.c.l.b16 %v501
        %v1363 = vunpack.c.h.b16 %v501
        %v1364 = vunpack.c.l.b16 %v502
        %v1365 = vunpack.c.h.b16 %v502
        %v1366 = vunpack.c.l.b16 %v503
        %v1367 = vunpack.c.h.b16 %v503
        %v1368 = vunpack.c.l.b16 %v504
        %v1369 = vunpack.c.h.b16 %v504
        %v1370 = vunpack.c.l.b16 %v505
        %v1371 = vunpack.c.h.b16 %v505
        %v1372 = vunpack.c.l.b16 %v506
        %v1373 = vunpack.c.h.b16 %v506
        %v1374 = vunpack.c.l.b16 %v507
        %v1375 = vunpack.c.h.b16 %v507
        %v1376 = vunpack.c.l.b16 %v508
        %v1377 = vunpack.c.h.b16 %v508
        %v1378 = vunpack.c.l.b16 %v509
        %v1379 = vunpack.c.h.b16 %v509
        %v1380 = vunpack.c.l.b16 %v510
        %v1381 = vunpack.c.h.b16 %v510
        %v1382 = vunpack.c.l.b16 %v511
        %v1383 = vunpack.c.h.b16 %v511
        %v1384 = vunpack.c.l.b16 %v512
        %v1385 = vunpack.c.h.b16 %v512
        %v1386 = vunpack.c.l.b16 %v513
        %v1387 = vunpack.c.h.b16 %v513
        %v1388 = vunpack.c.l.b16 %v514
        %v1389 = vunpack.c.h.b16 %v514
        %v1390 = vunpack.c.l.b16 %v515
        %v1391 = vunpack.c.h.b16 %v515
        %v1392 = vunpack.c.l.b16 %v516
        %v1393 = vunpack.c.h.b16 %v516
        %v1394 = vunpack.c.l.b16 %v517
        %v1395 = vunpack.c.h.b16 %v517
        %v1396 = vunpack.c.l.b16 %v518
        %v1397 = vunpack.c.h.b16 %v518
        %v1398 = vunpack.c.l.b16 %v519
        %v1399 = vunpack.c.h.b16 %v519
        %v1400 = vunpack.c.l.b16 %v520
        %v1401 = vunpack.c.h.b16 %v520
        %v1402 = vunpack.c.l.b16 %v521
        %v1403 = vunpack.c.h.b16 %v521
        %v1404 = vunpack.c.l.b16 %v522
        %v1405 = vunpack.c.h.b16 %v522
        %v1406 = vunpack.c.l.b16 %v523
        %v1407 = vunpack.c.h.b16 %v523
        %v1408 = vpack.c.b16 %v1078, %v1056
        %v1409 = vpack.c.b16 %v1079, %v1057
        %v1410 = vpack.c.b16 %v1080, %v1058
        %v1411 = vpack.c.b16 %v1081, %v1059
        %v1412 = vpack.c.b16 %v1082, %v1060
        %v1413 = vpack.c.b16 %v1083, %v1061
        %v1414 = vpack.c.b16 %v1084, %v1062
        %v1415 = vpack.c.b16 %v1085, %v1063
        %v1416 = vpack.c.b16 %v1086, %v1064
        %v1417 = vpack.c.b16 %v1087, %v1065
        %v1418 = vpack.c.b16 %v1088, %v1066
        %v1419 = vpack.c.b16 %v1089, %v1067
        %v1420 = vpack.c.b16 %v1090, %v1068
        %v1421 = vpack.c.b16 %v1091, %v1069
        %v1422 = vpack.c.b16 %v1092, %v1070
        %v1423 = vpack.c.b16 %v1093, %v1071
        %v1424 = vpack.c.b16 %v1094, %v1072
        %v1425 = vpack.c.b16 %v1095, %v1073
        %v1426 = vpack.c.b16 %v1096, %v1074
        %v1427 = vpack.c.b16 %v1097, %v1075
        %v1428 = vpack.c.b16 %v1098, %v1076
        %v1429 = vpack.c.b16 %v1099, %v1077
        %v1430 = vpack.c.b16 %v1122, %v1100
        %v1431 = vpack.c.b16 %v1123, %v1101
        %v1432 = vpack.c.b16 %v1124, %v1102
        %v1433 = vpack.c.b16 %v1125, %v1103
        %v1434 = vpack.c.b16 %v1126, %v1104
        %v1435 = vpack.c.b16 %v1127, %v1105
        %v1436 = vpack.c.b16 %v1128, %v1106
        %v1437 = vpack.c.b16 %v1129, %v1107
        %v1438 = vpack.c.b16 %v1130, %v1108
        %v1439 = vpack.c.b16 %v1131, %v1109
        %v1440 = vpack.c.b16 %v1132, %v1110
        %v1441 = vpack.c.b16 %v1133, %v1111
        %v1442 = vpack.c.b16 %v1134, %v1112
        %v1443 = vpack.c.b16 %v1135, %v1113
        %v1444 = vpack.c.b16 %v1136, %v1114
        %v1445 = vpack.c.b16 %v1137, %v1115
        %v1446 = vpack.c.b16 %v1138, %v1116
        %v1447 = vpack.c.b16 %v1139, %v1117
        %v1448 = vpack.c.b16 %v1140, %v1118
        %v1449 = vpack.c.b16 %v1141, %v1119
        %v1450 = vpack.c.b16 %v1142, %v1120
        %v1451 = vpack.c.b16 %v1143, %v1121
        %v1452 = vpack.c.b16 %v1166, %v1144
        %v1453 = vpack.c.b16 %v1167, %v1145
        %v1454 = vpack.c.b16 %v1168, %v1146
        %v1455 = vpack.c.b16 %v1169, %v1147
        %v1456 = vpack.c.b16 %v1170, %v1148
        %v1457 = vpack.c.b16 %v1171, %v1149
        %v1458 = vpack.c.b16 %v1172, %v1150
        %v1459 = vpack.c.b16 %v1173, %v1151
        %v1460 = vpack.c.b16 %v1174, %v1152
        %v1461 = vpack.c.b16 %v1175, %v1153
        %v1462 = vpack.c.b16 %v1176, %v1154
        %v1463 = vpack.c.b16 %v1177, %v1155
        %v1464 = vpack.c.b16 %v1178, %v1156
        %v1465 = vpack.c.b16 %v1179, %v1157
        %v1466 = vpack.c.b16 %v1180, %v1158
        %v1467 = vpack.c.b16 %v1181, %v1159
        %v1468 = vpack.c.b16 %v1182, %v1160
        %v1469 = vpack.c.b16 %v1183, %v1161
        %v1470 = vpack.c.b16 %v1184, %v1162
        %v1471 = vpack.c.b16 %v1185, %v1163
        %v1472 = vpack.c.b16 %v1186, %v1164
        %v1473 = vpack.c.b16 %v1187, %v1165
        %v1474 = vpack.c.b16 %v1210, %v1188
        %v1475 = vpack.c.b16 %v1211, %v1189
        %v1476 = vpack.c.b16 %v1212, %v1190
        %v1477 = vpack.c.b16 %v1213, %v1191
        %v1478 = vpack.c.b16 %v1214, %v1192
        %v1479 = vpack.c.b16 %v1215, %v1193
        %v1480 = vpack.c.b16 %v1216, %v1194
        %v1481 = vpack.c.b16 %v1217, %v1195
        %v1482 = vpack.c.b16 %v1218, %v1196
        %v1483 = vpack.c.b16 %v1219, %v1197
        %v1484 = vpack.c.b16 %v1220, %v1198
        %v1485 = vpack.c.b16 %v1221, %v1199
        %v1486 = vpack.c.b16 %v1222, %v1200
        %v1487 = vpack.c.b16 %v1223, %v1201
        %v1488 = vpack.c.b16 %v1224, %v1202
        %v1489 = vpack.c.b16 %v1225, %v1203
        %v1490 = vpack.c.b16 %v1226, %v1204
        %v1491 = vpack.c.b16 %v1227, %v1205
        %v1492 = vpack.c.b16 %v1228, %v1206
        %v1493 = vpack.c.b16 %v1229, %v1207
        %v1494 = vpack.c.b16 %v1230, %v1208
        %v1495 = vpack.c.b16 %v1231, %v1209
        %v1496 = vpack.c.b16 %v1254, %v1232
        %v1497 = vpack.c.b16 %v1255, %v1233
        %v1498 = vpack.c.b16 %v1256, %v1234
        %v1499 = vpack.c.b16 %v1257, %v1235
        %v1500 = vpack.c.b16 %v1258, %v1236
        %v1501 = vpack.c.b16 %v1259, %v1237
        %v1502 = vpack.c.b16 %v1260, %v1238
        %v1503 = vpack.c.b16 %v1261, %v1239
        %v1504 = vpack.c.b16 %v1262, %v1240
        %v1505 = vpack.c.b16 %v1263, %v1241
        %v1506 = vpack.c.b16 %v1264, %v1242
        %v1507 = vpack.c.b16 %v1265, %v1243
        %v1508 = vpack.c.b16 %v1266, %v1244
        %v1509 = vpack.c.b16 %v1267, %v1245
        %v1510 = vpack.c.b16 %v1268, %v1246
        %v1511 = vpack.c.b16 %v1269, %v1247
        %v1512 = vpack.c.b16 %v1270, %v1248
        %v1513 = vpack.c.b16 %v1271, %v1249
        %v1514 = vpack.c.b16 %v1272, %v1250
        %v1515 = vpack.c.b16 %v1273, %v1251
        %v1516 = vpack.c.b16 %v1274, %v1252
        %v1517 = vpack.c.b16 %v1275, %v1253
        %v1518 = vpack.c.b16 %v1298, %v1276
        %v1519 = vpack.c.b16 %v1299, %v1277
        %v1520 = vpack.c.b16 %v1300, %v1278
        %v1521 = vpack.c.b16 %v1301, %v1279
        %v1522 = vpack.c.b16 %v1302, %v1280
        %v1523 = vpack.c.b16 %v1303, %v1281
        %v1524 = vpack.c.b16 %v1304, %v1282
        %v1525 = vpack.c.b16 %v1305, %v1283
        %v1526 = vpack.c.b16 %v1306, %v1284
        %v1527 = vpack.c.b16 %v1307, %v1285
        %v1528 = vpack.c.b16 %v1308, %v1286
        %v1529 = vpack.c.b16 %v1309, %v1287
        %v1530 = vpack.c.b16 %v1310, %v1288
        %v1531 = vpack.c.b16 %v1311, %v1289
        %v1532 = vpack.c.b16 %v1312, %v1290
        %v1533 = vpack.c.b16 %v1313, %v1291
        %v1534 = vpack.c.b16 %v1314, %v1292
        %v1535 = vpack.c.b16 %v1315, %v1293
        %v1536 = vpack.c.b16 %v1316, %v1294
        %v1537 = vpack.c.b16 %v1317, %v1295
        %v1538 = vpack.c.b16 %v1318, %v1296
        %v1539 = vpack.c.b16 %v1319, %v1297
        %v1540 = vpack.c.b16 %v1342, %v1320
        %v1541 = vpack.c.b16 %v1343, %v1321
        %v1542 = vpack.c.b16 %v1344, %v1322
        %v1543 = vpack.c.b16 %v1345, %v1323
        %v1544 = vpack.c.b16 %v1346, %v1324
        %v1545 = vpack.c.b16 %v1347, %v1325
        %v1546 = vpack.c.b16 %v1348, %v1326
        %v1547 = vpack.c.b16 %v1349, %v1327
        %v1548 = vpack.c.b16 %v1350, %v1328
        %v1549 = vpack.c.b16 %v1351, %v1329
        %v1550 = vpack.c.b16 %v1352, %v1330
        %v1551 = vpack.c.b16 %v1353, %v1331
        %v1552 = vpack.c.b16 %v1354, %v1332
        %v1553 = vpack.c.b16 %v1355, %v1333
        %v1554 = vpack.c.b16 %v1356, %v1334
        %v1555 = vpack.c.b16 %v1357, %v1335
        %v1556 = vpack.c.b16 %v1358, %v1336
        %v1557 = vpack.c.b16 %v1359, %v1337
        %v1558 = vpack.c.b16 %v1360, %v1338
        %v1559 = vpack.c.b16 %v1361, %v1339
        %v1560 = vpack.c.b16 %v1362, %v1340
        %v1561 = vpack.c.b16 %v1363, %v1341
        %v1562 = vpack.c.b16 %v1386, %v1364
        %v1563 = vpack.c.b16 %v1387, %v1365
        %v1564 = vpack.c.b16 %v1388, %v1366
        %v1565 = vpack.c.b16 %v1389, %v1367
        %v1566 = vpack.c.b16 %v1390, %v1368
        %v1567 = vpack.c.b16 %v1391, %v1369
        %v1568 = vpack.c.b16 %v1392, %v1370
        %v1569 = vpack.c.b16 %v1393, %v1371
        %v1570 = vpack.c.b16 %v1394, %v1372
        %v1571 = vpack.c.b16 %v1395, %v1373
        %v1572 = vpack.c.b16 %v1396, %v1374
        %v1573 = vpack.c.b16 %v1397, %v1375
        %v1574 = vpack.c.b16 %v1398, %v1376
        %v1575 = vpack.c.b16 %v1399, %v1377
        %v1576 = vpack.c.b16 %v1400, %v1378
        %v1577 = vpack.c.b16 %v1401, %v1379
        %v1578 = vpack.c.b16 %v1402, %v1380
        %v1579 = vpack.c.b16 %v1403, %v1381
        %v1580 = vpack.c.b16 %v1404, %v1382
        %v1581 = vpack.c.b16 %v1405, %v1383
        %v1582 = vpack.c.b16 %v1406, %v1384
        %v1583 = vpack.c.b16 %v1407, %v1385
        %v2112 = vunpack.c.l.b16 %v524
        %v2113 = vunpack.c.l.b16 %v525
        %v2114 = vunpack.c.l.b16 %v526
        %v2115 = vunpack.c.l.b16 %v527
        %v2116 = vunpack.c.l.b16 %v528
        %v2117 = vunpack.c.l.b16 %v529
        %v2118 = vunpack.c.l.b16 %v530
        %v2119 = vunpack.c.l.b16 %v531
        %v2120 = vunpack.c.l.b16 %v532
        %v2121 = vunpack.c.l.b16 %v533
        %v2122 = vunpack.c.l.b16 %v534
        %v2123 = vunpack.c.l.b16 %v535
        %v2124 = vunpack.c.l.b16 %v536
        %v2125 = vunpack.c.l.b16 %v537
        %v2126 = vunpack.c.l.b16 %v538
        %v2127 = vunpack.c.l.b16 %v539
        %v2128 = vunpack.c.l.b16 %v540
        %v2129 = vunpack.c.l.b16 %v541
        %v2130 = vunpack.c.l.b16 %v542
        %v2131 = vunpack.c.l.b16 %v543
        %v2132 = vunpack.c.l.b16 %v544
        %v2133 = vunpack.c.l.b16 %v545
        %v2134 = vunpack.c.l.b16 %v546
        %v2135 = vunpack.c.l.b16 %v547
        %v2136 = vunpack.c.l.b16 %v548
        %v2137 = vunpack.c.l.b16 %v549
        %v2138 = vunpack.c.l.b16 %v550
        %v2139 = vunpack.c.l.b16 %v551
        %v2140 = vunpack.c.l.b16 %v552
        %v2141 = vunpack.c.l.b16 %v553
        %v2142 = vunpack.c.l.b16 %v554
        %v2143 = vunpack.c.l.b16 %v555
        %v2144 = vunpack.c.l.b16 %v556
        %v2145 = vunpack.c.l.b16 %v557
        %v2146 = vunpack.c.l.b16 %v558
        %v2147 = vunpack.c.l.b16 %v559
        %v2148 = vunpack.c.l.b16 %v560
        %v2149 = vunpack.c.l.b16 %v561
        %v2150 = vunpack.c.l.b16 %v562
        %v2151 = vunpack.c.l.b16 %v563
        %v2152 = vunpack.c.l.b16 %v564
        %v2153 = vunpack.c.l.b16 %v565
        %v2154 = vunpack.c.l.b16 %v566
        %v2155 = vunpack.c.l.b16 %v567
        %v2156 = vunpack.c.l.b16 %v568
        %v2157 = vunpack.c.l.b16 %v569
        %v2158 = vunpack.c.l.b16 %v570
        %v2159 = vunpack.c.l.b16 %v571
        %v2160 = vunpack.c.l.b16 %v572
        %v2161 = vunpack.c.l.b16 %v573
        %v2162 = vunpack.c.l.b16 %v574
        %v2163 = vunpack.c.l.b16 %v575
        %v2164 = vunpack.c.l.b16 %v576
        %v2165 = vunpack.c.l.b16 %v577
        %v2166 = vunpack.c.l.b16 %v578
        %v2167 = vunpack.c.l.b16 %v579
        %v2168 = vunpack.c.l.b16 %v580
        %v2169 = vunpack.c.l.b16 %v581
        %v2170 = vunpack.c.l.b16 %v582
        %v2171 = vunpack.c.l.b16 %v583
        %v2172 = vunpack.c.l.b16 %v584
        %v2173 = vunpack.c.l.b16 %v585
        %v2174 = vunpack.c.l.b16 %v586
        %v2175 = vunpack.c.l.b16 %v587
        %v2176 = vunpack.c.l.b16 %v588
        %v2177 = vunpack.c.l.b16 %v589
        %v2178 = vunpack.c.l.b16 %v590
        %v2179 = vunpack.c.l.b16 %v591
        %v2180 = vunpack.c.l.b16 %v592
        %v2181 = vunpack.c.l.b16 %v593
        %v2182 = vunpack.c.l.b16 %v594
        %v2183 = vunpack.c.l.b16 %v595
        %v2184 = vunpack.c.l.b16 %v596
        %v2185 = vunpack.c.l.b16 %v597
        %v2186 = vunpack.c.l.b16 %v598
        %v2187 = vunpack.c.l.b16 %v599
        %v2188 = vunpack.c.l.b16 %v600
        %v2189 = vunpack.c.l.b16 %v601
        %v2190 = vunpack.c.l.b16 %v602
        %v2191 = vunpack.c.l.b16 %v603
        %v2192 = vunpack.c.l.b16 %v604
        %v2193 = vunpack.c.l.b16 %v605
        %v2194 = vunpack.c.l.b16 %v606
        %v2195 = vunpack.c.l.b16 %v607
        %v2196 = vunpack.c.l.b16 %v608
        %v2197 = vunpack.c.l.b16 %v609
        %v2198 = vunpack.c.l.b16 %v610
        %v2199 = vunpack.c.l.b16 %v611
        %v2200 = vunpack.c.l.b16 %v612
        %v2201 = vunpack.c.l.b16 %v613
        %v2202 = vunpack.c.l.b16 %v614
        %v2203 = vunpack.c.l.b16 %v615
        %v2204 = vunpack.c.l.b16 %v616
        %v2205 = vunpack.c.l.b16 %v617
        %v2206 = vunpack.c.l.b16 %v618
        %v2207 = vunpack.c.l.b16 %v619
        %v2208 = vunpack.c.l.b16 %v620
        %v2209 = vunpack.c.l.b16 %v621
        %v2210 = vunpack.c.l.b16 %v622
        %v2211 = vunpack.c.l.b16 %v623
        %v2212 = vunpack.c.l.b16 %v624
        %v2213 = vunpack.c.l.b16 %v625
        %v2214 = vunpack.c.l.b16 %v626
        %v2215 = vunpack.c.l.b16 %v627
        %v2216 = vunpack.c.l.b16 %v628
        %v2217 = vunpack.c.l.b16 %v629
        %v2218 = vunpack.c.l.b16 %v630
        %v2219 = vunpack.c.l.b16 %v631
        %v2220 = vunpack.c.l.b16 %v632
        %v2221 = vunpack.c.l.b16 %v633
        %v2222 = vunpack.c.l.b16 %v634
        %v2223 = vunpack.c.l.b16 %v635
        %v2224 = vunpack.c.l.b16 %v636
        %v2225 = vunpack.c.l.b16 %v637
        %v2226 = vunpack.c.l.b16 %v638
        %v2227 = vunpack.c.l.b16 %v639
        %v2228 = vunpack.c.l.b16 %v640
        %v2229 = vunpack.c.l.b16 %v641
        %v2230 = vunpack.c.l.b16 %v642
        %v2231 = vunpack.c.l.b16 %v643
        %v2232 = vunpack.c.l.b16 %v644
        %v2233 = vunpack.c.l.b16 %v645
        %v2234 = vunpack.c.l.b16 %v646
        %v2235 = vunpack.c.l.b16 %v647
        %v2236 = vunpack.c.l.b16 %v648
        %v2237 = vunpack.c.l.b16 %v649
        %v2238 = vunpack.c.l.b16 %v650
        %v2239 = vunpack.c.l.b16 %v651
        %v2240 = vunpack.c.l.b16 %v652
        %v2241 = vunpack.c.l.b16 %v653
        %v2242 = vunpack.c.l.b16 %v654
        %v2243 = vunpack.c.l.b16 %v655
        %v2244 = vunpack.c.l.b16 %v656
        %v2245 = vunpack.c.l.b16 %v657
        %v2246 = vunpack.c.l.b16 %v658
        %v2247 = vunpack.c.l.b16 %v659
        %v2248 = vunpack.c.l.b16 %v660
        %v2249 = vunpack.c.l.b16 %v661
        %v2250 = vunpack.c.l.b16 %v662
        %v2251 = vunpack.c.l.b16 %v663
        %v2252 = vunpack.c.l.b16 %v664
        %v2253 = vunpack.c.l.b16 %v665
        %v2254 = vunpack.c.l.b16 %v666
        %v2255 = vunpack.c.l.b16 %v667
        %v2256 = vunpack.c.l.b16 %v668
        %v2257 = vunpack.c.l.b16 %v669
        %v2258 = vunpack.c.l.b16 %v670
        %v2259 = vunpack.c.l.b16 %v671
        %v2260 = vunpack.c.l.b16 %v672
        %v2261 = vunpack.c.l.b16 %v673
        %v2262 = vunpack.c.l.b16 %v674
        %v2263 = vunpack.c.l.b16 %v675
        %v2264 = vunpack.c.l.b16 %v676
        %v2265 = vunpack.c.l.b16 %v677
        %v2266 = vunpack.c.l.b16 %v678
        %v2267 = vunpack.c.l.b16 %v679
        %v2268 = vunpack.c.l.b16 %v680
        %v2269 = vunpack.c.l.b16 %v681
        %v2270 = vunpack.c.l.b16 %v682
        %v2271 = vunpack.c.l.b16 %v683
        %v2272 = vunpack.c.l.b16 %v684
        %v2273 = vunpack.c.l.b16 %v685
        %v2274 = vunpack.c.l.b16 %v686
        %v2275 = vunpack.c.l.b16 %v687
        %v2276 = vunpack.c.l.b16 %v688
        %v2277 = vunpack.c.l.b16 %v689
        %v2278 = vunpack.c.l.b16 %v690
        %v2279 = vunpack.c.l.b16 %v691
        %v2280 = vunpack.c.l.b16 %v692
        %v2281 = vunpack.c.l.b16 %v693
        %v2282 = vunpack.c.l.b16 %v694
        %v2283 = vunpack.c.l.b16 %v695
        %v2284 = vunpack.c.l.b16 %v696
        %v2285 = vunpack.c.l.b16 %v697
        %v2286 = vunpack.c.l.b16 %v698
        %v2287 = vunpack.c.l.b16 %v699
        %v2288 = vunpack.c.l.b16 %v700
        %v2289 = vunpack.c.l.b16 %v701
        %v2290 = vunpack.c.l.b16 %v702
        %v2291 = vunpack.c.l.b16 %v703
        %v2292 = vunpack.c.l.b16 %v704
        %v2293 = vunpack.c.l.b16 %v705
        %v2294 = vunpack.c.l.b16 %v706
        %v2295 = vunpack.c.l.b16 %v707
        %v2296 = vunpack.c.l.b16 %v708
        %v2297 = vunpack.c.l.b16 %v709
        %v2298 = vunpack.c.l.b16 %v710
        %v2299 = vunpack.c.l.b16 %v711
        %v2300 = vunpack.c.l.b16 %v712
        %v2301 = vunpack.c.l.b16 %v713
        %v2302 = vunpack.c.l.b16 %v714
        %v2303 = vunpack.c.l.b16 %v715
        %v2304 = vunpack.c.l.b16 %v716
        %v2305 = vunpack.c.l.b16 %v717
        %v2306 = vunpack.c.l.b16 %v718
        %v2307 = vunpack.c.l.b16 %v719
        %v2308 = vunpack.c.l.b16 %v720
        %v2309 = vunpack.c.l.b16 %v721
        %v2310 = vunpack.c.l.b16 %v722
        %v2311 = vunpack.c.l.b16 %v723
        %v2312 = vunpack.c.l.b16 %v724
        %v2313 = vunpack.c.l.b16 %v725
        %v2314 = vunpack.c.l.b16 %v726
        %v2315 = vunpack.c.l.b16 %v727
        %v2316 = vunpack.c.l.b16 %v728
        %v2317 = vunpack.c.l.b16 %v729
        %v2318 = vunpack.c.l.b16 %v730
        %v2319 = vunpack.c.l.b16 %v731
        %v2320 = vunpack.c.l.b16 %v732
        %v2321 = vunpack.c.l.b16 %v733
        %v2322 = vunpack.c.l.b16 %v734
        %v2323 = vunpack.c.l.b16 %v735
        %v2324 = vunpack.c.l.b16 %v736
        %v2325 = vunpack.c.l.b16 %v737
        %v2326 = vunpack.c.l.b16 %v738
        %v2327 = vunpack.c.l.b16 %v739
        %v2328 = vunpack.c.l.b16 %v740
        %v2329 = vunpack.c.l.b16 %v741
        %v2330 = vunpack.c.l.b16 %v742
        %v2331 = vunpack.c.l.b16 %v743
        %v2332 = vunpack.c.l.b16 %v744
        %v2333 = vunpack.c.l.b16 %v745
        %v2334 = vunpack.c.l.b16 %v746
        %v2335 = vunpack.c.l.b16 %v747
        %v2336 = vunpack.c.l.b16 %v748
        %v2337 = vunpack.c.l.b16 %v749
        %v2338 = vunpack.c.l.b16 %v750
        %v2339 = vunpack.c.l.b16 %v751
        %v2340 = vunpack.c.l.b16 %v752
        %v2341 = vunpack.c.l.b16 %v753
        %v2342 = vunpack.c.l.b16 %v754
        %v2343 = vunpack.c.l.b16 %v755
        %v2344 = vunpack.c.l.b16 %v756
        %v2345 = vunpack.c.l.b16 %v757
        %v2346 = vunpack.c.l.b16 %v758
        %v2347 = vunpack.c.l.b16 %v759
        %v2348 = vunpack.c.l.b16 %v760
        %v2349 = vunpack.c.l.b16 %v761
        %v2350 = vunpack.c.l.b16 %v762
        %v2351 = vunpack.c.l.b16 %v763
        %v2352 = vunpack.c.l.b16 %v764
        %v2353 = vunpack.c.l.b16 %v765
        %v2354 = vunpack.c.l.b16 %v766
        %v2355 = vunpack.c.l.b16 %v767
        %v2356 = vunpack.c.l.b16 %v768
        %v2357 = vunpack.c.l.b16 %v769
        %v2358 = vunpack.c.l.b16 %v770
        %v2359 = vunpack.c.l.b16 %v771
        %v2360 = vunpack.c.l.b16 %v772
        %v2361 = vunpack.c.l.b16 %v773
        %v2362 = vunpack.c.l.b16 %v774
        %v2363 = vunpack.c.l.b16 %v775
        %v2364 = vunpack.c.l.b16 %v776
        %v2365 = vunpack.c.l.b16 %v777
        %v2366 = vunpack.c.l.b16 %v778
        %v2367 = vunpack.c.l.b16 %v779
        %v2368 = vunpack.c.l.b16 %v780
        %v2369 = vunpack.c.l.b16 %v781
        %v2370 = vunpack.c.l.b16 %v782
        %v2371 = vunpack.c.l.b16 %v783
        %v2372 = vunpack.c.l.b16 %v784
        %v2373 = vunpack.c.l.b16 %v785
        %v2374 = vunpack.c.l.b16 %v786
        %v2375 = vunpack.c.l.b16 %v787
        %v2376 = vunpack.c.l.b16 %v788
        %v2377 = vunpack.c.l.b16 %v789
        %v2378 = vunpack.c.l.b16 %v790
        %v2379 = vunpack.c.l.b16 %v791
        %v2380 = vunpack.c.l.b16 %v792
        %v2381 = vunpack.c.l.b16 %v793
        %v2382 = vunpack.c.l.b16 %v794
        %v2383 = vunpack.c.l.b16 %v795
        %v2384 = vunpack.c.l.b16 %v796
        %v2385 = vunpack.c.l.b16 %v797
        %v2386 = vunpack.c.l.b16 %v798
        %v2387 = vunpack.c.l.b16 %v799
        %v2388 = vunpack.c.l.b16 %v800
        %v2389 = vunpack.c.l.b16 %v801
        %v2390 = vunpack.c.l.b16 %v802
        %v2391 = vunpack.c.l.b16 %v803
        %v2392 = vunpack.c.l.b16 %v804
        %v2393 = vunpack.c.l.b16 %v805
        %v2394 = vunpack.c.l.b16 %v806
        %v2395 = vunpack.c.l.b16 %v807
        %v2396 = vunpack.c.l.b16 %v808
        %v2397 = vunpack.c.l.b16 %v809
        %v2398 = vunpack.c.l.b16 %v810
        %v2399 = vunpack.c.l.b16 %v811
        %v2400 = vunpack.c.l.b16 %v812
        %v2401 = vunpack.c.l.b16 %v813
        %v2402 = vunpack.c.l.b16 %v814
        %v2403 = vunpack.c.l.b16 %v815
        %v2404 = vunpack.c.l.b16 %v816
        %v2405 = vunpack.c.l.b16 %v817
        %v2406 = vunpack.c.l.b16 %v818
        %v2407 = vunpack.c.l.b16 %v819
        %v2408 = vunpack.c.l.b16 %v820
        %v2409 = vunpack.c.l.b16 %v821
        %v2410 = vunpack.c.l.b16 %v822
        %v2411 = vunpack.c.l.b16 %v823
        %v2412 = vunpack.c.l.b16 %v824
        %v2413 = vunpack.c.l.b16 %v825
        %v2414 = vunpack.c.l.b16 %v826
        %v2415 = vunpack.c.l.b16 %v827
        %v2416 = vunpack.c.l.b16 %v828
        %v2417 = vunpack.c.l.b16 %v829
        %v2418 = vunpack.c.l.b16 %v830
        %v2419 = vunpack.c.l.b16 %v831
        %v2420 = vunpack.c.l.b16 %v832
        %v2421 = vunpack.c.l.b16 %v833
        %v2422 = vunpack.c.l.b16 %v834
        %v2423 = vunpack.c.l.b16 %v835
        %v2424 = vunpack.c.l.b16 %v836
        %v2425 = vunpack.c.l.b16 %v837
        %v2426 = vunpack.c.l.b16 %v838
        %v2427 = vunpack.c.l.b16 %v839
        %v2428 = vunpack.c.l.b16 %v840
        %v2429 = vunpack.c.l.b16 %v841
        %v2430 = vunpack.c.l.b16 %v842
        %v2431 = vunpack.c.l.b16 %v843
        %v2432 = vunpack.c.l.b16 %v844
        %v2433 = vunpack.c.l.b16 %v845
        %v2434 = vunpack.c.l.b16 %v846
        %v2435 = vunpack.c.l.b16 %v847
        %v2436 = vunpack.c.l.b16 %v848
        %v2437 = vunpack.c.l.b16 %v849
        %v2438 = vunpack.c.l.b16 %v850
        %v2439 = vunpack.c.l.b16 %v851
        %v2440 = vunpack.c.l.b16 %v852
        %v2441 = vunpack.c.l.b16 %v853
        %v2442 = vunpack.c.l.b16 %v854
        %v2443 = vunpack.c.l.b16 %v855
        %v2444 = vunpack.c.l.b16 %v856
        %v2445 = vunpack.c.l.b16 %v857
        %v2446 = vunpack.c.l.b16 %v858
        %v2447 = vunpack.c.l.b16 %v859
        %v2448 = vunpack.c.l.b16 %v860
        %v2449 = vunpack.c.l.b16 %v861
        %v2450 = vunpack.c.l.b16 %v862
        %v2451 = vunpack.c.l.b16 %v863
        %v2452 = vunpack.c.l.b16 %v864
        %v2453 = vunpack.c.l.b16 %v865
        %v2454 = vunpack.c.l.b16 %v866
        %v2455 = vunpack.c.l.b16 %v867
        %v2456 = vunpack.c.l.b16 %v868
        %v2457 = vunpack.c.l.b16 %v869
        %v2458 = vunpack.c.l.b16 %v870
        %v2459 = vunpack.c.l.b16 %v871
        %v2460 = vunpack.c.l.b16 %v872
        %v2461 = vunpack.c.l.b16 %v873
        %v2462 = vunpack.c.l.b16 %v874
        %v2463 = vunpack.c.l.b16 %v875
        %v2464 = vpack.c.b16 %v2113, %v2112
        %v2465 = vpack.c.b16 %v2115, %v2114
        %v2466 = vpack.c.b16 %v2117, %v2116
        %v2467 = vpack.c.b16 %v2119, %v2118
        %v2468 = vpack.c.b16 %v2121, %v2120
        %v2469 = vpack.c.b16 %v2123, %v2122
        %v2470 = vpack.c.b16 %v2125, %v2124
        %v2471 = vpack.c.b16 %v2127, %v2126
        %v2472 = vpack.c.b16 %v2129, %v2128
        %v2473 = vpack.c.b16 %v2131, %v2130
        %v2474 = vpack.c.b16 %v2133, %v2132
        %v2475 = vpack.c.b16 %v2135, %v2134
        %v2476 = vpack.c.b16 %v2137, %v2136
        %v2477 = vpack.c.b16 %v2139, %v2138
        %v2478 = vpack.c.b16 %v2141, %v2140
        %v2479 = vpack.c.b16 %v2143, %v2142
        %v2480 = vpack.c.b16 %v2145, %v2144
        %v2481 = vpack.c.b16 %v2147, %v2146
        %v2482 = vpack.c.b16 %v2149, %v2148
        %v2483 = vpack.c.b16 %v2151, %v2150
        %v2484 = vpack.c.b16 %v2153, %v2152
        %v2485 = vpack.c.b16 %v2155, %v2154
        %v2486 = vpack.c.b16 %v2157, %v2156
        %v2487 = vpack.c.b16 %v2159, %v2158
        %v2488 = vpack.c.b16 %v2161, %v2160
        %v2489 = vpack.c.b16 %v2163, %v2162
        %v2490 = vpack.c.b16 %v2165, %v2164
        %v2491 = vpack.c.b16 %v2167, %v2166
        %v2492 = vpack.c.b16 %v2169, %v2168
        %v2493 = vpack.c.b16 %v2171, %v2170
        %v2494 = vpack.c.b16 %v2173, %v2172
        %v2495 = vpack.c.b16 %v2175, %v2174
        %v2496 = vpack.c.b16 %v2177, %v2176
        %v2497 = vpack.c.b16 %v2179, %v2178
        %v2498 = vpack.c.b16 %v2181, %v2180
        %v2499 = vpack.c.b16 %v2183, %v2182
        %v2500 = vpack.c.b16 %v2185, %v2184
        %v2501 = vpack.c.b16 %v2187, %v2186
        %v2502 = vpack.c.b16 %v2189, %v2188
        %v2503 = vpack.c.b16 %v2191, %v2190
        %v2504 = vpack.c.b16 %v2193, %v2192
        %v2505 = vpack.c.b16 %v2195, %v2194
        %v2506 = vpack.c.b16 %v2197, %v2196
        %v2507 = vpack.c.b16 %v2199, %v2198
        %v2508 = vpack.c.b16 %v2201, %v2200
        %v2509 = vpack.c.b16 %v2203, %v2202
        %v2510 = vpack.c.b16 %v2205, %v2204
        %v2511 = vpack.c.b16 %v2207, %v2206
        %v2512 = vpack.c.b16 %v2209, %v2208
        %v2513 = vpack.c.b16 %v2211, %v2210
        %v2514 = vpack.c.b16 %v2213, %v2212
        %v2515 = vpack.c.b16 %v2215, %v2214
        %v2516 = vpack.c.b16 %v2217, %v2216
        %v2517 = vpack.c.b16 %v2219, %v2218
        %v2518 = vpack.c.b16 %v2221, %v2220
        %v2519 = vpack.c.b16 %v2223, %v2222
        %v2520 = vpack.c.b16 %v2225, %v2224
        %v2521 = vpack.c.b16 %v2227, %v2226
        %v2522 = vpack.c.b16 %v2229, %v2228
        %v2523 = vpack.c.b16 %v2231, %v2230
        %v2524 = vpack.c.b16 %v2233, %v2232
        %v2525 = vpack.c.b16 %v2235, %v2234
        %v2526 = vpack.c.b16 %v2237, %v2236
        %v2527 = vpack.c.b16 %v2239, %v2238
        %v2528 = vpack.c.b16 %v2241, %v2240
        %v2529 = vpack.c.b16 %v2243, %v2242
        %v2530 = vpack.c.b16 %v2245, %v2244
        %v2531 = vpack.c.b16 %v2247, %v2246
        %v2532 = vpack.c.b16 %v2249, %v2248
        %v2533 = vpack.c.b16 %v2251, %v2250
        %v2534 = vpack.c.b16 %v2253, %v2252
        %v2535 = vpack.c.b16 %v2255, %v2254
        %v2536 = vpack.c.b16 %v2257, %v2256
        %v2537 = vpack.c.b16 %v2259, %v2258
        %v2538 = vpack.c.b16 %v2261, %v2260
        %v2539 = vpack.c.b16 %v2263, %v2262
        %v2540 = vpack.c.b16 %v2265, %v2264
        %v2541 = vpack.c.b16 %v2267, %v2266
        %v2542 = vpack.c.b16 %v2269, %v2268
        %v2543 = vpack.c.b16 %v2271, %v2270
        %v2544 = vpack.c.b16 %v2273, %v2272
        %v2545 = vpack.c.b16 %v2275, %v2274
        %v2546 = vpack.c.b16 %v2277, %v2276
        %v2547 = vpack.c.b16 %v2279, %v2278
        %v2548 = vpack.c.b16 %v2281, %v2280
        %v2549 = vpack.c.b16 %v2283, %v2282
        %v2550 = vpack.c.b16 %v2285, %v2284
        %v2551 = vpack.c.b16 %v2287, %v2286
        %v2552 = vpack.c.b16 %v2289, %v2288
        %v2553 = vpack.c.b16 %v2291, %v2290
        %v2554 = vpack.c.b16 %v2293, %v2292
        %v2555 = vpack.c.b16 %v2295, %v2294
        %v2556 = vpack.c.b16 %v2297, %v2296
        %v2557 = vpack.c.b16 %v2299, %v2298
        %v2558 = vpack.c.b16 %v2301, %v2300
        %v2559 = vpack.c.b16 %v2303, %v2302
        %v2560 = vpack.c.b16 %v2305, %v2304
        %v2561 = vpack.c.b16 %v2307, %v2306
        %v2562 = vpack.c.b16 %v2309, %v2308
        %v2563 = vpack.c.b16 %v2311, %v2310
        %v2564 = vpack.c.b16 %v2313, %v2312
        %v2565 = vpack.c.b16 %v2315, %v2314
        %v2566 = vpack.c.b16 %v2317, %v2316
        %v2567 = vpack.c.b16 %v2319, %v2318
        %v2568 = vpack.c.b16 %v2321, %v2320
        %v2569 = vpack.c.b16 %v2323, %v2322
        %v2570 = vpack.c.b16 %v2325, %v2324
        %v2571 = vpack.c.b16 %v2327, %v2326
        %v2572 = vpack.c.b16 %v2329, %v2328
        %v2573 = vpack.c.b16 %v2331, %v2330
        %v2574 = vpack.c.b16 %v2333, %v2332
        %v2575 = vpack.c.b16 %v2335, %v2334
        %v2576 = vpack.c.b16 %v2337, %v2336
        %v2577 = vpack.c.b16 %v2339, %v2338
        %v2578 = vpack.c.b16 %v2341, %v2340
        %v2579 = vpack.c.b16 %v2343, %v2342
        %v2580 = vpack.c.b16 %v2345, %v2344
        %v2581 = vpack.c.b16 %v2347, %v2346
        %v2582 = vpack.c.b16 %v2349, %v2348
        %v2583 = vpack.c.b16 %v2351, %v2350
        %v2584 = vpack.c.b16 %v2353, %v2352
        %v2585 = vpack.c.b16 %v2355, %v2354
        %v2586 = vpack.c.b16 %v2357, %v2356
        %v2587 = vpack.c.b16 %v2359, %v2358
        %v2588 = vpack.c.b16 %v2361, %v2360
        %v2589 = vpack.c.b16 %v2363, %v2362
        %v2590 = vpack.c.b16 %v2365, %v2364
        %v2591 = vpack.c.b16 %v2367, %v2366
        %v2592 = vpack.c.b16 %v2369, %v2368
        %v2593 = vpack.c.b16 %v2371, %v2370
        %v2594 = vpack.c.b16 %v2373, %v2372
        %v2595 = vpack.c.b16 %v2375, %v2374
        %v2596 = vpack.c.b16 %v2377, %v2376
        %v2597 = vpack.c.b16 %v2379, %v2378
        %v2598 = vpack.c.b16 %v2381, %v2380
        %v2599 = vpack.c.b16 %v2383, %v2382
        %v2600 = vpack.c.b16 %v2385, %v2384
        %v2601 = vpack.c.b16 %v2387, %v2386
        %v2602 = vpack.c.b16 %v2389, %v2388
        %v2603 = vpack.c.b16 %v2391, %v2390
        %v2604 = vpack.c.b16 %v2393, %v2392
        %v2605 = vpack.c.b16 %v2395, %v2394
        %v2606 = vpack.c.b16 %v2397, %v2396
        %v2607 = vpack.c.b16 %v2399, %v2398
        %v2608 = vpack.c.b16 %v2401, %v2400
        %v2609 = vpack.c.b16 %v2403, %v2402
        %v2610 = vpack.c.b16 %v2405, %v2404
        %v2611 = vpack.c.b16 %v2407, %v2406
        %v2612 = vpack.c.b16 %v2409, %v2408
        %v2613 = vpack.c.b16 %v2411, %v2410
        %v2614 = vpack.c.b16 %v2413, %v2412
        %v2615 = vpack.c.b16 %v2415, %v2414
        %v2616 = vpack.c.b16 %v2417, %v2416
        %v2617 = vpack.c.b16 %v2419, %v2418
        %v2618 = vpack.c.b16 %v2421, %v2420
        %v2619 = vpack.c.b16 %v2423, %v2422
        %v2620 = vpack.c.b16 %v2425, %v2424
        %v2621 = vpack.c.b16 %v2427, %v2426
        %v2622 = vpack.c.b16 %v2429, %v2428
        %v2623 = vpack.c.b16 %v2431, %v2430
        %v2624 = vpack.c.b16 %v2433, %v2432
        %v2625 = vpack.c.b16 %v2435, %v2434
        %v2626 = vpack.c.b16 %v2437, %v2436
        %v2627 = vpack.c.b16 %v2439, %v2438
        %v2628 = vpack.c.b16 %v2441, %v2440
        %v2629 = vpack.c.b16 %v2443, %v2442
        %v2630 = vpack.c.b16 %v2445, %v2444
        %v2631 = vpack.c.b16 %v2447, %v2446
        %v2632 = vpack.c.b16 %v2449, %v2448
        %v2633 = vpack.c.b16 %v2451, %v2450
        %v2634 = vpack.c.b16 %v2453, %v2452
        %v2635 = vpack.c.b16 %v2455, %v2454
        %v2636 = vpack.c.b16 %v2457, %v2456
        %v2637 = vpack.c.b16 %v2459, %v2458
        %v2638 = vpack.c.b16 %v2461, %v2460
        %v2639 = vpack.c.b16 %v2463, %v2462
        %2816 = vmatprep.subr.bf16.mxu0 0
        %2817 = vmatpush1.bf16.msra.mxu0 %v2464
        %2818 = vmatprep.subr.bf16.mxu0 0
        %2819 = vmatpush1.bf16.msra.mxu0 %v2465
        %2820 = vmatprep.subr.bf16.mxu0 0
        %2821 = vmatpush1.bf16.msra.mxu0 %v2466
        %2822 = vmatprep.subr.bf16.mxu0 0
        %2823 = vmatpush1.bf16.msra.mxu0 %v2467
        %2824 = vmatprep.subr.bf16.mxu0 0
        %2825 = vmatpush1.bf16.msra.mxu0 %v2468
        %2826 = vmatprep.subr.bf16.mxu0 0
        %2827 = vmatpush1.bf16.msra.mxu0 %v2469
        %2828 = vmatprep.subr.bf16.mxu0 0
        %2829 = vmatpush1.bf16.msra.mxu0 %v2470
        %2830 = vmatprep.subr.bf16.mxu0 0
        %2831 = vmatpush1.bf16.msra.mxu0 %v2471
        %2832 = vmatprep.subr.bf16.mxu0 0
        %2833 = vmatpush1.bf16.msra.mxu0 %v2472
        %2834 = vmatprep.subr.bf16.mxu0 0
        %2835 = vmatpush1.bf16.msra.mxu0 %v2473
        %2836 = vmatprep.subr.bf16.mxu0 0
        %2837 = vmatpush1.bf16.msra.mxu0 %v2474
        %2838 = vmatprep.subr.bf16.mxu0 0
        %2839 = vmatpush1.bf16.msra.mxu0 %v2475
        %2840 = vmatprep.subr.bf16.mxu0 0
        %2841 = vmatpush1.bf16.msra.mxu0 %v2476
        %2842 = vmatprep.subr.bf16.mxu0 0
        %2843 = vmatpush1.bf16.msra.mxu0 %v2477
        %2844 = vmatprep.subr.bf16.mxu0 0
        %2845 = vmatpush1.bf16.msra.mxu0 %v2478
        %2846 = vmatprep.subr.bf16.mxu0 0
        %2847 = vmatpush1.bf16.msra.mxu0 %v2479
        %2848 = vmatprep.mubr.bf16.mxu0 %v1409
        %2849 = vmatmul.mubr.bf16.gmra.mrb[0].mxu0 %v1408
        %v2850 = vpop.f32.mrb[0].mxu0
        %v2851 = vadd.f32 %v879, %v2850
        %v2852 = vpop.f32.mrb[0].mxu0
        %v2853 = vpop.f32.mrb[0].mxu0
        %v2854 = vadd.f32 %v879, %v2853
        %v2855 = vpop.f32.mrb[0].mxu0
        %2856 = vmatprep.mubr.bf16.mxu0 %v1431
        %2857 = vmatmul.mubr.bf16.gmra.mrb[0].mxu0 %v1430
        %v2858 = vpop.f32.mrb[0].mxu0
        %v2859 = vadd.f32 %v879, %v2858
        %v2860 = vpop.f32.mrb[0].mxu0
        %v2861 = vpop.f32.mrb[0].mxu0
        %v2862 = vadd.f32 %v879, %v2861
        %v2863 = vpop.f32.mrb[0].mxu0
        %2864 = vmatprep.mubr.bf16.mxu0 %v1453
        %2865 = vmatmul.mubr.bf16.gmra.mrb[0].mxu0 %v1452
        %v2866 = vpop.f32.mrb[0].mxu0
        %v2867 = vadd.f32 %v879, %v2866
        %v2868 = vpop.f32.mrb[0].mxu0
        %v2869 = vpop.f32.mrb[0].mxu0
        %v2870 = vadd.f32 %v879, %v2869
        %v2871 = vpop.f32.mrb[0].mxu0
        %2872 = vmatprep.mubr.bf16.mxu0 %v1475
        %2873 = vmatmul.mubr.bf16.gmra.mrb[0].mxu0 %v1474
        %v2874 = vpop.f32.mrb[0].mxu0
        %v2875 = vadd.f32 %v879, %v2874
        %v2876 = vpop.f32.mrb[0].mxu0
        %v2877 = vpop.f32.mrb[0].mxu0
        %v2878 = vadd.f32 %v879, %v2877
        %v2879 = vpop.f32.mrb[0].mxu0
        %2880 = vmatprep.mubr.bf16.mxu0 %v1497
        %2881 = vmatmul.mubr.bf16.gmra.mrb[0].mxu0 %v1496
        %v2882 = vpop.f32.mrb[0].mxu0
        %v2883 = vadd.f32 %v879, %v2882
        %v2884 = vpop.f32.mrb[0].mxu0
        %v2885 = vpop.f32.mrb[0].mxu0
        %v2886 = vadd.f32 %v879, %v2885
        %v2887 = vpop.f32.mrb[0].mxu0
        %2888 = vmatprep.mubr.bf16.mxu0 %v1519
        %2889 = vmatmul.mubr.bf16.gmra.mrb[0].mxu0 %v1518
        %v2890 = vpop.f32.mrb[0].mxu0
        %v2891 = vadd.f32 %v879, %v2890
        %v2892 = vpop.f32.mrb[0].mxu0
        %v2893 = vpop.f32.mrb[0].mxu0
        %v2894 = vadd.f32 %v879, %v2893
        %v2895 = vpop.f32.mrb[0].mxu0
        %2896 = vmatprep.mubr.bf16.mxu0 %v1541
        %2897 = vmatmul.mubr.bf16.gmra.mrb[0].mxu0 %v1540
        %v2898 = vpop.f32.mrb[0].mxu0
        %v2899 = vadd.f32 %v879, %v2898
        %v2900 = vpop.f32.mrb[0].mxu0
        %v2901 = vpop.f32.mrb[0].mxu0
        %v2902 = vadd.f32 %v879, %v2901
        %v2903 = vpop.f32.mrb[0].mxu0
        %2904 = vmatprep.mubr.bf16.mxu0 %v1563
        %2905 = vmatmul.mubr.bf16.gmra.mrb[0].mxu0 %v1562
        %v2906 = vpop.f32.mrb[0].mxu0
        %v2907 = vadd.f32 %v879, %v2906
        %v2908 = vpop.f32.mrb[0].mxu0
        %v2909 = vpop.f32.mrb[0].mxu0
        %v2910 = vadd.f32 %v879, %v2909
        %v2911 = vpop.f32.mrb[0].mxu0
        %2912 = vdwg.mxu0
        %2913 = vmatprep.subr.bf16.mxu0 0
        %2914 = vmatpush1.bf16.msra.mxu0 %v2480
        %2915 = vmatprep.subr.bf16.mxu0 0
        %2916 = vmatpush1.bf16.msra.mxu0 %v2481
        %2917 = vmatprep.subr.bf16.mxu0 0
        %2918 = vmatpush1.bf16.msra.mxu0 %v2482
        %2919 = vmatprep.subr.bf16.mxu0 0
        %2920 = vmatpush1.bf16.msra.mxu0 %v2483
        %2921 = vmatprep.subr.bf16.mxu0 0
        %2922 = vmatpush1.bf16.msra.mxu0 %v2484
        %2923 = vmatprep.subr.bf16.mxu0 0
        %2924 = vmatpush1.bf16.msra.mxu0 %v2485
        %2925 = vmatprep.subr.bf16.mxu0 0
        %2926 = vmatpush1.bf16.msra.mxu0 %v2486
        %2927 = vmatprep.subr.bf16.mxu0 0
        %2928 = vmatpush1.bf16.msra.mxu0 %v2487
        %2929 = vmatprep.subr.bf16.mxu0 0
        %2930 = vmatpush1.bf16.msra.mxu0 %v2488
        %2931 = vmatprep.subr.bf16.mxu0 0
        %2932 = vmatpush1.bf16.msra.mxu0 %v2489
        %2933 = vmatprep.subr.bf16.mxu0 0
        %2934 = vmatpush1.bf16.msra.mxu0 %v2490
        %2935 = vmatprep.subr.bf16.mxu0 0
        %2936 = vmatpush1.bf16.msra.mxu0 %v2491
        %2937 = vmatprep.subr.bf16.mxu0 0
        %2938 = vmatpush1.bf16.msra.mxu0 %v2492
        %2939 = vmatprep.subr.bf16.mxu0 0
        %2940 = vmatpush1.bf16.msra.mxu0 %v2493
        %2941 = vmatprep.subr.bf16.mxu0 0
        %2942 = vmatpush1.bf16.msra.mxu0 %v2494
        %2943 = vmatprep.subr.bf16.mxu0 0
        %2944 = vmatpush1.bf16.msra.mxu0 %v2495
        %2945 = vmatprep.mubr.bf16.mxu0 %v1411
        %2946 = vmatmul.mubr.bf16.gmra.mrb[0].mxu0 %v1410
        %v2947 = vpop.f32.mrb[0].mxu0
        %v2948 = vadd.f32 %v2851, %v2947
        %v2949 = vpop.f32.mrb[0].mxu0
        %v2950 = vpop.f32.mrb[0].mxu0
        %v2951 = vadd.f32 %v2854, %v2950
        %v2952 = vpop.f32.mrb[0].mxu0
        %2953 = vmatprep.mubr.bf16.mxu0 %v1433
        %2954 = vmatmul.mubr.bf16.gmra.mrb[0].mxu0 %v1432
        %v2955 = vpop.f32.mrb[0].mxu0
        %v2956 = vadd.f32 %v2859, %v2955
        %v2957 = vpop.f32.mrb[0].mxu0
        %v2958 = vpop.f32.mrb[0].mxu0
        %v2959 = vadd.f32 %v2862, %v2958
        %v2960 = vpop.f32.mrb[0].mxu0
        %2961 = vmatprep.mubr.bf16.mxu0 %v1455
        %2962 = vmatmul.mubr.bf16.gmra.mrb[0].mxu0 %v1454
        %v2963 = vpop.f32.mrb[0].mxu0
        %v2964 = vadd.f32 %v2867, %v2963
        %v2965 = vpop.f32.mrb[0].mxu0
        %v2966 = vpop.f32.mrb[0].mxu0
        %v2967 = vadd.f32 %v2870, %v2966
        %v2968 = vpop.f32.mrb[0].mxu0
        %2969 = vmatprep.mubr.bf16.mxu0 %v1477
        %2970 = vmatmul.mubr.bf16.gmra.mrb[0].mxu0 %v1476
        %v2971 = vpop.f32.mrb[0].mxu0
        %v2972 = vadd.f32 %v2875, %v2971
        %v2973 = vpop.f32.mrb[0].mxu0
        %v2974 = vpop.f32.mrb[0].mxu0
        %v2975 = vadd.f32 %v2878, %v2974
        %v2976 = vpop.f32.mrb[0].mxu0
        %2977 = vmatprep.mubr.bf16.mxu0 %v1499
        %2978 = vmatmul.mubr.bf16.gmra.mrb[0].mxu0 %v1498
        %v2979 = vpop.f32.mrb[0].mxu0
        %v2980 = vadd.f32 %v2883, %v2979
        %v2981 = vpop.f32.mrb[0].mxu0
        %v2982 = vpop.f32.mrb[0].mxu0
        %v2983 = vadd.f32 %v2886, %v2982
        %v2984 = vpop.f32.mrb[0].mxu0
        %2985 = vmatprep.mubr.bf16.mxu0 %v1521
        %2986 = vmatmul.mubr.bf16.gmra.mrb[0].mxu0 %v1520
        %v2987 = vpop.f32.mrb[0].mxu0
        %v2988 = vadd.f32 %v2891, %v2987
        %v2989 = vpop.f32.mrb[0].mxu0
        %v2990 = vpop.f32.mrb[0].mxu0
        %v2991 = vadd.f32 %v2894, %v2990
        %v2992 = vpop.f32.mrb[0].mxu0
        %2993 = vmatprep.mubr.bf16.mxu0 %v1543
        %2994 = vmatmul.mubr.bf16.gmra.mrb[0].mxu0 %v1542
        %v2995 = vpop.f32.mrb[0].mxu0
        %v2996 = vadd.f32 %v2899, %v2995
        %v2997 = vpop.f32.mrb[0].mxu0
        %v2998 = vpop.f32.mrb[0].mxu0
        %v2999 = vadd.f32 %v2902, %v2998
        %v3000 = vpop.f32.mrb[0].mxu0
        %3001 = vmatprep.mubr.bf16.mxu0 %v1565
        %3002 = vmatmul.mubr.bf16.gmra.mrb[0].mxu0 %v1564
        %v3003 = vpop.f32.mrb[0].mxu0
        %v3004 = vadd.f32 %v2907, %v3003
        %v3005 = vpop.f32.mrb[0].mxu0
        %v3006 = vpop.f32.mrb[0].mxu0
        %v3007 = vadd.f32 %v2910, %v3006
        %v3008 = vpop.f32.mrb[0].mxu0
        %3009 = vdwg.mxu0
        %3010 = vmatprep.subr.bf16.mxu0 0
        %3011 = vmatpush1.bf16.msra.mxu0 %v2496
        %3012 = vmatprep.subr.bf16.mxu0 0
        %3013 = vmatpush1.bf16.msra.mxu0 %v2497
        %3014 = vmatprep.subr.bf16.mxu0 0
        %3015 = vmatpush1.bf16.msra.mxu0 %v2498
        %3016 = vmatprep.subr.bf16.mxu0 0
        %3017 = vmatpush1.bf16.msra.mxu0 %v2499
        %3018 = vmatprep.subr.bf16.mxu0 0
        %3019 = vmatpush1.bf16.msra.mxu0 %v2500
        %3020 = vmatprep.subr.bf16.mxu0 0
        %3021 = vmatpush1.bf16.msra.mxu0 %v2501
        %3022 = vmatprep.subr.bf16.mxu0 0
        %3023 = vmatpush1.bf16.msra.mxu0 %v2502
        %3024 = vmatprep.subr.bf16.mxu0 0
        %3025 = vmatpush1.bf16.msra.mxu0 %v2503
        %3026 = vmatprep.subr.bf16.mxu0 0
        %3027 = vmatpush1.bf16.msra.mxu0 %v2504
        %3028 = vmatprep.subr.bf16.mxu0 0
        %3029 = vmatpush1.bf16.msra.mxu0 %v2505
        %3030 = vmatprep.subr.bf16.mxu0 0
        %3031 = vmatpush1.bf16.msra.mxu0 %v2506
        %3032 = vmatprep.subr.bf16.mxu0 0
        %3033 = vmatpush1.bf16.msra.mxu0 %v2507
        %3034 = vmatprep.subr.bf16.mxu0 0
        %3035 = vmatpush1.bf16.msra.mxu0 %v2508
        %3036 = vmatprep.subr.bf16.mxu0 0
        %3037 = vmatpush1.bf16.msra.mxu0 %v2509
        %3038 = vmatprep.subr.bf16.mxu0 0
        %3039 = vmatpush1.bf16.msra.mxu0 %v2510
        %3040 = vmatprep.subr.bf16.mxu0 0
        %3041 = vmatpush1.bf16.msra.mxu0 %v2511
        %3042 = vmatprep.mubr.bf16.mxu0 %v1413
        %3043 = vmatmul.mubr.bf16.gmra.mrb[0].mxu0 %v1412
        %v3044 = vpop.f32.mrb[0].mxu0
        %v3045 = vadd.f32 %v2948, %v3044
        %v3046 = vpop.f32.mrb[0].mxu0
        %v3047 = vpop.f32.mrb[0].mxu0
        %v3048 = vadd.f32 %v2951, %v3047
        %v3049 = vpop.f32.mrb[0].mxu0
        %3050 = vmatprep.mubr.bf16.mxu0 %v1435
        %3051 = vmatmul.mubr.bf16.gmra.mrb[0].mxu0 %v1434
        %v3052 = vpop.f32.mrb[0].mxu0
        %v3053 = vadd.f32 %v2956, %v3052
        %v3054 = vpop.f32.mrb[0].mxu0
        %v3055 = vpop.f32.mrb[0].mxu0
        %v3056 = vadd.f32 %v2959, %v3055
        %v3057 = vpop.f32.mrb[0].mxu0
        %3058 = vmatprep.mubr.bf16.mxu0 %v1457
        %3059 = vmatmul.mubr.bf16.gmra.mrb[0].mxu0 %v1456
        %v3060 = vpop.f32.mrb[0].mxu0
        %v3061 = vadd.f32 %v2964, %v3060
        %v3062 = vpop.f32.mrb[0].mxu0
        %v3063 = vpop.f32.mrb[0].mxu0
        %v3064 = vadd.f32 %v2967, %v3063
        %v3065 = vpop.f32.mrb[0].mxu0
        %3066 = vmatprep.mubr.bf16.mxu0 %v1479
        %3067 = vmatmul.mubr.bf16.gmra.mrb[0].mxu0 %v1478
        %v3068 = vpop.f32.mrb[0].mxu0
        %v3069 = vadd.f32 %v2972, %v3068
        %v3070 = vpop.f32.mrb[0].mxu0
        %v3071 = vpop.f32.mrb[0].mxu0
        %v3072 = vadd.f32 %v2975, %v3071
        %v3073 = vpop.f32.mrb[0].mxu0
        %3074 = vmatprep.mubr.bf16.mxu0 %v1501
        %3075 = vmatmul.mubr.bf16.gmra.mrb[0].mxu0 %v1500
        %v3076 = vpop.f32.mrb[0].mxu0
        %v3077 = vadd.f32 %v2980, %v3076
        %v3078 = vpop.f32.mrb[0].mxu0
        %v3079 = vpop.f32.mrb[0].mxu0
        %v3080 = vadd.f32 %v2983, %v3079
        %v3081 = vpop.f32.mrb[0].mxu0
        %3082 = vmatprep.mubr.bf16.mxu0 %v1523
        %3083 = vmatmul.mubr.bf16.gmra.mrb[0].mxu0 %v1522
        %v3084 = vpop.f32.mrb[0].mxu0
        %v3085 = vadd.f32 %v2988, %v3084
        %v3086 = vpop.f32.mrb[0].mxu0
        %v3087 = vpop.f32.mrb[0].mxu0
        %v3088 = vadd.f32 %v2991, %v3087
        %v3089 = vpop.f32.mrb[0].mxu0
        %3090 = vmatprep.mubr.bf16.mxu0 %v1545
        %3091 = vmatmul.mubr.bf16.gmra.mrb[0].mxu0 %v1544
        %v3092 = vpop.f32.mrb[0].mxu0
        %v3093 = vadd.f32 %v2996, %v3092
        %v3094 = vpop.f32.mrb[0].mxu0
        %v3095 = vpop.f32.mrb[0].mxu0
        %v3096 = vadd.f32 %v2999, %v3095
        %v3097 = vpop.f32.mrb[0].mxu0
        %3098 = vmatprep.mubr.bf16.mxu0 %v1567
        %3099 = vmatmul.mubr.bf16.gmra.mrb[0].mxu0 %v1566
        %v3100 = vpop.f32.mrb[0].mxu0
        %v3101 = vadd.f32 %v3004, %v3100
        %v3102 = vpop.f32.mrb[0].mxu0
        %v3103 = vpop.f32.mrb[0].mxu0
        %v3104 = vadd.f32 %v3007, %v3103
        %v3105 = vpop.f32.mrb[0].mxu0
        %3106 = vdwg.mxu0
        %3107 = vmatprep.subr.bf16.mxu0 0
        %3108 = vmatpush1.bf16.msra.mxu0 %v2512
        %3109 = vmatprep.subr.bf16.mxu0 0
        %3110 = vmatpush1.bf16.msra.mxu0 %v2513
        %3111 = vmatprep.subr.bf16.mxu0 0
        %3112 = vmatpush1.bf16.msra.mxu0 %v2514
        %3113 = vmatprep.subr.bf16.mxu0 0
        %3114 = vmatpush1.bf16.msra.mxu0 %v2515
        %3115 = vmatprep.subr.bf16.mxu0 0
        %3116 = vmatpush1.bf16.msra.mxu0 %v2516
        %3117 = vmatprep.subr.bf16.mxu0 0
        %3118 = vmatpush1.bf16.msra.mxu0 %v2517
        %3119 = vmatprep.subr.bf16.mxu0 0
        %3120 = vmatpush1.bf16.msra.mxu0 %v2518
        %3121 = vmatprep.subr.bf16.mxu0 0
        %3122 = vmatpush1.bf16.msra.mxu0 %v2519
        %3123 = vmatprep.subr.bf16.mxu0 0
        %3124 = vmatpush1.bf16.msra.mxu0 %v2520
        %3125 = vmatprep.subr.bf16.mxu0 0
        %3126 = vmatpush1.bf16.msra.mxu0 %v2521
        %3127 = vmatprep.subr.bf16.mxu0 0
        %3128 = vmatpush1.bf16.msra.mxu0 %v2522
        %3129 = vmatprep.subr.bf16.mxu0 0
        %3130 = vmatpush1.bf16.msra.mxu0 %v2523
        %3131 = vmatprep.subr.bf16.mxu0 0
        %3132 = vmatpush1.bf16.msra.mxu0 %v2524
        %3133 = vmatprep.subr.bf16.mxu0 0
        %3134 = vmatpush1.bf16.msra.mxu0 %v2525
        %3135 = vmatprep.subr.bf16.mxu0 0
        %3136 = vmatpush1.bf16.msra.mxu0 %v2526
        %3137 = vmatprep.subr.bf16.mxu0 0
        %3138 = vmatpush1.bf16.msra.mxu0 %v2527
        %3139 = vmatprep.mubr.bf16.mxu0 %v1415
        %3140 = vmatmul.mubr.bf16.gmra.mrb[0].mxu0 %v1414
        %v3141 = vpop.f32.mrb[0].mxu0
        %v3142 = vadd.f32 %v3045, %v3141
        %v3143 = vpop.f32.mrb[0].mxu0
        %v3144 = vpop.f32.mrb[0].mxu0
        %v3145 = vadd.f32 %v3048, %v3144
        %v3146 = vpop.f32.mrb[0].mxu0
        %3147 = vmatprep.mubr.bf16.mxu0 %v1437
        %3148 = vmatmul.mubr.bf16.gmra.mrb[0].mxu0 %v1436
        %v3149 = vpop.f32.mrb[0].mxu0
        %v3150 = vadd.f32 %v3053, %v3149
        %v3151 = vpop.f32.mrb[0].mxu0
        %v3152 = vpop.f32.mrb[0].mxu0
        %v3153 = vadd.f32 %v3056, %v3152
        %v3154 = vpop.f32.mrb[0].mxu0
        %3155 = vmatprep.mubr.bf16.mxu0 %v1459
        %3156 = vmatmul.mubr.bf16.gmra.mrb[0].mxu0 %v1458
        %v3157 = vpop.f32.mrb[0].mxu0
        %v3158 = vadd.f32 %v3061, %v3157
        %v3159 = vpop.f32.mrb[0].mxu0
        %v3160 = vpop.f32.mrb[0].mxu0
        %v3161 = vadd.f32 %v3064, %v3160
        %v3162 = vpop.f32.mrb[0].mxu0
        %3163 = vmatprep.mubr.bf16.mxu0 %v1481
        %3164 = vmatmul.mubr.bf16.gmra.mrb[0].mxu0 %v1480
        %v3165 = vpop.f32.mrb[0].mxu0
        %v3166 = vadd.f32 %v3069, %v3165
        %v3167 = vpop.f32.mrb[0].mxu0
        %v3168 = vpop.f32.mrb[0].mxu0
        %v3169 = vadd.f32 %v3072, %v3168
        %v3170 = vpop.f32.mrb[0].mxu0
        %3171 = vmatprep.mubr.bf16.mxu0 %v1503
        %3172 = vmatmul.mubr.bf16.gmra.mrb[0].mxu0 %v1502
        %v3173 = vpop.f32.mrb[0].mxu0
        %v3174 = vadd.f32 %v3077, %v3173
        %v3175 = vpop.f32.mrb[0].mxu0
        %v3176 = vpop.f32.mrb[0].mxu0
        %v3177 = vadd.f32 %v3080, %v3176
        %v3178 = vpop.f32.mrb[0].mxu0
        %3179 = vmatprep.mubr.bf16.mxu0 %v1525
        %3180 = vmatmul.mubr.bf16.gmra.mrb[0].mxu0 %v1524
        %v3181 = vpop.f32.mrb[0].mxu0
        %v3182 = vadd.f32 %v3085, %v3181
        %v3183 = vpop.f32.mrb[0].mxu0
        %v3184 = vpop.f32.mrb[0].mxu0
        %v3185 = vadd.f32 %v3088, %v3184
        %v3186 = vpop.f32.mrb[0].mxu0
        %3187 = vmatprep.mubr.bf16.mxu0 %v1547
        %3188 = vmatmul.mubr.bf16.gmra.mrb[0].mxu0 %v1546
        %v3189 = vpop.f32.mrb[0].mxu0
        %v3190 = vadd.f32 %v3093, %v3189
        %v3191 = vpop.f32.mrb[0].mxu0
        %v3192 = vpop.f32.mrb[0].mxu0
        %v3193 = vadd.f32 %v3096, %v3192
        %v3194 = vpop.f32.mrb[0].mxu0
        %3195 = vmatprep.mubr.bf16.mxu0 %v1569
        %3196 = vmatmul.mubr.bf16.gmra.mrb[0].mxu0 %v1568
        %v3197 = vpop.f32.mrb[0].mxu0
        %v3198 = vadd.f32 %v3101, %v3197
        %v3199 = vpop.f32.mrb[0].mxu0
        %v3200 = vpop.f32.mrb[0].mxu0
        %v3201 = vadd.f32 %v3104, %v3200
        %v3202 = vpop.f32.mrb[0].mxu0
        %3203 = vdwg.mxu0
        %3204 = vmatprep.subr.bf16.mxu0 0
        %3205 = vmatpush1.bf16.msra.mxu0 %v2528
        %3206 = vmatprep.subr.bf16.mxu0 0
        %3207 = vmatpush1.bf16.msra.mxu0 %v2529
        %3208 = vmatprep.subr.bf16.mxu0 0
        %3209 = vmatpush1.bf16.msra.mxu0 %v2530
        %3210 = vmatprep.subr.bf16.mxu0 0
        %3211 = vmatpush1.bf16.msra.mxu0 %v2531
        %3212 = vmatprep.subr.bf16.mxu0 0
        %3213 = vmatpush1.bf16.msra.mxu0 %v2532
        %3214 = vmatprep.subr.bf16.mxu0 0
        %3215 = vmatpush1.bf16.msra.mxu0 %v2533
        %3216 = vmatprep.subr.bf16.mxu0 0
        %3217 = vmatpush1.bf16.msra.mxu0 %v2534
        %3218 = vmatprep.subr.bf16.mxu0 0
        %3219 = vmatpush1.bf16.msra.mxu0 %v2535
        %3220 = vmatprep.subr.bf16.mxu0 0
        %3221 = vmatpush1.bf16.msra.mxu0 %v2536
        %3222 = vmatprep.subr.bf16.mxu0 0
        %3223 = vmatpush1.bf16.msra.mxu0 %v2537
        %3224 = vmatprep.subr.bf16.mxu0 0
        %3225 = vmatpush1.bf16.msra.mxu0 %v2538
        %3226 = vmatprep.subr.bf16.mxu0 0
        %3227 = vmatpush1.bf16.msra.mxu0 %v2539
        %3228 = vmatprep.subr.bf16.mxu0 0
        %3229 = vmatpush1.bf16.msra.mxu0 %v2540
        %3230 = vmatprep.subr.bf16.mxu0 0
        %3231 = vmatpush1.bf16.msra.mxu0 %v2541
        %3232 = vmatprep.subr.bf16.mxu0 0
        %3233 = vmatpush1.bf16.msra.mxu0 %v2542
        %3234 = vmatprep.subr.bf16.mxu0 0
        %3235 = vmatpush1.bf16.msra.mxu0 %v2543
        %3236 = vmatprep.mubr.bf16.mxu0 %v1417
        %3237 = vmatmul.mubr.bf16.gmra.mrb[0].mxu0 %v1416
        %v3238 = vpop.f32.mrb[0].mxu0
        %v3239 = vadd.f32 %v3142, %v3238
        %v3240 = vpop.f32.mrb[0].mxu0
        %v3241 = vpop.f32.mrb[0].mxu0
        %v3242 = vadd.f32 %v3145, %v3241
        %v3243 = vpop.f32.mrb[0].mxu0
        %3244 = vmatprep.mubr.bf16.mxu0 %v1439
        %3245 = vmatmul.mubr.bf16.gmra.mrb[0].mxu0 %v1438
        %v3246 = vpop.f32.mrb[0].mxu0
        %v3247 = vadd.f32 %v3150, %v3246
        %v3248 = vpop.f32.mrb[0].mxu0
        %v3249 = vpop.f32.mrb[0].mxu0
        %v3250 = vadd.f32 %v3153, %v3249
        %v3251 = vpop.f32.mrb[0].mxu0
        %3252 = vmatprep.mubr.bf16.mxu0 %v1461
        %3253 = vmatmul.mubr.bf16.gmra.mrb[0].mxu0 %v1460
        %v3254 = vpop.f32.mrb[0].mxu0
        %v3255 = vadd.f32 %v3158, %v3254
        %v3256 = vpop.f32.mrb[0].mxu0
        %v3257 = vpop.f32.mrb[0].mxu0
        %v3258 = vadd.f32 %v3161, %v3257
        %v3259 = vpop.f32.mrb[0].mxu0
        %3260 = vmatprep.mubr.bf16.mxu0 %v1483
        %3261 = vmatmul.mubr.bf16.gmra.mrb[0].mxu0 %v1482
        %v3262 = vpop.f32.mrb[0].mxu0
        %v3263 = vadd.f32 %v3166, %v3262
        %v3264 = vpop.f32.mrb[0].mxu0
        %v3265 = vpop.f32.mrb[0].mxu0
        %v3266 = vadd.f32 %v3169, %v3265
        %v3267 = vpop.f32.mrb[0].mxu0
        %3268 = vmatprep.mubr.bf16.mxu0 %v1505
        %3269 = vmatmul.mubr.bf16.gmra.mrb[0].mxu0 %v1504
        %v3270 = vpop.f32.mrb[0].mxu0
        %v3271 = vadd.f32 %v3174, %v3270
        %v3272 = vpop.f32.mrb[0].mxu0
        %v3273 = vpop.f32.mrb[0].mxu0
        %v3274 = vadd.f32 %v3177, %v3273
        %v3275 = vpop.f32.mrb[0].mxu0
        %3276 = vmatprep.mubr.bf16.mxu0 %v1527
        %3277 = vmatmul.mubr.bf16.gmra.mrb[0].mxu0 %v1526
        %v3278 = vpop.f32.mrb[0].mxu0
        %v3279 = vadd.f32 %v3182, %v3278
        %v3280 = vpop.f32.mrb[0].mxu0
        %v3281 = vpop.f32.mrb[0].mxu0
        %v3282 = vadd.f32 %v3185, %v3281
        %v3283 = vpop.f32.mrb[0].mxu0
        %3284 = vmatprep.mubr.bf16.mxu0 %v1549
        %3285 = vmatmul.mubr.bf16.gmra.mrb[0].mxu0 %v1548
        %v3286 = vpop.f32.mrb[0].mxu0
        %v3287 = vadd.f32 %v3190, %v3286
        %v3288 = vpop.f32.mrb[0].mxu0
        %v3289 = vpop.f32.mrb[0].mxu0
        %v3290 = vadd.f32 %v3193, %v3289
        %v3291 = vpop.f32.mrb[0].mxu0
        %3292 = vmatprep.mubr.bf16.mxu0 %v1571
        %3293 = vmatmul.mubr.bf16.gmra.mrb[0].mxu0 %v1570
        %v3294 = vpop.f32.mrb[0].mxu0
        %v3295 = vadd.f32 %v3198, %v3294
        %v3296 = vpop.f32.mrb[0].mxu0
        %v3297 = vpop.f32.mrb[0].mxu0
        %v3298 = vadd.f32 %v3201, %v3297
        %v3299 = vpop.f32.mrb[0].mxu0
        %3300 = vdwg.mxu0
        %3301 = vmatprep.subr.bf16.mxu0 0
        %3302 = vmatpush1.bf16.msra.mxu0 %v2544
        %3303 = vmatprep.subr.bf16.mxu0 0
        %3304 = vmatpush1.bf16.msra.mxu0 %v2545
        %3305 = vmatprep.subr.bf16.mxu0 0
        %3306 = vmatpush1.bf16.msra.mxu0 %v2546
        %3307 = vmatprep.subr.bf16.mxu0 0
        %3308 = vmatpush1.bf16.msra.mxu0 %v2547
        %3309 = vmatprep.subr.bf16.mxu0 0
        %3310 = vmatpush1.bf16.msra.mxu0 %v2548
        %3311 = vmatprep.subr.bf16.mxu0 0
        %3312 = vmatpush1.bf16.msra.mxu0 %v2549
        %3313 = vmatprep.subr.bf16.mxu0 0
        %3314 = vmatpush1.bf16.msra.mxu0 %v2550
        %3315 = vmatprep.subr.bf16.mxu0 0
        %3316 = vmatpush1.bf16.msra.mxu0 %v2551
        %3317 = vmatprep.subr.bf16.mxu0 0
        %3318 = vmatpush1.bf16.msra.mxu0 %v2552
        %3319 = vmatprep.subr.bf16.mxu0 0
        %3320 = vmatpush1.bf16.msra.mxu0 %v2553
        %3321 = vmatprep.subr.bf16.mxu0 0
        %3322 = vmatpush1.bf16.msra.mxu0 %v2554
        %3323 = vmatprep.subr.bf16.mxu0 0
        %3324 = vmatpush1.bf16.msra.mxu0 %v2555
        %3325 = vmatprep.subr.bf16.mxu0 0
        %3326 = vmatpush1.bf16.msra.mxu0 %v2556
        %3327 = vmatprep.subr.bf16.mxu0 0
        %3328 = vmatpush1.bf16.msra.mxu0 %v2557
        %3329 = vmatprep.subr.bf16.mxu0 0
        %3330 = vmatpush1.bf16.msra.mxu0 %v2558
        %3331 = vmatprep.subr.bf16.mxu0 0
        %3332 = vmatpush1.bf16.msra.mxu0 %v2559
        %3333 = vmatprep.mubr.bf16.mxu0 %v1419
        %3334 = vmatmul.mubr.bf16.gmra.mrb[0].mxu0 %v1418
        %v3335 = vpop.f32.mrb[0].mxu0
        %v3336 = vadd.f32 %v3239, %v3335
        %v3337 = vpop.f32.mrb[0].mxu0
        %v3338 = vpop.f32.mrb[0].mxu0
        %v3339 = vadd.f32 %v3242, %v3338
        %v3340 = vpop.f32.mrb[0].mxu0
        %3341 = vmatprep.mubr.bf16.mxu0 %v1441
        %3342 = vmatmul.mubr.bf16.gmra.mrb[0].mxu0 %v1440
        %v3343 = vpop.f32.mrb[0].mxu0
        %v3344 = vadd.f32 %v3247, %v3343
        %v3345 = vpop.f32.mrb[0].mxu0
        %v3346 = vpop.f32.mrb[0].mxu0
        %v3347 = vadd.f32 %v3250, %v3346
        %v3348 = vpop.f32.mrb[0].mxu0
        %3349 = vmatprep.mubr.bf16.mxu0 %v1463
        %3350 = vmatmul.mubr.bf16.gmra.mrb[0].mxu0 %v1462
        %v3351 = vpop.f32.mrb[0].mxu0
        %v3352 = vadd.f32 %v3255, %v3351
        %v3353 = vpop.f32.mrb[0].mxu0
        %v3354 = vpop.f32.mrb[0].mxu0
        %v3355 = vadd.f32 %v3258, %v3354
        %v3356 = vpop.f32.mrb[0].mxu0
        %3357 = vmatprep.mubr.bf16.mxu0 %v1485
        %3358 = vmatmul.mubr.bf16.gmra.mrb[0].mxu0 %v1484
        %v3359 = vpop.f32.mrb[0].mxu0
        %v3360 = vadd.f32 %v3263, %v3359
        %v3361 = vpop.f32.mrb[0].mxu0
        %v3362 = vpop.f32.mrb[0].mxu0
        %v3363 = vadd.f32 %v3266, %v3362
        %v3364 = vpop.f32.mrb[0].mxu0
        %3365 = vmatprep.mubr.bf16.mxu0 %v1507
        %3366 = vmatmul.mubr.bf16.gmra.mrb[0].mxu0 %v1506
        %v3367 = vpop.f32.mrb[0].mxu0
        %v3368 = vadd.f32 %v3271, %v3367
        %v3369 = vpop.f32.mrb[0].mxu0
        %v3370 = vpop.f32.mrb[0].mxu0
        %v3371 = vadd.f32 %v3274, %v3370
        %v3372 = vpop.f32.mrb[0].mxu0
        %3373 = vmatprep.mubr.bf16.mxu0 %v1529
        %3374 = vmatmul.mubr.bf16.gmra.mrb[0].mxu0 %v1528
        %v3375 = vpop.f32.mrb[0].mxu0
        %v3376 = vadd.f32 %v3279, %v3375
        %v3377 = vpop.f32.mrb[0].mxu0
        %v3378 = vpop.f32.mrb[0].mxu0
        %v3379 = vadd.f32 %v3282, %v3378
        %v3380 = vpop.f32.mrb[0].mxu0
        %3381 = vmatprep.mubr.bf16.mxu0 %v1551
        %3382 = vmatmul.mubr.bf16.gmra.mrb[0].mxu0 %v1550
        %v3383 = vpop.f32.mrb[0].mxu0
        %v3384 = vadd.f32 %v3287, %v3383
        %v3385 = vpop.f32.mrb[0].mxu0
        %v3386 = vpop.f32.mrb[0].mxu0
        %v3387 = vadd.f32 %v3290, %v3386
        %v3388 = vpop.f32.mrb[0].mxu0
        %3389 = vmatprep.mubr.bf16.mxu0 %v1573
        %3390 = vmatmul.mubr.bf16.gmra.mrb[0].mxu0 %v1572
        %v3391 = vpop.f32.mrb[0].mxu0
        %v3392 = vadd.f32 %v3295, %v3391
        %v3393 = vpop.f32.mrb[0].mxu0
        %v3394 = vpop.f32.mrb[0].mxu0
        %v3395 = vadd.f32 %v3298, %v3394
        %v3396 = vpop.f32.mrb[0].mxu0
        %3397 = vdwg.mxu0
        %3398 = vmatprep.subr.bf16.mxu0 0
        %3399 = vmatpush1.bf16.msra.mxu0 %v2560
        %3400 = vmatprep.subr.bf16.mxu0 0
        %3401 = vmatpush1.bf16.msra.mxu0 %v2561
        %3402 = vmatprep.subr.bf16.mxu0 0
        %3403 = vmatpush1.bf16.msra.mxu0 %v2562
        %3404 = vmatprep.subr.bf16.mxu0 0
        %3405 = vmatpush1.bf16.msra.mxu0 %v2563
        %3406 = vmatprep.subr.bf16.mxu0 0
        %3407 = vmatpush1.bf16.msra.mxu0 %v2564
        %3408 = vmatprep.subr.bf16.mxu0 0
        %3409 = vmatpush1.bf16.msra.mxu0 %v2565
        %3410 = vmatprep.subr.bf16.mxu0 0
        %3411 = vmatpush1.bf16.msra.mxu0 %v2566
        %3412 = vmatprep.subr.bf16.mxu0 0
        %3413 = vmatpush1.bf16.msra.mxu0 %v2567
        %3414 = vmatprep.subr.bf16.mxu0 0
        %3415 = vmatpush1.bf16.msra.mxu0 %v2568
        %3416 = vmatprep.subr.bf16.mxu0 0
        %3417 = vmatpush1.bf16.msra.mxu0 %v2569
        %3418 = vmatprep.subr.bf16.mxu0 0
        %3419 = vmatpush1.bf16.msra.mxu0 %v2570
        %3420 = vmatprep.subr.bf16.mxu0 0
        %3421 = vmatpush1.bf16.msra.mxu0 %v2571
        %3422 = vmatprep.subr.bf16.mxu0 0
        %3423 = vmatpush1.bf16.msra.mxu0 %v2572
        %3424 = vmatprep.subr.bf16.mxu0 0
        %3425 = vmatpush1.bf16.msra.mxu0 %v2573
        %3426 = vmatprep.subr.bf16.mxu0 0
        %3427 = vmatpush1.bf16.msra.mxu0 %v2574
        %3428 = vmatprep.subr.bf16.mxu0 0
        %3429 = vmatpush1.bf16.msra.mxu0 %v2575
        %3430 = vmatprep.mubr.bf16.mxu0 %v1421
        %3431 = vmatmul.mubr.bf16.gmra.mrb[0].mxu0 %v1420
        %v3432 = vpop.f32.mrb[0].mxu0
        %v3433 = vadd.f32 %v3336, %v3432
        %v3434 = vpop.f32.mrb[0].mxu0
        %v3435 = vpop.f32.mrb[0].mxu0
        %v3436 = vadd.f32 %v3339, %v3435
        %v3437 = vpop.f32.mrb[0].mxu0
        %3438 = vmatprep.mubr.bf16.mxu0 %v1443
        %3439 = vmatmul.mubr.bf16.gmra.mrb[0].mxu0 %v1442
        %v3440 = vpop.f32.mrb[0].mxu0
        %v3441 = vadd.f32 %v3344, %v3440
        %v3442 = vpop.f32.mrb[0].mxu0
        %v3443 = vpop.f32.mrb[0].mxu0
        %v3444 = vadd.f32 %v3347, %v3443
        %v3445 = vpop.f32.mrb[0].mxu0
        %3446 = vmatprep.mubr.bf16.mxu0 %v1465
        %3447 = vmatmul.mubr.bf16.gmra.mrb[0].mxu0 %v1464
        %v3448 = vpop.f32.mrb[0].mxu0
        %v3449 = vadd.f32 %v3352, %v3448
        %v3450 = vpop.f32.mrb[0].mxu0
        %v3451 = vpop.f32.mrb[0].mxu0
        %v3452 = vadd.f32 %v3355, %v3451
        %v3453 = vpop.f32.mrb[0].mxu0
        %3454 = vmatprep.mubr.bf16.mxu0 %v1487
        %3455 = vmatmul.mubr.bf16.gmra.mrb[0].mxu0 %v1486
        %v3456 = vpop.f32.mrb[0].mxu0
        %v3457 = vadd.f32 %v3360, %v3456
        %v3458 = vpop.f32.mrb[0].mxu0
        %v3459 = vpop.f32.mrb[0].mxu0
        %v3460 = vadd.f32 %v3363, %v3459
        %v3461 = vpop.f32.mrb[0].mxu0
        %3462 = vmatprep.mubr.bf16.mxu0 %v1509
        %3463 = vmatmul.mubr.bf16.gmra.mrb[0].mxu0 %v1508
        %v3464 = vpop.f32.mrb[0].mxu0
        %v3465 = vadd.f32 %v3368, %v3464
        %v3466 = vpop.f32.mrb[0].mxu0
        %v3467 = vpop.f32.mrb[0].mxu0
        %v3468 = vadd.f32 %v3371, %v3467
        %v3469 = vpop.f32.mrb[0].mxu0
        %3470 = vmatprep.mubr.bf16.mxu0 %v1531
        %3471 = vmatmul.mubr.bf16.gmra.mrb[0].mxu0 %v1530
        %v3472 = vpop.f32.mrb[0].mxu0
        %v3473 = vadd.f32 %v3376, %v3472
        %v3474 = vpop.f32.mrb[0].mxu0
        %v3475 = vpop.f32.mrb[0].mxu0
        %v3476 = vadd.f32 %v3379, %v3475
        %v3477 = vpop.f32.mrb[0].mxu0
        %3478 = vmatprep.mubr.bf16.mxu0 %v1553
        %3479 = vmatmul.mubr.bf16.gmra.mrb[0].mxu0 %v1552
        %v3480 = vpop.f32.mrb[0].mxu0
        %v3481 = vadd.f32 %v3384, %v3480
        %v3482 = vpop.f32.mrb[0].mxu0
        %v3483 = vpop.f32.mrb[0].mxu0
        %v3484 = vadd.f32 %v3387, %v3483
        %v3485 = vpop.f32.mrb[0].mxu0
        %3486 = vmatprep.mubr.bf16.mxu0 %v1575
        %3487 = vmatmul.mubr.bf16.gmra.mrb[0].mxu0 %v1574
        %v3488 = vpop.f32.mrb[0].mxu0
        %v3489 = vadd.f32 %v3392, %v3488
        %v3490 = vpop.f32.mrb[0].mxu0
        %v3491 = vpop.f32.mrb[0].mxu0
        %v3492 = vadd.f32 %v3395, %v3491
        %v3493 = vpop.f32.mrb[0].mxu0
        %3494 = vdwg.mxu0
        %3495 = vmatprep.subr.bf16.mxu0 0
        %3496 = vmatpush1.bf16.msra.mxu0 %v2576
        %3497 = vmatprep.subr.bf16.mxu0 0
        %3498 = vmatpush1.bf16.msra.mxu0 %v2577
        %3499 = vmatprep.subr.bf16.mxu0 0
        %3500 = vmatpush1.bf16.msra.mxu0 %v2578
        %3501 = vmatprep.subr.bf16.mxu0 0
        %3502 = vmatpush1.bf16.msra.mxu0 %v2579
        %3503 = vmatprep.subr.bf16.mxu0 0
        %3504 = vmatpush1.bf16.msra.mxu0 %v2580
        %3505 = vmatprep.subr.bf16.mxu0 0
        %3506 = vmatpush1.bf16.msra.mxu0 %v2581
        %3507 = vmatprep.subr.bf16.mxu0 0
        %3508 = vmatpush1.bf16.msra.mxu0 %v2582
        %3509 = vmatprep.subr.bf16.mxu0 0
        %3510 = vmatpush1.bf16.msra.mxu0 %v2583
        %3511 = vmatprep.subr.bf16.mxu0 0
        %3512 = vmatpush1.bf16.msra.mxu0 %v2584
        %3513 = vmatprep.subr.bf16.mxu0 0
        %3514 = vmatpush1.bf16.msra.mxu0 %v2585
        %3515 = vmatprep.subr.bf16.mxu0 0
        %3516 = vmatpush1.bf16.msra.mxu0 %v2586
        %3517 = vmatprep.subr.bf16.mxu0 0
        %3518 = vmatpush1.bf16.msra.mxu0 %v2587
        %3519 = vmatprep.subr.bf16.mxu0 0
        %3520 = vmatpush1.bf16.msra.mxu0 %v2588
        %3521 = vmatprep.subr.bf16.mxu0 0
        %3522 = vmatpush1.bf16.msra.mxu0 %v2589
        %3523 = vmatprep.subr.bf16.mxu0 0
        %3524 = vmatpush1.bf16.msra.mxu0 %v2590
        %3525 = vmatprep.subr.bf16.mxu0 0
        %3526 = vmatpush1.bf16.msra.mxu0 %v2591
        %3527 = vmatprep.mubr.bf16.mxu0 %v1423
        %3528 = vmatmul.mubr.bf16.gmra.mrb[0].mxu0 %v1422
        %v3529 = vpop.f32.mrb[0].mxu0
        %v3530 = vadd.f32 %v3433, %v3529
        %v3531 = vpop.f32.mrb[0].mxu0
        %v3532 = vpop.f32.mrb[0].mxu0
        %v3533 = vadd.f32 %v3436, %v3532
        %v3534 = vpop.f32.mrb[0].mxu0
        %3535 = vmatprep.mubr.bf16.mxu0 %v1445
        %3536 = vmatmul.mubr.bf16.gmra.mrb[0].mxu0 %v1444
        %v3537 = vpop.f32.mrb[0].mxu0
        %v3538 = vadd.f32 %v3441, %v3537
        %v3539 = vpop.f32.mrb[0].mxu0
        %v3540 = vpop.f32.mrb[0].mxu0
        %v3541 = vadd.f32 %v3444, %v3540
        %v3542 = vpop.f32.mrb[0].mxu0
        %3543 = vmatprep.mubr.bf16.mxu0 %v1467
        %3544 = vmatmul.mubr.bf16.gmra.mrb[0].mxu0 %v1466
        %v3545 = vpop.f32.mrb[0].mxu0
        %v3546 = vadd.f32 %v3449, %v3545
        %v3547 = vpop.f32.mrb[0].mxu0
        %v3548 = vpop.f32.mrb[0].mxu0
        %v3549 = vadd.f32 %v3452, %v3548
        %v3550 = vpop.f32.mrb[0].mxu0
        %3551 = vmatprep.mubr.bf16.mxu0 %v1489
        %3552 = vmatmul.mubr.bf16.gmra.mrb[0].mxu0 %v1488
        %v3553 = vpop.f32.mrb[0].mxu0
        %v3554 = vadd.f32 %v3457, %v3553
        %v3555 = vpop.f32.mrb[0].mxu0
        %v3556 = vpop.f32.mrb[0].mxu0
        %v3557 = vadd.f32 %v3460, %v3556
        %v3558 = vpop.f32.mrb[0].mxu0
        %3559 = vmatprep.mubr.bf16.mxu0 %v1511
        %3560 = vmatmul.mubr.bf16.gmra.mrb[0].mxu0 %v1510
        %v3561 = vpop.f32.mrb[0].mxu0
        %v3562 = vadd.f32 %v3465, %v3561
        %v3563 = vpop.f32.mrb[0].mxu0
        %v3564 = vpop.f32.mrb[0].mxu0
        %v3565 = vadd.f32 %v3468, %v3564
        %v3566 = vpop.f32.mrb[0].mxu0
        %3567 = vmatprep.mubr.bf16.mxu0 %v1533
        %3568 = vmatmul.mubr.bf16.gmra.mrb[0].mxu0 %v1532
        %v3569 = vpop.f32.mrb[0].mxu0
        %v3570 = vadd.f32 %v3473, %v3569
        %v3571 = vpop.f32.mrb[0].mxu0
        %v3572 = vpop.f32.mrb[0].mxu0
        %v3573 = vadd.f32 %v3476, %v3572
        %v3574 = vpop.f32.mrb[0].mxu0
        %3575 = vmatprep.mubr.bf16.mxu0 %v1555
        %3576 = vmatmul.mubr.bf16.gmra.mrb[0].mxu0 %v1554
        %v3577 = vpop.f32.mrb[0].mxu0
        %v3578 = vadd.f32 %v3481, %v3577
        %v3579 = vpop.f32.mrb[0].mxu0
        %v3580 = vpop.f32.mrb[0].mxu0
        %v3581 = vadd.f32 %v3484, %v3580
        %v3582 = vpop.f32.mrb[0].mxu0
        %3583 = vmatprep.mubr.bf16.mxu0 %v1577
        %3584 = vmatmul.mubr.bf16.gmra.mrb[0].mxu0 %v1576
        %v3585 = vpop.f32.mrb[0].mxu0
        %v3586 = vadd.f32 %v3489, %v3585
        %v3587 = vpop.f32.mrb[0].mxu0
        %v3588 = vpop.f32.mrb[0].mxu0
        %v3589 = vadd.f32 %v3492, %v3588
        %v3590 = vpop.f32.mrb[0].mxu0
        %3591 = vdwg.mxu0
        %3592 = vmatprep.subr.bf16.mxu0 0
        %3593 = vmatpush1.bf16.msra.mxu0 %v2592
        %3594 = vmatprep.subr.bf16.mxu0 0
        %3595 = vmatpush1.bf16.msra.mxu0 %v2593
        %3596 = vmatprep.subr.bf16.mxu0 0
        %3597 = vmatpush1.bf16.msra.mxu0 %v2594
        %3598 = vmatprep.subr.bf16.mxu0 0
        %3599 = vmatpush1.bf16.msra.mxu0 %v2595
        %3600 = vmatprep.subr.bf16.mxu0 0
        %3601 = vmatpush1.bf16.msra.mxu0 %v2596
        %3602 = vmatprep.subr.bf16.mxu0 0
        %3603 = vmatpush1.bf16.msra.mxu0 %v2597
        %3604 = vmatprep.subr.bf16.mxu0 0
        %3605 = vmatpush1.bf16.msra.mxu0 %v2598
        %3606 = vmatprep.subr.bf16.mxu0 0
        %3607 = vmatpush1.bf16.msra.mxu0 %v2599
        %3608 = vmatprep.subr.bf16.mxu0 0
        %3609 = vmatpush1.bf16.msra.mxu0 %v2600
        %3610 = vmatprep.subr.bf16.mxu0 0
        %3611 = vmatpush1.bf16.msra.mxu0 %v2601
        %3612 = vmatprep.subr.bf16.mxu0 0
        %3613 = vmatpush1.bf16.msra.mxu0 %v2602
        %3614 = vmatprep.subr.bf16.mxu0 0
        %3615 = vmatpush1.bf16.msra.mxu0 %v2603
        %3616 = vmatprep.subr.bf16.mxu0 0
        %3617 = vmatpush1.bf16.msra.mxu0 %v2604
        %3618 = vmatprep.subr.bf16.mxu0 0
        %3619 = vmatpush1.bf16.msra.mxu0 %v2605
        %3620 = vmatprep.subr.bf16.mxu0 0
        %3621 = vmatpush1.bf16.msra.mxu0 %v2606
        %3622 = vmatprep.subr.bf16.mxu0 0
        %3623 = vmatpush1.bf16.msra.mxu0 %v2607
        %3624 = vmatprep.mubr.bf16.mxu0 %v1425
        %3625 = vmatmul.mubr.bf16.gmra.mrb[0].mxu0 %v1424
        %v3626 = vpop.f32.mrb[0].mxu0
        %v3627 = vadd.f32 %v3530, %v3626
        %v3628 = vpop.f32.mrb[0].mxu0
        %v3629 = vpop.f32.mrb[0].mxu0
        %v3630 = vadd.f32 %v3533, %v3629
        %v3631 = vpop.f32.mrb[0].mxu0
        %3632 = vmatprep.mubr.bf16.mxu0 %v1447
        %3633 = vmatmul.mubr.bf16.gmra.mrb[0].mxu0 %v1446
        %v3634 = vpop.f32.mrb[0].mxu0
        %v3635 = vadd.f32 %v3538, %v3634
        %v3636 = vpop.f32.mrb[0].mxu0
        %v3637 = vpop.f32.mrb[0].mxu0
        %v3638 = vadd.f32 %v3541, %v3637
        %v3639 = vpop.f32.mrb[0].mxu0
        %3640 = vmatprep.mubr.bf16.mxu0 %v1469
        %3641 = vmatmul.mubr.bf16.gmra.mrb[0].mxu0 %v1468
        %v3642 = vpop.f32.mrb[0].mxu0
        %v3643 = vadd.f32 %v3546, %v3642
        %v3644 = vpop.f32.mrb[0].mxu0
        %v3645 = vpop.f32.mrb[0].mxu0
        %v3646 = vadd.f32 %v3549, %v3645
        %v3647 = vpop.f32.mrb[0].mxu0
        %3648 = vmatprep.mubr.bf16.mxu0 %v1491
        %3649 = vmatmul.mubr.bf16.gmra.mrb[0].mxu0 %v1490
        %v3650 = vpop.f32.mrb[0].mxu0
        %v3651 = vadd.f32 %v3554, %v3650
        %v3652 = vpop.f32.mrb[0].mxu0
        %v3653 = vpop.f32.mrb[0].mxu0
        %v3654 = vadd.f32 %v3557, %v3653
        %v3655 = vpop.f32.mrb[0].mxu0
        %3656 = vmatprep.mubr.bf16.mxu0 %v1513
        %3657 = vmatmul.mubr.bf16.gmra.mrb[0].mxu0 %v1512
        %v3658 = vpop.f32.mrb[0].mxu0
        %v3659 = vadd.f32 %v3562, %v3658
        %v3660 = vpop.f32.mrb[0].mxu0
        %v3661 = vpop.f32.mrb[0].mxu0
        %v3662 = vadd.f32 %v3565, %v3661
        %v3663 = vpop.f32.mrb[0].mxu0
        %3664 = vmatprep.mubr.bf16.mxu0 %v1535
        %3665 = vmatmul.mubr.bf16.gmra.mrb[0].mxu0 %v1534
        %v3666 = vpop.f32.mrb[0].mxu0
        %v3667 = vadd.f32 %v3570, %v3666
        %v3668 = vpop.f32.mrb[0].mxu0
        %v3669 = vpop.f32.mrb[0].mxu0
        %v3670 = vadd.f32 %v3573, %v3669
        %v3671 = vpop.f32.mrb[0].mxu0
        %3672 = vmatprep.mubr.bf16.mxu0 %v1557
        %3673 = vmatmul.mubr.bf16.gmra.mrb[0].mxu0 %v1556
        %v3674 = vpop.f32.mrb[0].mxu0
        %v3675 = vadd.f32 %v3578, %v3674
        %v3676 = vpop.f32.mrb[0].mxu0
        %v3677 = vpop.f32.mrb[0].mxu0
        %v3678 = vadd.f32 %v3581, %v3677
        %v3679 = vpop.f32.mrb[0].mxu0
        %3680 = vmatprep.mubr.bf16.mxu0 %v1579
        %3681 = vmatmul.mubr.bf16.gmra.mrb[0].mxu0 %v1578
        %v3682 = vpop.f32.mrb[0].mxu0
        %v3683 = vadd.f32 %v3586, %v3682
        %v3684 = vpop.f32.mrb[0].mxu0
        %v3685 = vpop.f32.mrb[0].mxu0
        %v3686 = vadd.f32 %v3589, %v3685
        %v3687 = vpop.f32.mrb[0].mxu0
        %3688 = vdwg.mxu0
        %3689 = vmatprep.subr.bf16.mxu0 0
        %3690 = vmatpush1.bf16.msra.mxu0 %v2608
        %3691 = vmatprep.subr.bf16.mxu0 0
        %3692 = vmatpush1.bf16.msra.mxu0 %v2609
        %3693 = vmatprep.subr.bf16.mxu0 0
        %3694 = vmatpush1.bf16.msra.mxu0 %v2610
        %3695 = vmatprep.subr.bf16.mxu0 0
        %3696 = vmatpush1.bf16.msra.mxu0 %v2611
        %3697 = vmatprep.subr.bf16.mxu0 0
        %3698 = vmatpush1.bf16.msra.mxu0 %v2612
        %3699 = vmatprep.subr.bf16.mxu0 0
        %3700 = vmatpush1.bf16.msra.mxu0 %v2613
        %3701 = vmatprep.subr.bf16.mxu0 0
        %3702 = vmatpush1.bf16.msra.mxu0 %v2614
        %3703 = vmatprep.subr.bf16.mxu0 0
        %3704 = vmatpush1.bf16.msra.mxu0 %v2615
        %3705 = vmatprep.subr.bf16.mxu0 0
        %3706 = vmatpush1.bf16.msra.mxu0 %v2616
        %3707 = vmatprep.subr.bf16.mxu0 0
        %3708 = vmatpush1.bf16.msra.mxu0 %v2617
        %3709 = vmatprep.subr.bf16.mxu0 0
        %3710 = vmatpush1.bf16.msra.mxu0 %v2618
        %3711 = vmatprep.subr.bf16.mxu0 0
        %3712 = vmatpush1.bf16.msra.mxu0 %v2619
        %3713 = vmatprep.subr.bf16.mxu0 0
        %3714 = vmatpush1.bf16.msra.mxu0 %v2620
        %3715 = vmatprep.subr.bf16.mxu0 0
        %3716 = vmatpush1.bf16.msra.mxu0 %v2621
        %3717 = vmatprep.subr.bf16.mxu0 0
        %3718 = vmatpush1.bf16.msra.mxu0 %v2622
        %3719 = vmatprep.subr.bf16.mxu0 0
        %3720 = vmatpush1.bf16.msra.mxu0 %v2623
        %3721 = vmatprep.mubr.bf16.mxu0 %v1427
        %3722 = vmatmul.mubr.bf16.gmra.mrb[0].mxu0 %v1426
        %v3723 = vpop.f32.mrb[0].mxu0
        %v3724 = vadd.f32 %v3627, %v3723
        %v3725 = vpop.f32.mrb[0].mxu0
        %v3726 = vpop.f32.mrb[0].mxu0
        %v3727 = vadd.f32 %v3630, %v3726
        %v3728 = vpop.f32.mrb[0].mxu0
        %3729 = vmatprep.mubr.bf16.mxu0 %v1449
        %3730 = vmatmul.mubr.bf16.gmra.mrb[0].mxu0 %v1448
        %v3731 = vpop.f32.mrb[0].mxu0
        %v3732 = vadd.f32 %v3635, %v3731
        %v3733 = vpop.f32.mrb[0].mxu0
        %v3734 = vpop.f32.mrb[0].mxu0
        %v3735 = vadd.f32 %v3638, %v3734
        %v3736 = vpop.f32.mrb[0].mxu0
        %3737 = vmatprep.mubr.bf16.mxu0 %v1471
        %3738 = vmatmul.mubr.bf16.gmra.mrb[0].mxu0 %v1470
        %v3739 = vpop.f32.mrb[0].mxu0
        %v3740 = vadd.f32 %v3643, %v3739
        %v3741 = vpop.f32.mrb[0].mxu0
        %v3742 = vpop.f32.mrb[0].mxu0
        %v3743 = vadd.f32 %v3646, %v3742
        %v3744 = vpop.f32.mrb[0].mxu0
        %3745 = vmatprep.mubr.bf16.mxu0 %v1493
        %3746 = vmatmul.mubr.bf16.gmra.mrb[0].mxu0 %v1492
        %v3747 = vpop.f32.mrb[0].mxu0
        %v3748 = vadd.f32 %v3651, %v3747
        %v3749 = vpop.f32.mrb[0].mxu0
        %v3750 = vpop.f32.mrb[0].mxu0
        %v3751 = vadd.f32 %v3654, %v3750
        %v3752 = vpop.f32.mrb[0].mxu0
        %3753 = vmatprep.mubr.bf16.mxu0 %v1515
        %3754 = vmatmul.mubr.bf16.gmra.mrb[0].mxu0 %v1514
        %v3755 = vpop.f32.mrb[0].mxu0
        %v3756 = vadd.f32 %v3659, %v3755
        %v3757 = vpop.f32.mrb[0].mxu0
        %v3758 = vpop.f32.mrb[0].mxu0
        %v3759 = vadd.f32 %v3662, %v3758
        %v3760 = vpop.f32.mrb[0].mxu0
        %3761 = vmatprep.mubr.bf16.mxu0 %v1537
        %3762 = vmatmul.mubr.bf16.gmra.mrb[0].mxu0 %v1536
        %v3763 = vpop.f32.mrb[0].mxu0
        %v3764 = vadd.f32 %v3667, %v3763
        %v3765 = vpop.f32.mrb[0].mxu0
        %v3766 = vpop.f32.mrb[0].mxu0
        %v3767 = vadd.f32 %v3670, %v3766
        %v3768 = vpop.f32.mrb[0].mxu0
        %3769 = vmatprep.mubr.bf16.mxu0 %v1559
        %3770 = vmatmul.mubr.bf16.gmra.mrb[0].mxu0 %v1558
        %v3771 = vpop.f32.mrb[0].mxu0
        %v3772 = vadd.f32 %v3675, %v3771
        %v3773 = vpop.f32.mrb[0].mxu0
        %v3774 = vpop.f32.mrb[0].mxu0
        %v3775 = vadd.f32 %v3678, %v3774
        %v3776 = vpop.f32.mrb[0].mxu0
        %3777 = vmatprep.mubr.bf16.mxu0 %v1581
        %3778 = vmatmul.mubr.bf16.gmra.mrb[0].mxu0 %v1580
        %v3779 = vpop.f32.mrb[0].mxu0
        %v3780 = vadd.f32 %v3683, %v3779
        %v3781 = vpop.f32.mrb[0].mxu0
        %v3782 = vpop.f32.mrb[0].mxu0
        %v3783 = vadd.f32 %v3686, %v3782
        %v3784 = vpop.f32.mrb[0].mxu0
        %3785 = vdwg.mxu0
        %3786 = vmatprep.subr.bf16.mxu0 0
        %3787 = vmatpush1.bf16.msra.mxu0 %v2624
        %3788 = vmatprep.subr.bf16.mxu0 0
        %3789 = vmatpush1.bf16.msra.mxu0 %v2625
        %3790 = vmatprep.subr.bf16.mxu0 0
        %3791 = vmatpush1.bf16.msra.mxu0 %v2626
        %3792 = vmatprep.subr.bf16.mxu0 0
        %3793 = vmatpush1.bf16.msra.mxu0 %v2627
        %3794 = vmatprep.subr.bf16.mxu0 0
        %3795 = vmatpush1.bf16.msra.mxu0 %v2628
        %3796 = vmatprep.subr.bf16.mxu0 0
        %3797 = vmatpush1.bf16.msra.mxu0 %v2629
        %3798 = vmatprep.subr.bf16.mxu0 0
        %3799 = vmatpush1.bf16.msra.mxu0 %v2630
        %3800 = vmatprep.subr.bf16.mxu0 0
        %3801 = vmatpush1.bf16.msra.mxu0 %v2631
        %3802 = vmatprep.subr.bf16.mxu0 0
        %3803 = vmatpush1.bf16.msra.mxu0 %v2632
        %3804 = vmatprep.subr.bf16.mxu0 0
        %3805 = vmatpush1.bf16.msra.mxu0 %v2633
        %3806 = vmatprep.subr.bf16.mxu0 0
        %3807 = vmatpush1.bf16.msra.mxu0 %v2634
        %3808 = vmatprep.subr.bf16.mxu0 0
        %3809 = vmatpush1.bf16.msra.mxu0 %v2635
        %3810 = vmatprep.subr.bf16.mxu0 0
        %3811 = vmatpush1.bf16.msra.mxu0 %v2636
        %3812 = vmatprep.subr.bf16.mxu0 0
        %3813 = vmatpush1.bf16.msra.mxu0 %v2637
        %3814 = vmatprep.subr.bf16.mxu0 0
        %3815 = vmatpush1.bf16.msra.mxu0 %v2638
        %3816 = vmatprep.subr.bf16.mxu0 0
        %3817 = vmatpush1.bf16.msra.mxu0 %v2639
        %3818 = vmatprep.mubr.bf16.mxu0 %v1429
        %3819 = vmatmul.mubr.bf16.gmra.mrb[0].mxu0 %v1428
        %v3820 = vpop.f32.mrb[0].mxu0
        %v3821 = vadd.f32 %v3724, %v3820
        %v3822 = vpop.f32.mrb[0].mxu0
        %v3823 = vpop.f32.mrb[0].mxu0
        %v3824 = vadd.f32 %v3727, %v3823
        %v3825 = vpop.f32.mrb[0].mxu0
        %3826 = vmatprep.mubr.bf16.mxu0 %v1451
        %3827 = vmatmul.mubr.bf16.gmra.mrb[0].mxu0 %v1450
        %v3828 = vpop.f32.mrb[0].mxu0
        %v3829 = vadd.f32 %v3732, %v3828
        %v3830 = vpop.f32.mrb[0].mxu0
        %v3831 = vpop.f32.mrb[0].mxu0
        %v3832 = vadd.f32 %v3735, %v3831
        %v3833 = vpop.f32.mrb[0].mxu0
        %3834 = vmatprep.mubr.bf16.mxu0 %v1473
        %3835 = vmatmul.mubr.bf16.gmra.mrb[0].mxu0 %v1472
        %v3836 = vpop.f32.mrb[0].mxu0
        %v3837 = vadd.f32 %v3740, %v3836
        %v3838 = vpop.f32.mrb[0].mxu0
        %v3839 = vpop.f32.mrb[0].mxu0
        %v3840 = vadd.f32 %v3743, %v3839
        %v3841 = vpop.f32.mrb[0].mxu0
        %3842 = vmatprep.mubr.bf16.mxu0 %v1495
        %3843 = vmatmul.mubr.bf16.gmra.mrb[0].mxu0 %v1494
        %v3844 = vpop.f32.mrb[0].mxu0
        %v3845 = vadd.f32 %v3748, %v3844
        %v3846 = vpop.f32.mrb[0].mxu0
        %v3847 = vpop.f32.mrb[0].mxu0
        %v3848 = vadd.f32 %v3751, %v3847
        %v3849 = vpop.f32.mrb[0].mxu0
        %3850 = vmatprep.mubr.bf16.mxu0 %v1517
        %3851 = vmatmul.mubr.bf16.gmra.mrb[0].mxu0 %v1516
        %v3852 = vpop.f32.mrb[0].mxu0
        %v3853 = vadd.f32 %v3756, %v3852
        %v3854 = vpop.f32.mrb[0].mxu0
        %v3855 = vpop.f32.mrb[0].mxu0
        %v3856 = vadd.f32 %v3759, %v3855
        %v3857 = vpop.f32.mrb[0].mxu0
        %3858 = vmatprep.mubr.bf16.mxu0 %v1539
        %3859 = vmatmul.mubr.bf16.gmra.mrb[0].mxu0 %v1538
        %v3860 = vpop.f32.mrb[0].mxu0
        %v3861 = vadd.f32 %v3764, %v3860
        %v3862 = vpop.f32.mrb[0].mxu0
        %v3863 = vpop.f32.mrb[0].mxu0
        %v3864 = vadd.f32 %v3767, %v3863
        %v3865 = vpop.f32.mrb[0].mxu0
        %3866 = vmatprep.mubr.bf16.mxu0 %v1561
        %3867 = vmatmul.mubr.bf16.gmra.mrb[0].mxu0 %v1560
        %v3868 = vpop.f32.mrb[0].mxu0
        %v3869 = vadd.f32 %v3772, %v3868
        %v3870 = vpop.f32.mrb[0].mxu0
        %v3871 = vpop.f32.mrb[0].mxu0
        %v3872 = vadd.f32 %v3775, %v3871
        %v3873 = vpop.f32.mrb[0].mxu0
        %3874 = vmatprep.mubr.bf16.mxu0 %v1583
        %3875 = vmatmul.mubr.bf16.gmra.mrb[0].mxu0 %v1582
        %v3876 = vpop.f32.mrb[0].mxu0
        %v3877 = vadd.f32 %v3780, %v3876
        %v3878 = vpop.f32.mrb[0].mxu0
        %v3879 = vpop.f32.mrb[0].mxu0
        %v3880 = vadd.f32 %v3783, %v3879
        %v3881 = vpop.f32.mrb[0].mxu0
        %3882 = vdwg.mxu0
        %vm3883 = vcmp.gt.f32.partialorder %v3821, 20.0
        %vm3884 = vcmp.gt.f32.partialorder %v3824, 20.0
        %vm3885 = vcmp.gt.f32.partialorder %v3829, 20.0
        %vm3886 = vcmp.gt.f32.partialorder %v3832, 20.0
        %vm3887 = vcmp.gt.f32.partialorder %v3837, 20.0
        %vm3888 = vcmp.gt.f32.partialorder %v3840, 20.0
        %vm3889 = vcmp.gt.f32.partialorder %v3845, 20.0
        %vm3890 = vcmp.gt.f32.partialorder %v3848, 20.0
        %vm3891 = vcmp.gt.f32.partialorder %v3853, 20.0
        %vm3892 = vcmp.gt.f32.partialorder %v3856, 20.0
        %vm3893 = vcmp.gt.f32.partialorder %v3861, 20.0
        %vm3894 = vcmp.gt.f32.partialorder %v3864, 20.0
        %vm3895 = vcmp.gt.f32.partialorder %v3869, 20.0
        %vm3896 = vcmp.gt.f32.partialorder %v3872, 20.0
        %vm3897 = vcmp.gt.f32.partialorder %v3877, 20.0
        %vm3898 = vcmp.gt.f32.partialorder %v3880, 20.0
        %v3899 = vmin.f32 %v3821, 20.0
        %v3900 = vmin.f32 %v3824, 20.0
        %v3901 = vmin.f32 %v3829, 20.0
        %v3902 = vmin.f32 %v3832, 20.0
        %v3903 = vmin.f32 %v3837, 20.0
        %v3904 = vmin.f32 %v3840, 20.0
        %v3905 = vmin.f32 %v3845, 20.0
        %v3906 = vmin.f32 %v3848, 20.0
        %v3907 = vmin.f32 %v3853, 20.0
        %v3908 = vmin.f32 %v3856, 20.0
        %v3909 = vmin.f32 %v3861, 20.0
        %v3910 = vmin.f32 %v3864, 20.0
        %v3911 = vmin.f32 %v3869, 20.0
        %v3912 = vmin.f32 %v3872, 20.0
        %v3913 = vmin.f32 %v3877, 20.0
        %v3914 = vmin.f32 %v3880, 20.0
        %v3915 = vmul.f32 %v3899, 1.442695
        %v3916 = vpow.pop %v3915
        %v3917 = vmul.f32 %v3900, 1.442695
        %v3918 = vpow.pop %v3917
        %v3919 = vmul.f32 %v3901, 1.442695
        %v3920 = vpow.pop %v3919
        %v3921 = vmul.f32 %v3902, 1.442695
        %v3922 = vpow.pop %v3921
        %v3923 = vmul.f32 %v3903, 1.442695
        %v3924 = vpow.pop %v3923
        %v3925 = vmul.f32 %v3904, 1.442695
        %v3926 = vpow.pop %v3925
        %v3927 = vmul.f32 %v3905, 1.442695
        %v3928 = vpow.pop %v3927
        %v3929 = vmul.f32 %v3906, 1.442695
        %v3930 = vpow.pop %v3929
        %v3931 = vmul.f32 %v3907, 1.442695
        %v3932 = vpow.pop %v3931
        %v3933 = vmul.f32 %v3908, 1.442695
        %v3934 = vpow.pop %v3933
        %v3935 = vmul.f32 %v3909, 1.442695
        %v3936 = vpow.pop %v3935
        %v3937 = vmul.f32 %v3910, 1.442695
        %v3938 = vpow.pop %v3937
        %v3939 = vmul.f32 %v3911, 1.442695
        %v3940 = vpow.pop %v3939
        %v3941 = vmul.f32 %v3912, 1.442695
        %v3942 = vpow.pop %v3941
        %v3943 = vmul.f32 %v3913, 1.442695
        %v3944 = vpow.pop %v3943
        %v3945 = vmul.f32 %v3914, 1.442695
        %v3946 = vpow.pop %v3945
        %v3947 = vadd.f32 %v3916, 1.0
        %v3948 = vlog2.pop %v3947
        %v3949 = vmul.f32 %v3948, 0.6931472
        %v3950 = vmul.f32 -0.5, %v3916
        %v3951 = vadd.f32 %v3950, 1.0
        %v3952 = vmul.f32 %v3951, %v3916
        %v3953 = vand.u32 2147483647, %v3916
        %vm3954 = vcmp.lt.f32.partialorder %v3953, 0.0004427343
        %v3955 = vsel %vm3954, %v3952, %v3949
        %v3956 = vadd.f32 %v3918, 1.0
        %v3957 = vlog2.pop %v3956
        %v3958 = vmul.f32 %v3957, 0.6931472
        %v3959 = vmul.f32 -0.5, %v3918
        %v3960 = vadd.f32 %v3959, 1.0
        %v3961 = vmul.f32 %v3960, %v3918
        %v3962 = vand.u32 2147483647, %v3918
        %vm3963 = vcmp.lt.f32.partialorder %v3962, 0.0004427343
        %v3964 = vsel %vm3963, %v3961, %v3958
        %v3965 = vadd.f32 %v3920, 1.0
        %v3966 = vlog2.pop %v3965
        %v3967 = vmul.f32 %v3966, 0.6931472
        %v3968 = vmul.f32 -0.5, %v3920
        %v3969 = vadd.f32 %v3968, 1.0
        %v3970 = vmul.f32 %v3969, %v3920
        %v3971 = vand.u32 2147483647, %v3920
        %vm3972 = vcmp.lt.f32.partialorder %v3971, 0.0004427343
        %v3973 = vsel %vm3972, %v3970, %v3967
        %v3974 = vadd.f32 %v3922, 1.0
        %v3975 = vlog2.pop %v3974
        %v3976 = vmul.f32 %v3975, 0.6931472
        %v3977 = vmul.f32 -0.5, %v3922
        %v3978 = vadd.f32 %v3977, 1.0
        %v3979 = vmul.f32 %v3978, %v3922
        %v3980 = vand.u32 2147483647, %v3922
        %vm3981 = vcmp.lt.f32.partialorder %v3980, 0.0004427343
        %v3982 = vsel %vm3981, %v3979, %v3976
        %v3983 = vadd.f32 %v3924, 1.0
        %v3984 = vlog2.pop %v3983
        %v3985 = vmul.f32 %v3984, 0.6931472
        %v3986 = vmul.f32 -0.5, %v3924
        %v3987 = vadd.f32 %v3986, 1.0
        %v3988 = vmul.f32 %v3987, %v3924
        %v3989 = vand.u32 2147483647, %v3924
        %vm3990 = vcmp.lt.f32.partialorder %v3989, 0.0004427343
        %v3991 = vsel %vm3990, %v3988, %v3985
        %v3992 = vadd.f32 %v3926, 1.0
        %v3993 = vlog2.pop %v3992
        %v3994 = vmul.f32 %v3993, 0.6931472
        %v3995 = vmul.f32 -0.5, %v3926
        %v3996 = vadd.f32 %v3995, 1.0
        %v3997 = vmul.f32 %v3996, %v3926
        %v3998 = vand.u32 2147483647, %v3926
        %vm3999 = vcmp.lt.f32.partialorder %v3998, 0.0004427343
        %v4000 = vsel %vm3999, %v3997, %v3994
        %v4001 = vadd.f32 %v3928, 1.0
        %v4002 = vlog2.pop %v4001
        %v4003 = vmul.f32 %v4002, 0.6931472
        %v4004 = vmul.f32 -0.5, %v3928
        %v4005 = vadd.f32 %v4004, 1.0
        %v4006 = vmul.f32 %v4005, %v3928
        %v4007 = vand.u32 2147483647, %v3928
        %vm4008 = vcmp.lt.f32.partialorder %v4007, 0.0004427343
        %v4009 = vsel %vm4008, %v4006, %v4003
        %v4010 = vadd.f32 %v3930, 1.0
        %v4011 = vlog2.pop %v4010
        %v4012 = vmul.f32 %v4011, 0.6931472
        %v4013 = vmul.f32 -0.5, %v3930
        %v4014 = vadd.f32 %v4013, 1.0
        %v4015 = vmul.f32 %v4014, %v3930
        %v4016 = vand.u32 2147483647, %v3930
        %vm4017 = vcmp.lt.f32.partialorder %v4016, 0.0004427343
        %v4018 = vsel %vm4017, %v4015, %v4012
        %v4019 = vadd.f32 %v3932, 1.0
        %v4020 = vlog2.pop %v4019
        %v4021 = vmul.f32 %v4020, 0.6931472
        %v4022 = vmul.f32 -0.5, %v3932
        %v4023 = vadd.f32 %v4022, 1.0
        %v4024 = vmul.f32 %v4023, %v3932
        %v4025 = vand.u32 2147483647, %v3932
        %vm4026 = vcmp.lt.f32.partialorder %v4025, 0.0004427343
        %v4027 = vsel %vm4026, %v4024, %v4021
        %v4028 = vadd.f32 %v3934, 1.0
        %v4029 = vlog2.pop %v4028
        %v4030 = vmul.f32 %v4029, 0.6931472
        %v4031 = vmul.f32 -0.5, %v3934
        %v4032 = vadd.f32 %v4031, 1.0
        %v4033 = vmul.f32 %v4032, %v3934
        %v4034 = vand.u32 2147483647, %v3934
        %vm4035 = vcmp.lt.f32.partialorder %v4034, 0.0004427343
        %v4036 = vsel %vm4035, %v4033, %v4030
        %v4037 = vadd.f32 %v3936, 1.0
        %v4038 = vlog2.pop %v4037
        %v4039 = vmul.f32 %v4038, 0.6931472
        %v4040 = vmul.f32 -0.5, %v3936
        %v4041 = vadd.f32 %v4040, 1.0
        %v4042 = vmul.f32 %v4041, %v3936
        %v4043 = vand.u32 2147483647, %v3936
        %vm4044 = vcmp.lt.f32.partialorder %v4043, 0.0004427343
        %v4045 = vsel %vm4044, %v4042, %v4039
        %v4046 = vadd.f32 %v3938, 1.0
        %v4047 = vlog2.pop %v4046
        %v4048 = vmul.f32 %v4047, 0.6931472
        %v4049 = vmul.f32 -0.5, %v3938
        %v4050 = vadd.f32 %v4049, 1.0
        %v4051 = vmul.f32 %v4050, %v3938
        %v4052 = vand.u32 2147483647, %v3938
        %vm4053 = vcmp.lt.f32.partialorder %v4052, 0.0004427343
        %v4054 = vsel %vm4053, %v4051, %v4048
        %v4055 = vadd.f32 %v3940, 1.0
        %v4056 = vlog2.pop %v4055
        %v4057 = vmul.f32 %v4056, 0.6931472
        %v4058 = vmul.f32 -0.5, %v3940
        %v4059 = vadd.f32 %v4058, 1.0
        %v4060 = vmul.f32 %v4059, %v3940
        %v4061 = vand.u32 2147483647, %v3940
        %vm4062 = vcmp.lt.f32.partialorder %v4061, 0.0004427343
        %v4063 = vsel %vm4062, %v4060, %v4057
        %v4064 = vadd.f32 %v3942, 1.0
        %v4065 = vlog2.pop %v4064
        %v4066 = vmul.f32 %v4065, 0.6931472
        %v4067 = vmul.f32 -0.5, %v3942
        %v4068 = vadd.f32 %v4067, 1.0
        %v4069 = vmul.f32 %v4068, %v3942
        %v4070 = vand.u32 2147483647, %v3942
        %vm4071 = vcmp.lt.f32.partialorder %v4070, 0.0004427343
        %v4072 = vsel %vm4071, %v4069, %v4066
        %v4073 = vadd.f32 %v3944, 1.0
        %v4074 = vlog2.pop %v4073
        %v4075 = vmul.f32 %v4074, 0.6931472
        %v4076 = vmul.f32 -0.5, %v3944
        %v4077 = vadd.f32 %v4076, 1.0
        %v4078 = vmul.f32 %v4077, %v3944
        %v4079 = vand.u32 2147483647, %v3944
        %vm4080 = vcmp.lt.f32.partialorder %v4079, 0.0004427343
        %v4081 = vsel %vm4080, %v4078, %v4075
        %v4082 = vadd.f32 %v3946, 1.0
        %v4083 = vlog2.pop %v4082
        %v4084 = vmul.f32 %v4083, 0.6931472
        %v4085 = vmul.f32 -0.5, %v3946
        %v4086 = vadd.f32 %v4085, 1.0
        %v4087 = vmul.f32 %v4086, %v3946
        %v4088 = vand.u32 2147483647, %v3946
        %vm4089 = vcmp.lt.f32.partialorder %v4088, 0.0004427343
        %v4090 = vsel %vm4089, %v4087, %v4084
        %v4091 = vsel %vm3883, %v3821, %v3955
        %v4092 = vsel %vm3884, %v3824, %v3964
        %v4093 = vsel %vm3885, %v3829, %v3973
        %v4094 = vsel %vm3886, %v3832, %v3982
        %v4095 = vsel %vm3887, %v3837, %v3991
        %v4096 = vsel %vm3888, %v3840, %v4000
        %v4097 = vsel %vm3889, %v3845, %v4009
        %v4098 = vsel %vm3890, %v3848, %v4018
        %v4099 = vsel %vm3891, %v3853, %v4027
        %v4100 = vsel %vm3892, %v3856, %v4036
        %v4101 = vsel %vm3893, %v3861, %v4045
        %v4102 = vsel %vm3894, %v3864, %v4054
        %v4103 = vsel %vm3895, %v3869, %v4063
        %v4104 = vsel %vm3896, %v3872, %v4072
        %v4105 = vsel %vm3897, %v3877, %v4081
        %v4106 = vsel %vm3898, %v3880, %v4090
        %v4107 = vld [vmem:[#allocation7] sm:$0xff]
        %v4108 = vld [vmem:[#allocation7 + $0x8] sm:$0xff]
        %v4109 = vld [vmem:[#allocation7 + $0x10] sm:$0xff]
        %v4110 = vld [vmem:[#allocation7 + $0x18] sm:$0xff]
        %v4111 = vld [vmem:[#allocation7 + $0x20] sm:$0xff]
        %v4112 = vld [vmem:[#allocation7 + $0x28] sm:$0xff]
        %v4113 = vld [vmem:[#allocation7 + $0x30] sm:$0xff]
        %v4114 = vld [vmem:[#allocation7 + $0x38] sm:$0xff]
        %v4115 = vld [vmem:[#allocation7 + $0x40] sm:$0xff]
        %v4116 = vld [vmem:[#allocation7 + $0x48] sm:$0xff]
        %v4117 = vld [vmem:[#allocation7 + $0x50] sm:$0xff]
        %v4118 = vld [vmem:[#allocation7 + $0x58] sm:$0xff]
        %v4119 = vld [vmem:[#allocation7 + $0x60] sm:$0xff]
        %v4120 = vld [vmem:[#allocation7 + $0x68] sm:$0xff]
        %v4121 = vld [vmem:[#allocation7 + $0x70] sm:$0xff]
        %v4122 = vld [vmem:[#allocation7 + $0x78] sm:$0xff]
        %v4123 = vlaneseq
        %v4124 = vshrl.u32 %v4123, 7
        %v4125 = vsub.s32 0, %v4124
        %v4126 = vrot.slane %v344, %v4125
        %4127 = vmatprep.subr.mxu0 0.0
        %4128 = vmatpush1.msra.mxu0 %v4107
        %4129 = vmatprep.subr.mxu0 0.0
        %4130 = vmatpush1.msra.mxu0 %v4108
        %4131 = vmatprep.subr.mxu0 0.0
        %4132 = vmatpush1.msra.mxu0 %v4109
        %4133 = vmatprep.subr.mxu0 0.0
        %4134 = vmatpush1.msra.mxu0 %v4110
        %4135 = vmatprep.subr.mxu0 0.0
        %4136 = vmatpush1.msra.mxu0 %v4111
        %4137 = vmatprep.subr.mxu0 0.0
        %4138 = vmatpush1.msra.mxu0 %v4112
        %4139 = vmatprep.subr.mxu0 0.0
        %4140 = vmatpush1.msra.mxu0 %v4113
        %4141 = vmatprep.subr.mxu0 0.0
        %4142 = vmatpush1.msra.mxu0 %v4114
        %4143 = vmatprep.subr.mxu0 0.0
        %4144 = vmatpush1.msra.mxu0 %v4115
        %4145 = vmatprep.subr.mxu0 0.0
        %4146 = vmatpush1.msra.mxu0 %v4116
        %4147 = vmatprep.subr.mxu0 0.0
        %4148 = vmatpush1.msra.mxu0 %v4117
        %4149 = vmatprep.subr.mxu0 0.0
        %4150 = vmatpush1.msra.mxu0 %v4118
        %4151 = vmatprep.subr.mxu0 0.0
        %4152 = vmatpush1.msra.mxu0 %v4119
        %4153 = vmatprep.subr.mxu0 0.0
        %4154 = vmatpush1.msra.mxu0 %v4120
        %4155 = vmatprep.subr.mxu0 0.0
        %4156 = vmatpush1.msra.mxu0 %v4121
        %4157 = vmatprep.subr.mxu0 0.0
        %4158 = vmatpush1.msra.mxu0 %v4122
        %4159 = vmatprep.subr.mxu0 0.0
        %4160 = vmatpush1.msra.mxu0 0.0
        %4161 = vmatprep.subr.mxu0 0.0
        %4162 = vmatpush1.msra.mxu0 0.0
        %4163 = vmatprep.subr.mxu0 0.0
        %4164 = vmatpush1.msra.mxu0 0.0
        %4165 = vmatprep.subr.mxu0 0.0
        %4166 = vmatpush1.msra.mxu0 0.0
        %4167 = vmatprep.subr.mxu0 0.0
        %4168 = vmatpush1.msra.mxu0 0.0
        %4169 = vmatprep.subr.mxu0 0.0
        %4170 = vmatpush1.msra.mxu0 0.0
        %4171 = vmatprep.subr.mxu0 0.0
        %4172 = vmatpush1.msra.mxu0 0.0
        %4173 = vmatprep.subr.mxu0 0.0
        %4174 = vmatpush1.msra.mxu0 0.0
        %4175 = vmatprep.subr.mxu0 0.0
        %4176 = vmatpush1.msra.mxu0 0.0
        %4177 = vmatprep.subr.mxu0 0.0
        %4178 = vmatpush1.msra.mxu0 0.0
        %4179 = vmatprep.subr.mxu0 0.0
        %4180 = vmatpush1.msra.mxu0 0.0
        %4181 = vmatprep.subr.mxu0 0.0
        %4182 = vmatpush1.msra.mxu0 0.0
        %4183 = vmatprep.subr.mxu0 0.0
        %4184 = vmatpush1.msra.mxu0 0.0
        %4185 = vmatprep.subr.mxu0 0.0
        %4186 = vmatpush1.msra.mxu0 0.0
        %4187 = vmatprep.subr.mxu0 0.0
        %4188 = vmatpush1.msra.mxu0 0.0
        %4189 = vmatprep.subr.mxu0 0.0
        %4190 = vmatpush1.msra.mxu0 0.0
        %4191 = vmatprep.mubr.f32.mxu0 0.0
        %4192 = vmatmul.mubr.f32.gmra.mrb[0].mxu0 %v4091
        %v4193 = vpop.f32.mrb[0].mxu0
        %v4194 = vadd.f32 %v4126, %v4193
        %v4195 = vpop.f32.mrb[0].mxu0
        %4196 = vmatprep.mubr.f32.mxu0 0.0
        %4197 = vmatmul.mubr.f32.gmra.mrb[0].mxu0 %v4092
        %v4198 = vpop.f32.mrb[0].mxu0
        %v4199 = vadd.f32 %v4126, %v4198
        %v4200 = vpop.f32.mrb[0].mxu0
        %4201 = vmatprep.mubr.f32.mxu0 0.0
        %4202 = vmatmul.mubr.f32.gmra.mrb[0].mxu0 %v4093
        %v4203 = vpop.f32.mrb[0].mxu0
        %v4204 = vadd.f32 %v4126, %v4203
        %v4205 = vpop.f32.mrb[0].mxu0
        %4206 = vmatprep.mubr.f32.mxu0 0.0
        %4207 = vmatmul.mubr.f32.gmra.mrb[0].mxu0 %v4094
        %v4208 = vpop.f32.mrb[0].mxu0
        %v4209 = vadd.f32 %v4126, %v4208
        %v4210 = vpop.f32.mrb[0].mxu0
        %4211 = vmatprep.mubr.f32.mxu0 0.0
        %4212 = vmatmul.mubr.f32.gmra.mrb[0].mxu0 %v4095
        %v4213 = vpop.f32.mrb[0].mxu0
        %v4214 = vadd.f32 %v4126, %v4213
        %v4215 = vpop.f32.mrb[0].mxu0
        %4216 = vmatprep.mubr.f32.mxu0 0.0
        %4217 = vmatmul.mubr.f32.gmra.mrb[0].mxu0 %v4096
        %v4218 = vpop.f32.mrb[0].mxu0
        %v4219 = vadd.f32 %v4126, %v4218
        %v4220 = vpop.f32.mrb[0].mxu0
        %4221 = vmatprep.mubr.f32.mxu0 0.0
        %4222 = vmatmul.mubr.f32.gmra.mrb[0].mxu0 %v4097
        %v4223 = vpop.f32.mrb[0].mxu0
        %v4224 = vadd.f32 %v4126, %v4223
        %v4225 = vpop.f32.mrb[0].mxu0
        %4226 = vmatprep.mubr.f32.mxu0 0.0
        %4227 = vmatmul.mubr.f32.gmra.mrb[0].mxu0 %v4098
        %v4228 = vpop.f32.mrb[0].mxu0
        %v4229 = vadd.f32 %v4126, %v4228
        %v4230 = vpop.f32.mrb[0].mxu0
        %4231 = vmatprep.mubr.f32.mxu0 0.0
        %4232 = vmatmul.mubr.f32.gmra.mrb[0].mxu0 %v4099
        %v4233 = vpop.f32.mrb[0].mxu0
        %v4234 = vadd.f32 %v4126, %v4233
        %v4235 = vpop.f32.mrb[0].mxu0
        %4236 = vmatprep.mubr.f32.mxu0 0.0
        %4237 = vmatmul.mubr.f32.gmra.mrb[0].mxu0 %v4100
        %v4238 = vpop.f32.mrb[0].mxu0
        %v4239 = vadd.f32 %v4126, %v4238
        %v4240 = vpop.f32.mrb[0].mxu0
        %4241 = vmatprep.mubr.f32.mxu0 0.0
        %4242 = vmatmul.mubr.f32.gmra.mrb[0].mxu0 %v4101
        %v4243 = vpop.f32.mrb[0].mxu0
        %v4244 = vadd.f32 %v4126, %v4243
        %v4245 = vpop.f32.mrb[0].mxu0
        %4246 = vmatprep.mubr.f32.mxu0 0.0
        %4247 = vmatmul.mubr.f32.gmra.mrb[0].mxu0 %v4102
        %v4248 = vpop.f32.mrb[0].mxu0
        %v4249 = vadd.f32 %v4126, %v4248
        %v4250 = vpop.f32.mrb[0].mxu0
        %4251 = vmatprep.mubr.f32.mxu0 0.0
        %4252 = vmatmul.mubr.f32.gmra.mrb[0].mxu0 %v4103
        %v4253 = vpop.f32.mrb[0].mxu0
        %v4254 = vadd.f32 %v4126, %v4253
        %v4255 = vpop.f32.mrb[0].mxu0
        %4256 = vmatprep.mubr.f32.mxu0 0.0
        %4257 = vmatmul.mubr.f32.gmra.mrb[0].mxu0 %v4104
        %v4258 = vpop.f32.mrb[0].mxu0
        %v4259 = vadd.f32 %v4126, %v4258
        %v4260 = vpop.f32.mrb[0].mxu0
        %4261 = vmatprep.mubr.f32.mxu0 0.0
        %4262 = vmatmul.mubr.f32.gmra.mrb[0].mxu0 %v4105
        %v4263 = vpop.f32.mrb[0].mxu0
        %v4264 = vadd.f32 %v4126, %v4263
        %v4265 = vpop.f32.mrb[0].mxu0
        %4266 = vmatprep.mubr.f32.mxu0 0.0
        %4267 = vmatmul.mubr.f32.gmra.mrb[0].mxu0 %v4106
        %v4268 = vpop.f32.mrb[0].mxu0
        %v4269 = vadd.f32 %v4126, %v4268
        %v4270 = vpop.f32.mrb[0].mxu0
        %4271 = vdwg.mxu0
        %vm4272 = vcmp.gt.f32.partialorder %v4194, 20.0
        %vm4273 = vcmp.gt.f32.partialorder %v4199, 20.0
        %vm4274 = vcmp.gt.f32.partialorder %v4204, 20.0
        %vm4275 = vcmp.gt.f32.partialorder %v4209, 20.0
        %vm4276 = vcmp.gt.f32.partialorder %v4214, 20.0
        %vm4277 = vcmp.gt.f32.partialorder %v4219, 20.0
        %vm4278 = vcmp.gt.f32.partialorder %v4224, 20.0
        %vm4279 = vcmp.gt.f32.partialorder %v4229, 20.0
        %vm4280 = vcmp.gt.f32.partialorder %v4234, 20.0
        %vm4281 = vcmp.gt.f32.partialorder %v4239, 20.0
        %vm4282 = vcmp.gt.f32.partialorder %v4244, 20.0
        %vm4283 = vcmp.gt.f32.partialorder %v4249, 20.0
        %vm4284 = vcmp.gt.f32.partialorder %v4254, 20.0
        %vm4285 = vcmp.gt.f32.partialorder %v4259, 20.0
        %vm4286 = vcmp.gt.f32.partialorder %v4264, 20.0
        %vm4287 = vcmp.gt.f32.partialorder %v4269, 20.0
        %v4288 = vmin.f32 %v4194, 20.0
        %v4289 = vmin.f32 %v4199, 20.0
        %v4290 = vmin.f32 %v4204, 20.0
        %v4291 = vmin.f32 %v4209, 20.0
        %v4292 = vmin.f32 %v4214, 20.0
        %v4293 = vmin.f32 %v4219, 20.0
        %v4294 = vmin.f32 %v4224, 20.0
        %v4295 = vmin.f32 %v4229, 20.0
        %v4296 = vmin.f32 %v4234, 20.0
        %v4297 = vmin.f32 %v4239, 20.0
        %v4298 = vmin.f32 %v4244, 20.0
        %v4299 = vmin.f32 %v4249, 20.0
        %v4300 = vmin.f32 %v4254, 20.0
        %v4301 = vmin.f32 %v4259, 20.0
        %v4302 = vmin.f32 %v4264, 20.0
        %v4303 = vmin.f32 %v4269, 20.0
        %v4304 = vmul.f32 %v4288, 1.442695
        %v4305 = vpow.pop %v4304
        %v4306 = vmul.f32 %v4289, 1.442695
        %v4307 = vpow.pop %v4306
        %v4308 = vmul.f32 %v4290, 1.442695
        %v4309 = vpow.pop %v4308
        %v4310 = vmul.f32 %v4291, 1.442695
        %v4311 = vpow.pop %v4310
        %v4312 = vmul.f32 %v4292, 1.442695
        %v4313 = vpow.pop %v4312
        %v4314 = vmul.f32 %v4293, 1.442695
        %v4315 = vpow.pop %v4314
        %v4316 = vmul.f32 %v4294, 1.442695
        %v4317 = vpow.pop %v4316
        %v4318 = vmul.f32 %v4295, 1.442695
        %v4319 = vpow.pop %v4318
        %v4320 = vmul.f32 %v4296, 1.442695
        %v4321 = vpow.pop %v4320
        %v4322 = vmul.f32 %v4297, 1.442695
        %v4323 = vpow.pop %v4322
        %v4324 = vmul.f32 %v4298, 1.442695
        %v4325 = vpow.pop %v4324
        %v4326 = vmul.f32 %v4299, 1.442695
        %v4327 = vpow.pop %v4326
        %v4328 = vmul.f32 %v4300, 1.442695
        %v4329 = vpow.pop %v4328
        %v4330 = vmul.f32 %v4301, 1.442695
        %v4331 = vpow.pop %v4330
        %v4332 = vmul.f32 %v4302, 1.442695
        %v4333 = vpow.pop %v4332
        %v4334 = vmul.f32 %v4303, 1.442695
        %v4335 = vpow.pop %v4334
        %v4336 = vadd.f32 %v4305, 1.0
        %v4337 = vlog2.pop %v4336
        %v4338 = vmul.f32 %v4337, 0.6931472
        %v4339 = vmul.f32 -0.5, %v4305
        %v4340 = vadd.f32 %v4339, 1.0
        %v4341 = vmul.f32 %v4340, %v4305
        %v4342 = vand.u32 2147483647, %v4305
        %vm4343 = vcmp.lt.f32.partialorder %v4342, 0.0004427343
        %v4344 = vsel %vm4343, %v4341, %v4338
        %v4345 = vadd.f32 %v4307, 1.0
        %v4346 = vlog2.pop %v4345
        %v4347 = vmul.f32 %v4346, 0.6931472
        %v4348 = vmul.f32 -0.5, %v4307
        %v4349 = vadd.f32 %v4348, 1.0
        %v4350 = vmul.f32 %v4349, %v4307
        %v4351 = vand.u32 2147483647, %v4307
        %vm4352 = vcmp.lt.f32.partialorder %v4351, 0.0004427343
        %v4353 = vsel %vm4352, %v4350, %v4347
        %v4354 = vadd.f32 %v4309, 1.0
        %v4355 = vlog2.pop %v4354
        %v4356 = vmul.f32 %v4355, 0.6931472
        %v4357 = vmul.f32 -0.5, %v4309
        %v4358 = vadd.f32 %v4357, 1.0
        %v4359 = vmul.f32 %v4358, %v4309
        %v4360 = vand.u32 2147483647, %v4309
        %vm4361 = vcmp.lt.f32.partialorder %v4360, 0.0004427343
        %v4362 = vsel %vm4361, %v4359, %v4356
        %v4363 = vadd.f32 %v4311, 1.0
        %v4364 = vlog2.pop %v4363
        %v4365 = vmul.f32 %v4364, 0.6931472
        %v4366 = vmul.f32 -0.5, %v4311
        %v4367 = vadd.f32 %v4366, 1.0
        %v4368 = vmul.f32 %v4367, %v4311
        %v4369 = vand.u32 2147483647, %v4311
        %vm4370 = vcmp.lt.f32.partialorder %v4369, 0.0004427343
        %v4371 = vsel %vm4370, %v4368, %v4365
        %v4372 = vadd.f32 %v4313, 1.0
        %v4373 = vlog2.pop %v4372
        %v4374 = vmul.f32 %v4373, 0.6931472
        %v4375 = vmul.f32 -0.5, %v4313
        %v4376 = vadd.f32 %v4375, 1.0
        %v4377 = vmul.f32 %v4376, %v4313
        %v4378 = vand.u32 2147483647, %v4313
        %vm4379 = vcmp.lt.f32.partialorder %v4378, 0.0004427343
        %v4380 = vsel %vm4379, %v4377, %v4374
        %v4381 = vadd.f32 %v4315, 1.0
        %v4382 = vlog2.pop %v4381
        %v4383 = vmul.f32 %v4382, 0.6931472
        %v4384 = vmul.f32 -0.5, %v4315
        %v4385 = vadd.f32 %v4384, 1.0
        %v4386 = vmul.f32 %v4385, %v4315
        %v4387 = vand.u32 2147483647, %v4315
        %vm4388 = vcmp.lt.f32.partialorder %v4387, 0.0004427343
        %v4389 = vsel %vm4388, %v4386, %v4383
        %v4390 = vadd.f32 %v4317, 1.0
        %v4391 = vlog2.pop %v4390
        %v4392 = vmul.f32 %v4391, 0.6931472
        %v4393 = vmul.f32 -0.5, %v4317
        %v4394 = vadd.f32 %v4393, 1.0
        %v4395 = vmul.f32 %v4394, %v4317
        %v4396 = vand.u32 2147483647, %v4317
        %vm4397 = vcmp.lt.f32.partialorder %v4396, 0.0004427343
        %v4398 = vsel %vm4397, %v4395, %v4392
        %v4399 = vadd.f32 %v4319, 1.0
        %v4400 = vlog2.pop %v4399
        %v4401 = vmul.f32 %v4400, 0.6931472
        %v4402 = vmul.f32 -0.5, %v4319
        %v4403 = vadd.f32 %v4402, 1.0
        %v4404 = vmul.f32 %v4403, %v4319
        %v4405 = vand.u32 2147483647, %v4319
        %vm4406 = vcmp.lt.f32.partialorder %v4405, 0.0004427343
        %v4407 = vsel %vm4406, %v4404, %v4401
        %v4408 = vadd.f32 %v4321, 1.0
        %v4409 = vlog2.pop %v4408
        %v4410 = vmul.f32 %v4409, 0.6931472
        %v4411 = vmul.f32 -0.5, %v4321
        %v4412 = vadd.f32 %v4411, 1.0
        %v4413 = vmul.f32 %v4412, %v4321
        %v4414 = vand.u32 2147483647, %v4321
        %vm4415 = vcmp.lt.f32.partialorder %v4414, 0.0004427343
        %v4416 = vsel %vm4415, %v4413, %v4410
        %v4417 = vadd.f32 %v4323, 1.0
        %v4418 = vlog2.pop %v4417
        %v4419 = vmul.f32 %v4418, 0.6931472
        %v4420 = vmul.f32 -0.5, %v4323
        %v4421 = vadd.f32 %v4420, 1.0
        %v4422 = vmul.f32 %v4421, %v4323
        %v4423 = vand.u32 2147483647, %v4323
        %vm4424 = vcmp.lt.f32.partialorder %v4423, 0.0004427343
        %v4425 = vsel %vm4424, %v4422, %v4419
        %v4426 = vadd.f32 %v4325, 1.0
        %v4427 = vlog2.pop %v4426
        %v4428 = vmul.f32 %v4427, 0.6931472
        %v4429 = vmul.f32 -0.5, %v4325
        %v4430 = vadd.f32 %v4429, 1.0
        %v4431 = vmul.f32 %v4430, %v4325
        %v4432 = vand.u32 2147483647, %v4325
        %vm4433 = vcmp.lt.f32.partialorder %v4432, 0.0004427343
        %v4434 = vsel %vm4433, %v4431, %v4428
        %v4435 = vadd.f32 %v4327, 1.0
        %v4436 = vlog2.pop %v4435
        %v4437 = vmul.f32 %v4436, 0.6931472
        %v4438 = vmul.f32 -0.5, %v4327
        %v4439 = vadd.f32 %v4438, 1.0
        %v4440 = vmul.f32 %v4439, %v4327
        %v4441 = vand.u32 2147483647, %v4327
        %vm4442 = vcmp.lt.f32.partialorder %v4441, 0.0004427343
        %v4443 = vsel %vm4442, %v4440, %v4437
        %v4444 = vadd.f32 %v4329, 1.0
        %v4445 = vlog2.pop %v4444
        %v4446 = vmul.f32 %v4445, 0.6931472
        %v4447 = vmul.f32 -0.5, %v4329
        %v4448 = vadd.f32 %v4447, 1.0
        %v4449 = vmul.f32 %v4448, %v4329
        %v4450 = vand.u32 2147483647, %v4329
        %vm4451 = vcmp.lt.f32.partialorder %v4450, 0.0004427343
        %v4452 = vsel %vm4451, %v4449, %v4446
        %v4453 = vadd.f32 %v4331, 1.0
        %v4454 = vlog2.pop %v4453
        %v4455 = vmul.f32 %v4454, 0.6931472
        %v4456 = vmul.f32 -0.5, %v4331
        %v4457 = vadd.f32 %v4456, 1.0
        %v4458 = vmul.f32 %v4457, %v4331
        %v4459 = vand.u32 2147483647, %v4331
        %vm4460 = vcmp.lt.f32.partialorder %v4459, 0.0004427343
        %v4461 = vsel %vm4460, %v4458, %v4455
        %v4462 = vadd.f32 %v4333, 1.0
        %v4463 = vlog2.pop %v4462
        %v4464 = vmul.f32 %v4463, 0.6931472
        %v4465 = vmul.f32 -0.5, %v4333
        %v4466 = vadd.f32 %v4465, 1.0
        %v4467 = vmul.f32 %v4466, %v4333
        %v4468 = vand.u32 2147483647, %v4333
        %vm4469 = vcmp.lt.f32.partialorder %v4468, 0.0004427343
        %v4470 = vsel %vm4469, %v4467, %v4464
        %v4471 = vadd.f32 %v4335, 1.0
        %v4472 = vlog2.pop %v4471
        %v4473 = vmul.f32 %v4472, 0.6931472
        %v4474 = vmul.f32 -0.5, %v4335
        %v4475 = vadd.f32 %v4474, 1.0
        %v4476 = vmul.f32 %v4475, %v4335
        %v4477 = vand.u32 2147483647, %v4335
        %vm4478 = vcmp.lt.f32.partialorder %v4477, 0.0004427343
        %v4479 = vsel %vm4478, %v4476, %v4473
        %v4480 = vsel %vm4272, %v4194, %v4344
        %v4481 = vsel %vm4273, %v4199, %v4353
        %v4482 = vsel %vm4274, %v4204, %v4362
        %v4483 = vsel %vm4275, %v4209, %v4371
        %v4484 = vsel %vm4276, %v4214, %v4380
        %v4485 = vsel %vm4277, %v4219, %v4389
        %v4486 = vsel %vm4278, %v4224, %v4398
        %v4487 = vsel %vm4279, %v4229, %v4407
        %v4488 = vsel %vm4280, %v4234, %v4416
        %v4489 = vsel %vm4281, %v4239, %v4425
        %v4490 = vsel %vm4282, %v4244, %v4434
        %v4491 = vsel %vm4283, %v4249, %v4443
        %v4492 = vsel %vm4284, %v4254, %v4452
        %v4493 = vsel %vm4285, %v4259, %v4461
        %v4494 = vsel %vm4286, %v4264, %v4470
        %v4495 = vsel %vm4287, %v4269, %v4479
        %v4496 = vld [vmem:[#allocation8] sm:$0xff]
        %v4497 = vld [vmem:[#allocation8 + $0x8] sm:$0xff]
        %v4498 = vld [vmem:[#allocation8 + $0x10] sm:$0xff]
        %v4499 = vld [vmem:[#allocation8 + $0x18] sm:$0xff]
        %v4500 = vld [vmem:[#allocation8 + $0x20] sm:$0xff]
        %v4501 = vld [vmem:[#allocation8 + $0x28] sm:$0xff]
        %v4502 = vld [vmem:[#allocation8 + $0x30] sm:$0xff]
        %v4503 = vld [vmem:[#allocation8 + $0x38] sm:$0xff]
        %v4504 = vld [vmem:[#allocation8 + $0x40] sm:$0xff]
        %v4505 = vld [vmem:[#allocation8 + $0x48] sm:$0xff]
        %v4506 = vld [vmem:[#allocation8 + $0x50] sm:$0xff]
        %v4507 = vld [vmem:[#allocation8 + $0x58] sm:$0xff]
        %v4508 = vld [vmem:[#allocation8 + $0x60] sm:$0xff]
        %v4509 = vld [vmem:[#allocation8 + $0x68] sm:$0xff]
        %v4510 = vld [vmem:[#allocation8 + $0x70] sm:$0xff]
        %v4511 = vld [vmem:[#allocation8 + $0x78] sm:$0xff]
        %v4512 = vlaneseq
        %v4513 = vshrl.u32 %v4512, 7
        %v4514 = vsub.s32 0, %v4513
        %v4515 = vrot.slane %v345, %v4514
        %4516 = vmatprep.subr.mxu0 0.0
        %4517 = vmatpush1.msra.mxu0 %v4496
        %4518 = vmatprep.subr.mxu0 0.0
        %4519 = vmatpush1.msra.mxu0 %v4497
        %4520 = vmatprep.subr.mxu0 0.0
        %4521 = vmatpush1.msra.mxu0 %v4498
        %4522 = vmatprep.subr.mxu0 0.0
        %4523 = vmatpush1.msra.mxu0 %v4499
        %4524 = vmatprep.subr.mxu0 0.0
        %4525 = vmatpush1.msra.mxu0 %v4500
        %4526 = vmatprep.subr.mxu0 0.0
        %4527 = vmatpush1.msra.mxu0 %v4501
        %4528 = vmatprep.subr.mxu0 0.0
        %4529 = vmatpush1.msra.mxu0 %v4502
        %4530 = vmatprep.subr.mxu0 0.0
        %4531 = vmatpush1.msra.mxu0 %v4503
        %4532 = vmatprep.subr.mxu0 0.0
        %4533 = vmatpush1.msra.mxu0 %v4504
        %4534 = vmatprep.subr.mxu0 0.0
        %4535 = vmatpush1.msra.mxu0 %v4505
        %4536 = vmatprep.subr.mxu0 0.0
        %4537 = vmatpush1.msra.mxu0 %v4506
        %4538 = vmatprep.subr.mxu0 0.0
        %4539 = vmatpush1.msra.mxu0 %v4507
        %4540 = vmatprep.subr.mxu0 0.0
        %4541 = vmatpush1.msra.mxu0 %v4508
        %4542 = vmatprep.subr.mxu0 0.0
        %4543 = vmatpush1.msra.mxu0 %v4509
        %4544 = vmatprep.subr.mxu0 0.0
        %4545 = vmatpush1.msra.mxu0 %v4510
        %4546 = vmatprep.subr.mxu0 0.0
        %4547 = vmatpush1.msra.mxu0 %v4511
        %4548 = vmatprep.subr.mxu0 0.0
        %4549 = vmatpush1.msra.mxu0 0.0
        %4550 = vmatprep.subr.mxu0 0.0
        %4551 = vmatpush1.msra.mxu0 0.0
        %4552 = vmatprep.subr.mxu0 0.0
        %4553 = vmatpush1.msra.mxu0 0.0
        %4554 = vmatprep.subr.mxu0 0.0
        %4555 = vmatpush1.msra.mxu0 0.0
        %4556 = vmatprep.subr.mxu0 0.0
        %4557 = vmatpush1.msra.mxu0 0.0
        %4558 = vmatprep.subr.mxu0 0.0
        %4559 = vmatpush1.msra.mxu0 0.0
        %4560 = vmatprep.subr.mxu0 0.0
        %4561 = vmatpush1.msra.mxu0 0.0
        %4562 = vmatprep.subr.mxu0 0.0
        %4563 = vmatpush1.msra.mxu0 0.0
        %4564 = vmatprep.subr.mxu0 0.0
        %4565 = vmatpush1.msra.mxu0 0.0
        %4566 = vmatprep.subr.mxu0 0.0
        %4567 = vmatpush1.msra.mxu0 0.0
        %4568 = vmatprep.subr.mxu0 0.0
        %4569 = vmatpush1.msra.mxu0 0.0
        %4570 = vmatprep.subr.mxu0 0.0
        %4571 = vmatpush1.msra.mxu0 0.0
        %4572 = vmatprep.subr.mxu0 0.0
        %4573 = vmatpush1.msra.mxu0 0.0
        %4574 = vmatprep.subr.mxu0 0.0
        %4575 = vmatpush1.msra.mxu0 0.0
        %4576 = vmatprep.subr.mxu0 0.0
        %4577 = vmatpush1.msra.mxu0 0.0
        %4578 = vmatprep.subr.mxu0 0.0
        %4579 = vmatpush1.msra.mxu0 0.0
        %4580 = vmatprep.mubr.f32.mxu0 0.0
        %4581 = vmatmul.mubr.f32.gmra.mrb[0].mxu0 %v4480
        %v4582 = vpop.f32.mrb[0].mxu0
        %v4583 = vadd.f32 %v4515, %v4582
        %v4584 = vpop.f32.mrb[0].mxu0
        %4585 = vmatprep.mubr.f32.mxu0 0.0
        %4586 = vmatmul.mubr.f32.gmra.mrb[0].mxu0 %v4481
        %v4587 = vpop.f32.mrb[0].mxu0
        %v4588 = vadd.f32 %v4515, %v4587
        %v4589 = vpop.f32.mrb[0].mxu0
        %4590 = vmatprep.mubr.f32.mxu0 0.0
        %4591 = vmatmul.mubr.f32.gmra.mrb[0].mxu0 %v4482
        %v4592 = vpop.f32.mrb[0].mxu0
        %v4593 = vadd.f32 %v4515, %v4592
        %v4594 = vpop.f32.mrb[0].mxu0
        %4595 = vmatprep.mubr.f32.mxu0 0.0
        %4596 = vmatmul.mubr.f32.gmra.mrb[0].mxu0 %v4483
        %v4597 = vpop.f32.mrb[0].mxu0
        %v4598 = vadd.f32 %v4515, %v4597
        %v4599 = vpop.f32.mrb[0].mxu0
        %4600 = vmatprep.mubr.f32.mxu0 0.0
        %4601 = vmatmul.mubr.f32.gmra.mrb[0].mxu0 %v4484
        %v4602 = vpop.f32.mrb[0].mxu0
        %v4603 = vadd.f32 %v4515, %v4602
        %v4604 = vpop.f32.mrb[0].mxu0
        %4605 = vmatprep.mubr.f32.mxu0 0.0
        %4606 = vmatmul.mubr.f32.gmra.mrb[0].mxu0 %v4485
        %v4607 = vpop.f32.mrb[0].mxu0
        %v4608 = vadd.f32 %v4515, %v4607
        %v4609 = vpop.f32.mrb[0].mxu0
        %4610 = vmatprep.mubr.f32.mxu0 0.0
        %4611 = vmatmul.mubr.f32.gmra.mrb[0].mxu0 %v4486
        %v4612 = vpop.f32.mrb[0].mxu0
        %v4613 = vadd.f32 %v4515, %v4612
        %v4614 = vpop.f32.mrb[0].mxu0
        %4615 = vmatprep.mubr.f32.mxu0 0.0
        %4616 = vmatmul.mubr.f32.gmra.mrb[0].mxu0 %v4487
        %v4617 = vpop.f32.mrb[0].mxu0
        %v4618 = vadd.f32 %v4515, %v4617
        %v4619 = vpop.f32.mrb[0].mxu0
        %4620 = vmatprep.mubr.f32.mxu0 0.0
        %4621 = vmatmul.mubr.f32.gmra.mrb[0].mxu0 %v4488
        %v4622 = vpop.f32.mrb[0].mxu0
        %v4623 = vadd.f32 %v4515, %v4622
        %v4624 = vpop.f32.mrb[0].mxu0
        %4625 = vmatprep.mubr.f32.mxu0 0.0
        %4626 = vmatmul.mubr.f32.gmra.mrb[0].mxu0 %v4489
        %v4627 = vpop.f32.mrb[0].mxu0
        %v4628 = vadd.f32 %v4515, %v4627
        %v4629 = vpop.f32.mrb[0].mxu0
        %4630 = vmatprep.mubr.f32.mxu0 0.0
        %4631 = vmatmul.mubr.f32.gmra.mrb[0].mxu0 %v4490
        %v4632 = vpop.f32.mrb[0].mxu0
        %v4633 = vadd.f32 %v4515, %v4632
        %v4634 = vpop.f32.mrb[0].mxu0
        %4635 = vmatprep.mubr.f32.mxu0 0.0
        %4636 = vmatmul.mubr.f32.gmra.mrb[0].mxu0 %v4491
        %v4637 = vpop.f32.mrb[0].mxu0
        %v4638 = vadd.f32 %v4515, %v4637
        %v4639 = vpop.f32.mrb[0].mxu0
        %4640 = vmatprep.mubr.f32.mxu0 0.0
        %4641 = vmatmul.mubr.f32.gmra.mrb[0].mxu0 %v4492
        %v4642 = vpop.f32.mrb[0].mxu0
        %v4643 = vadd.f32 %v4515, %v4642
        %v4644 = vpop.f32.mrb[0].mxu0
        %4645 = vmatprep.mubr.f32.mxu0 0.0
        %4646 = vmatmul.mubr.f32.gmra.mrb[0].mxu0 %v4493
        %v4647 = vpop.f32.mrb[0].mxu0
        %v4648 = vadd.f32 %v4515, %v4647
        %v4649 = vpop.f32.mrb[0].mxu0
        %4650 = vmatprep.mubr.f32.mxu0 0.0
        %4651 = vmatmul.mubr.f32.gmra.mrb[0].mxu0 %v4494
        %v4652 = vpop.f32.mrb[0].mxu0
        %v4653 = vadd.f32 %v4515, %v4652
        %v4654 = vpop.f32.mrb[0].mxu0
        %4655 = vmatprep.mubr.f32.mxu0 0.0
        %4656 = vmatmul.mubr.f32.gmra.mrb[0].mxu0 %v4495
        %v4657 = vpop.f32.mrb[0].mxu0
        %v4658 = vadd.f32 %v4515, %v4657
        %v4659 = vpop.f32.mrb[0].mxu0
        %4660 = vdwg.mxu0
        %v4661 = vtanh.pop %v4583
        %v4662 = vtanh.pop %v4588
        %v4663 = vtanh.pop %v4593
        %v4664 = vtanh.pop %v4598
        %v4665 = vtanh.pop %v4603
        %v4666 = vtanh.pop %v4608
        %v4667 = vtanh.pop %v4613
        %v4668 = vtanh.pop %v4618
        %v4669 = vtanh.pop %v4623
        %v4670 = vtanh.pop %v4628
        %v4671 = vtanh.pop %v4633
        %v4672 = vtanh.pop %v4638
        %v4673 = vtanh.pop %v4643
        %v4674 = vtanh.pop %v4648
        %v4675 = vtanh.pop %v4653
        %v4676 = vtanh.pop %v4658
        %v4677 = vsub.f32 %v4583, %v4661
        %v4678 = vsub.f32 %v4588, %v4662
        %v4679 = vsub.f32 %v4593, %v4663
        %v4680 = vsub.f32 %v4598, %v4664
        %v4681 = vsub.f32 %v4603, %v4665
        %v4682 = vsub.f32 %v4608, %v4666
        %v4683 = vsub.f32 %v4613, %v4667
        %v4684 = vsub.f32 %v4618, %v4668
        %v4685 = vsub.f32 %v4623, %v4669
        %v4686 = vsub.f32 %v4628, %v4670
        %v4687 = vsub.f32 %v4633, %v4671
        %v4688 = vsub.f32 %v4638, %v4672
        %v4689 = vsub.f32 %v4643, %v4673
        %v4690 = vsub.f32 %v4648, %v4674
        %v4691 = vsub.f32 %v4653, %v4675
        %v4692 = vsub.f32 %v4658, %v4676
        %v4693 = vld [vmem:[#allocation10] sm:$0xff]
        %v4694 = vld [vmem:[#allocation10 + $0x8] sm:$0xff]
        %v4695 = vld [vmem:[#allocation10 + $0x10] sm:$0xff]
        %v4696 = vld [vmem:[#allocation10 + $0x18] sm:$0xff]
        %v4697 = vld [vmem:[#allocation10 + $0x20] sm:$0xff]
        %v4698 = vld [vmem:[#allocation10 + $0x28] sm:$0xff]
        %v4699 = vld [vmem:[#allocation10 + $0x30] sm:$0xff]
        %v4700 = vld [vmem:[#allocation10 + $0x38] sm:$0xff]
        %v4701 = vld [vmem:[#allocation10 + $0x40] sm:$0xff]
        %v4702 = vld [vmem:[#allocation10 + $0x48] sm:$0xff]
        %v4703 = vld [vmem:[#allocation10 + $0x50] sm:$0xff]
        %v4704 = vld [vmem:[#allocation10 + $0x58] sm:$0xff]
        %v4705 = vld [vmem:[#allocation10 + $0x60] sm:$0xff]
        %v4706 = vld [vmem:[#allocation10 + $0x68] sm:$0xff]
        %v4707 = vld [vmem:[#allocation10 + $0x70] sm:$0xff]
        %v4708 = vld [vmem:[#allocation10 + $0x78] sm:$0xff]
        %v4709 = vlaneseq
        %v4710 = vshrl.u32 %v4709, 7
        %v4711 = vsub.s32 0, %v4710
        %v4712 = vrot.slane %v346, %v4711
        %4713 = vmatprep.subr.mxu0 0.0
        %4714 = vmatpush1.msra.mxu0 %v4693
        %4715 = vmatprep.subr.mxu0 0.0
        %4716 = vmatpush1.msra.mxu0 %v4694
        %4717 = vmatprep.subr.mxu0 0.0
        %4718 = vmatpush1.msra.mxu0 %v4695
        %4719 = vmatprep.subr.mxu0 0.0
        %4720 = vmatpush1.msra.mxu0 %v4696
        %4721 = vmatprep.subr.mxu0 0.0
        %4722 = vmatpush1.msra.mxu0 %v4697
        %4723 = vmatprep.subr.mxu0 0.0
        %4724 = vmatpush1.msra.mxu0 %v4698
        %4725 = vmatprep.subr.mxu0 0.0
        %4726 = vmatpush1.msra.mxu0 %v4699
        %4727 = vmatprep.subr.mxu0 0.0
        %4728 = vmatpush1.msra.mxu0 %v4700
        %4729 = vmatprep.subr.mxu0 0.0
        %4730 = vmatpush1.msra.mxu0 %v4701
        %4731 = vmatprep.subr.mxu0 0.0
        %4732 = vmatpush1.msra.mxu0 %v4702
        %4733 = vmatprep.subr.mxu0 0.0
        %4734 = vmatpush1.msra.mxu0 %v4703
        %4735 = vmatprep.subr.mxu0 0.0
        %4736 = vmatpush1.msra.mxu0 %v4704
        %4737 = vmatprep.subr.mxu0 0.0
        %4738 = vmatpush1.msra.mxu0 %v4705
        %4739 = vmatprep.subr.mxu0 0.0
        %4740 = vmatpush1.msra.mxu0 %v4706
        %4741 = vmatprep.subr.mxu0 0.0
        %4742 = vmatpush1.msra.mxu0 %v4707
        %4743 = vmatprep.subr.mxu0 0.0
        %4744 = vmatpush1.msra.mxu0 %v4708
        %4745 = vmatprep.subr.mxu0 0.0
        %4746 = vmatpush1.msra.mxu0 0.0
        %4747 = vmatprep.subr.mxu0 0.0
        %4748 = vmatpush1.msra.mxu0 0.0
        %4749 = vmatprep.subr.mxu0 0.0
        %4750 = vmatpush1.msra.mxu0 0.0
        %4751 = vmatprep.subr.mxu0 0.0
        %4752 = vmatpush1.msra.mxu0 0.0
        %4753 = vmatprep.subr.mxu0 0.0
        %4754 = vmatpush1.msra.mxu0 0.0
        %4755 = vmatprep.subr.mxu0 0.0
        %4756 = vmatpush1.msra.mxu0 0.0
        %4757 = vmatprep.subr.mxu0 0.0
        %4758 = vmatpush1.msra.mxu0 0.0
        %4759 = vmatprep.subr.mxu0 0.0
        %4760 = vmatpush1.msra.mxu0 0.0
        %4761 = vmatprep.subr.mxu0 0.0
        %4762 = vmatpush1.msra.mxu0 0.0
        %4763 = vmatprep.subr.mxu0 0.0
        %4764 = vmatpush1.msra.mxu0 0.0
        %4765 = vmatprep.subr.mxu0 0.0
        %4766 = vmatpush1.msra.mxu0 0.0
        %4767 = vmatprep.subr.mxu0 0.0
        %4768 = vmatpush1.msra.mxu0 0.0
        %4769 = vmatprep.subr.mxu0 0.0
        %4770 = vmatpush1.msra.mxu0 0.0
        %4771 = vmatprep.subr.mxu0 0.0
        %4772 = vmatpush1.msra.mxu0 0.0
        %4773 = vmatprep.subr.mxu0 0.0
        %4774 = vmatpush1.msra.mxu0 0.0
        %4775 = vmatprep.subr.mxu0 0.0
        %4776 = vmatpush1.msra.mxu0 0.0
        %4777 = vmatprep.mubr.f32.mxu0 0.0
        %4778 = vmatmul.mubr.f32.gmra.mrb[0].mxu0 %v4677
        %v4779 = vpop.f32.mrb[0].mxu0
        %v4780 = vadd.f32 %v4712, %v4779
        %v4781 = vpop.f32.mrb[0].mxu0
        %4782 = vmatprep.mubr.f32.mxu0 0.0
        %4783 = vmatmul.mubr.f32.gmra.mrb[0].mxu0 %v4678
        %v4784 = vpop.f32.mrb[0].mxu0
        %v4785 = vadd.f32 %v4712, %v4784
        %v4786 = vpop.f32.mrb[0].mxu0
        %4787 = vmatprep.mubr.f32.mxu0 0.0
        %4788 = vmatmul.mubr.f32.gmra.mrb[0].mxu0 %v4679
        %v4789 = vpop.f32.mrb[0].mxu0
        %v4790 = vadd.f32 %v4712, %v4789
        %v4791 = vpop.f32.mrb[0].mxu0
        %4792 = vmatprep.mubr.f32.mxu0 0.0
        %4793 = vmatmul.mubr.f32.gmra.mrb[0].mxu0 %v4680
        %v4794 = vpop.f32.mrb[0].mxu0
        %v4795 = vadd.f32 %v4712, %v4794
        %v4796 = vpop.f32.mrb[0].mxu0
        %4797 = vmatprep.mubr.f32.mxu0 0.0
        %4798 = vmatmul.mubr.f32.gmra.mrb[0].mxu0 %v4681
        %v4799 = vpop.f32.mrb[0].mxu0
        %v4800 = vadd.f32 %v4712, %v4799
        %v4801 = vpop.f32.mrb[0].mxu0
        %4802 = vmatprep.mubr.f32.mxu0 0.0
        %4803 = vmatmul.mubr.f32.gmra.mrb[0].mxu0 %v4682
        %v4804 = vpop.f32.mrb[0].mxu0
        %v4805 = vadd.f32 %v4712, %v4804
        %v4806 = vpop.f32.mrb[0].mxu0
        %4807 = vmatprep.mubr.f32.mxu0 0.0
        %4808 = vmatmul.mubr.f32.gmra.mrb[0].mxu0 %v4683
        %v4809 = vpop.f32.mrb[0].mxu0
        %v4810 = vadd.f32 %v4712, %v4809
        %v4811 = vpop.f32.mrb[0].mxu0
        %4812 = vmatprep.mubr.f32.mxu0 0.0
        %4813 = vmatmul.mubr.f32.gmra.mrb[0].mxu0 %v4684
        %v4814 = vpop.f32.mrb[0].mxu0
        %v4815 = vadd.f32 %v4712, %v4814
        %v4816 = vpop.f32.mrb[0].mxu0
        %4817 = vmatprep.mubr.f32.mxu0 0.0
        %4818 = vmatmul.mubr.f32.gmra.mrb[0].mxu0 %v4685
        %v4819 = vpop.f32.mrb[0].mxu0
        %v4820 = vadd.f32 %v4712, %v4819
        %v4821 = vpop.f32.mrb[0].mxu0
        %4822 = vmatprep.mubr.f32.mxu0 0.0
        %4823 = vmatmul.mubr.f32.gmra.mrb[0].mxu0 %v4686
        %v4824 = vpop.f32.mrb[0].mxu0
        %v4825 = vadd.f32 %v4712, %v4824
        %v4826 = vpop.f32.mrb[0].mxu0
        %4827 = vmatprep.mubr.f32.mxu0 0.0
        %4828 = vmatmul.mubr.f32.gmra.mrb[0].mxu0 %v4687
        %v4829 = vpop.f32.mrb[0].mxu0
        %v4830 = vadd.f32 %v4712, %v4829
        %v4831 = vpop.f32.mrb[0].mxu0
        %4832 = vmatprep.mubr.f32.mxu0 0.0
        %4833 = vmatmul.mubr.f32.gmra.mrb[0].mxu0 %v4688
        %v4834 = vpop.f32.mrb[0].mxu0
        %v4835 = vadd.f32 %v4712, %v4834
        %v4836 = vpop.f32.mrb[0].mxu0
        %4837 = vmatprep.mubr.f32.mxu0 0.0
        %4838 = vmatmul.mubr.f32.gmra.mrb[0].mxu0 %v4689
        %v4839 = vpop.f32.mrb[0].mxu0
        %v4840 = vadd.f32 %v4712, %v4839
        %v4841 = vpop.f32.mrb[0].mxu0
        %4842 = vmatprep.mubr.f32.mxu0 0.0
        %4843 = vmatmul.mubr.f32.gmra.mrb[0].mxu0 %v4690
        %v4844 = vpop.f32.mrb[0].mxu0
        %v4845 = vadd.f32 %v4712, %v4844
        %v4846 = vpop.f32.mrb[0].mxu0
        %4847 = vmatprep.mubr.f32.mxu0 0.0
        %4848 = vmatmul.mubr.f32.gmra.mrb[0].mxu0 %v4691
        %v4849 = vpop.f32.mrb[0].mxu0
        %v4850 = vadd.f32 %v4712, %v4849
        %v4851 = vpop.f32.mrb[0].mxu0
        %4852 = vmatprep.mubr.f32.mxu0 0.0
        %4853 = vmatmul.mubr.f32.gmra.mrb[0].mxu0 %v4692
        %v4854 = vpop.f32.mrb[0].mxu0
        %v4855 = vadd.f32 %v4712, %v4854
        %v4856 = vpop.f32.mrb[0].mxu0
        %4857 = vdwg.mxu0
        %v4858 = vsub.f32 0.0, %v4780
        %v4859 = vsub.f32 0.0, %v4785
        %v4860 = vsub.f32 0.0, %v4790
        %v4861 = vsub.f32 0.0, %v4795
        %v4862 = vsub.f32 0.0, %v4800
        %v4863 = vsub.f32 0.0, %v4805
        %v4864 = vsub.f32 0.0, %v4810
        %v4865 = vsub.f32 0.0, %v4815
        %v4866 = vsub.f32 0.0, %v4820
        %v4867 = vsub.f32 0.0, %v4825
        %v4868 = vsub.f32 0.0, %v4830
        %v4869 = vsub.f32 0.0, %v4835
        %v4870 = vsub.f32 0.0, %v4840
        %v4871 = vsub.f32 0.0, %v4845
        %v4872 = vsub.f32 0.0, %v4850
        %v4873 = vsub.f32 0.0, %v4855
        %v4874 = vmul.f32 %v4858, 1.442695
        %v4875 = vpow.pop %v4874
        %v4876 = vmul.f32 %v4859, 1.442695
        %v4877 = vpow.pop %v4876
        %v4878 = vmul.f32 %v4860, 1.442695
        %v4879 = vpow.pop %v4878
        %v4880 = vmul.f32 %v4861, 1.442695
        %v4881 = vpow.pop %v4880
        %v4882 = vmul.f32 %v4862, 1.442695
        %v4883 = vpow.pop %v4882
        %v4884 = vmul.f32 %v4863, 1.442695
        %v4885 = vpow.pop %v4884
        %v4886 = vmul.f32 %v4864, 1.442695
        %v4887 = vpow.pop %v4886
        %v4888 = vmul.f32 %v4865, 1.442695
        %v4889 = vpow.pop %v4888
        %v4890 = vmul.f32 %v4866, 1.442695
        %v4891 = vpow.pop %v4890
        %v4892 = vmul.f32 %v4867, 1.442695
        %v4893 = vpow.pop %v4892
        %v4894 = vmul.f32 %v4868, 1.442695
        %v4895 = vpow.pop %v4894
        %v4896 = vmul.f32 %v4869, 1.442695
        %v4897 = vpow.pop %v4896
        %v4898 = vmul.f32 %v4870, 1.442695
        %v4899 = vpow.pop %v4898
        %v4900 = vmul.f32 %v4871, 1.442695
        %v4901 = vpow.pop %v4900
        %v4902 = vmul.f32 %v4872, 1.442695
        %v4903 = vpow.pop %v4902
        %v4904 = vmul.f32 %v4873, 1.442695
        %v4905 = vpow.pop %v4904
        %v4906 = vadd.f32 %v4875, 1.0
        %v4907 = vadd.f32 %v4877, 1.0
        %v4908 = vadd.f32 %v4879, 1.0
        %v4909 = vadd.f32 %v4881, 1.0
        %v4910 = vadd.f32 %v4883, 1.0
        %v4911 = vadd.f32 %v4885, 1.0
        %v4912 = vadd.f32 %v4887, 1.0
        %v4913 = vadd.f32 %v4889, 1.0
        %v4914 = vadd.f32 %v4891, 1.0
        %v4915 = vadd.f32 %v4893, 1.0
        %v4916 = vadd.f32 %v4895, 1.0
        %v4917 = vadd.f32 %v4897, 1.0
        %v4918 = vadd.f32 %v4899, 1.0
        %v4919 = vadd.f32 %v4901, 1.0
        %v4920 = vadd.f32 %v4903, 1.0
        %v4921 = vadd.f32 %v4905, 1.0
        %v4922 = vrcp.pop %v4906
        %v4923 = vmul.f32 1.0, %v4922
        %v4924 = vrcp.pop %v4907
        %v4925 = vmul.f32 1.0, %v4924
        %v4926 = vrcp.pop %v4908
        %v4927 = vmul.f32 1.0, %v4926
        %v4928 = vrcp.pop %v4909
        %v4929 = vmul.f32 1.0, %v4928
        %v4930 = vrcp.pop %v4910
        %v4931 = vmul.f32 1.0, %v4930
        %v4932 = vrcp.pop %v4911
        %v4933 = vmul.f32 1.0, %v4932
        %v4934 = vrcp.pop %v4912
        %v4935 = vmul.f32 1.0, %v4934
        %v4936 = vrcp.pop %v4913
        %v4937 = vmul.f32 1.0, %v4936
        %v4938 = vrcp.pop %v4914
        %v4939 = vmul.f32 1.0, %v4938
        %v4940 = vrcp.pop %v4915
        %v4941 = vmul.f32 1.0, %v4940
        %v4942 = vrcp.pop %v4916
        %v4943 = vmul.f32 1.0, %v4942
        %v4944 = vrcp.pop %v4917
        %v4945 = vmul.f32 1.0, %v4944
        %v4946 = vrcp.pop %v4918
        %v4947 = vmul.f32 1.0, %v4946
        %v4948 = vrcp.pop %v4919
        %v4949 = vmul.f32 1.0, %v4948
        %v4950 = vrcp.pop %v4920
        %v4951 = vmul.f32 1.0, %v4950
        %v4952 = vrcp.pop %v4921
        %v4953 = vmul.f32 1.0, %v4952
        %4954 = vmatprep.subr.mxu0 0.0
        %4955 = vmatpush1.xpose.msra.mxu0 %v4923
        %4956 = vmatprep.subr.mxu0 0.0
        %4957 = vmatpush1.xpose.msra.mxu0 %v4925
        %4958 = vmatprep.subr.mxu0 0.0
        %4959 = vmatpush1.xpose.msra.mxu0 %v4927
        %4960 = vmatprep.subr.mxu0 0.0
        %4961 = vmatpush1.xpose.msra.mxu0 %v4929
        %4962 = vmatprep.subr.mxu0 0.0
        %4963 = vmatpush1.xpose.msra.mxu0 %v4931
        %4964 = vmatprep.subr.mxu0 0.0
        %4965 = vmatpush1.xpose.msra.mxu0 %v4933
        %4966 = vmatprep.subr.mxu0 0.0
        %4967 = vmatpush1.xpose.msra.mxu0 %v4935
        %4968 = vmatprep.subr.mxu0 0.0
        %4969 = vmatpush1.xpose.msra.mxu0 %v4937
        %4970 = vmatprep.subr.mxu0 0.0
        %4971 = vmatpush1.xpose.msra.mxu0 %v4939
        %4972 = vmatprep.subr.mxu0 0.0
        %4973 = vmatpush1.xpose.msra.mxu0 %v4941
        %4974 = vmatprep.subr.mxu0 0.0
        %4975 = vmatpush1.xpose.msra.mxu0 %v4943
        %4976 = vmatprep.subr.mxu0 0.0
        %4977 = vmatpush1.xpose.msra.mxu0 %v4945
        %4978 = vmatprep.subr.mxu0 0.0
        %4979 = vmatpush1.xpose.msra.mxu0 %v4947
        %4980 = vmatprep.subr.mxu0 0.0
        %4981 = vmatpush1.xpose.msra.mxu0 %v4949
        %4982 = vmatprep.subr.mxu0 0.0
        %4983 = vmatpush1.xpose.msra.mxu0 %v4951
        %4984 = vmatprep.subr.mxu0 0.0
        %4985 = vmatpush1.xpose.msra.mxu0 %v4953
        %4986 = vmatprep.subr.mxu0 0.0
        %4987 = vmatpush1.xpose.msra.mxu0 0.0
        %4988 = vmatprep.subr.mxu0 0.0
        %4989 = vmatpush1.xpose.msra.mxu0 0.0
        %4990 = vmatprep.subr.mxu0 0.0
        %4991 = vmatpush1.xpose.msra.mxu0 0.0
        %4992 = vmatprep.subr.mxu0 0.0
        %4993 = vmatpush1.xpose.msra.mxu0 0.0
        %4994 = vmatprep.subr.mxu0 0.0
        %4995 = vmatpush1.xpose.msra.mxu0 0.0
        %4996 = vmatprep.subr.mxu0 0.0
        %4997 = vmatpush1.xpose.msra.mxu0 0.0
        %4998 = vmatprep.subr.mxu0 0.0
        %4999 = vmatpush1.xpose.msra.mxu0 0.0
        %5000 = vmatprep.subr.mxu0 0.0
        %5001 = vmatpush1.xpose.msra.mxu0 0.0
        %5002 = vmatprep.subr.mxu0 0.0
        %5003 = vmatpush1.xpose.msra.mxu0 0.0
        %5004 = vmatprep.subr.mxu0 0.0
        %5005 = vmatpush1.xpose.msra.mxu0 0.0
        %5006 = vmatprep.subr.mxu0 0.0
        %5007 = vmatpush1.xpose.msra.mxu0 0.0
        %5008 = vmatprep.subr.mxu0 0.0
        %5009 = vmatpush1.xpose.msra.mxu0 0.0
        %5010 = vmatprep.subr.mxu0 0.0
        %5011 = vmatpush1.xpose.msra.mxu0 0.0
        %5012 = vmatprep.subr.mxu0 0.0
        %5013 = vmatpush1.xpose.msra.mxu0 0.0
        %5014 = vmatprep.subr.mxu0 0.0
        %5015 = vmatpush1.xpose.msra.mxu0 0.0
        %5016 = vmatprep.subr.mxu0 0.0
        %5017 = vmatpush1.xpose.msra.mxu0 0.0
        %5018 = vmatprep.mubr.f32.mxu0 0.0
        %5019 = vmatmul.mubr.f32.gmra.mrb[0].mxu0 %v347
        %v5020 = vpop.f32.mrb[0].mxu0
        %v5021 = vadd.f32 0.0, %v5020
        %v5022 = vpop.f32.mrb[0].mxu0
        %5023 = vdwg.mxu0
        %5024 = vst [vmem:[%s340] sm:$0x1] %v5021
        %s5025 = sand.u32 %s165, 1
        %s5026 = scalar_lea.sflag [#allocation4], %s5025
        %s5027 = sand.u32 %s165, 1
        %s5028 = scalar_lea.vmem [#allocation13], %s5027
        // Predicated region
        $region69: #{tpu_custom_call.1} parent=43 // pred_check
          %p5029 = pneg %p175
        $region70: #{tpu_custom_call.1} parent=43 // pred_check_branch
          %5031 = sbr.rel (%p5029) target = $region72
        $region71: #{tpu_custom_call.1} parent=43 // pred_region
          %s5033 = ssub.s32 16, 16
          %5034 = vsyncadd %s5026, %s5033
          %s5035 = smul.addr %s26, 16
          %s5036 = scalar_lea.hbm %s6, %s5035
          %s5038 = sshll.u32 %s5028, 4
          %s5039 = int_to_ptr.vmem [resolvable:$true] %s5038
          %5041 = dma.vmem_to_hbm [thread:$0]  %s5039, 16, %s5036, %s5026
        $region72: #{tpu_custom_call.1} parent=43 // pred_fallthru
          _
      $region44: #{tpu_custom_call.1} parent=5 // pred_fallthru
        _
      %p5042 = scmp.le.s32.totalorder 2, %s21
      // Predicated region
      $region73: #{tpu_custom_call.1} parent=5 // pred_check
        %p5043 = pneg %p5042
      $region74: #{tpu_custom_call.1} parent=5 // pred_check_branch
        %5045 = sbr.rel (%p5043) target = $region76
      $region75: #{tpu_custom_call.1} parent=5 // pred_region
        %s5046 = ssub.s32 %s21, 2
        // Predicated region
        $region77: #{tpu_custom_call.1} parent=75 // pred_check
          %p5047 = pneg %p181
        $region78: #{tpu_custom_call.1} parent=75 // pred_check_branch
          %5049 = sbr.rel (%p5047) target = $region80
        $region79: #{tpu_custom_call.1} parent=75 // pred_region
          %s5050 = sand.u32 %s166, 1
          %s5051 = scalar_lea.sflag [#allocation4], %s5050
          %s5052 = sand.u32 %s166, 1
          %s5053 = scalar_lea.vmem [#allocation13], %s5052
          %5054 = dma.done %s5051, 16
        $region80: #{tpu_custom_call.1} parent=75 // pred_fallthru
          _
      $region76: #{tpu_custom_call.1} parent=5 // pred_fallthru
        _
    $region6: #{tpu_custom_call.1} parent=1 // loop_footer
      %s25 = sadd.s32 1, %s21
    $region7: #{tpu_custom_call.1} parent=1 // loop_footer_branch
      %20 = sbr.rel target = $region3
    $region8: #{tpu_custom_call.1} parent=1 // loop_exit
      _
    %5055 = vsyncpa [#allocation3], 1
    %s5056 = scalar_lea.sflag [#allocation3], 1
    %5057 = vsyncpa %s5056, 1
    %5058 = vsyncpa [#allocation6], 1
    %5059 = vsyncpa [#allocation9], 1
    %5060 = vsyncpa [#allocation12], 1
    %5061 = vsyncpa [#allocation4], 1
    %s5062 = scalar_lea.sflag [#allocation4], 1
    %5063 = vsyncpa %s5062, 1

</llo_original>
